<compile_context>
chip_gen: v6e
topology: v6e:2x2x1
jax: 0.10.0
libtpu: 0.0.40
codegen_flags: <defaults>
</compile_context>

<pallas_src>
import math
from functools import partial

import jax
import jax.numpy as jnp
from jax.experimental import pallas as pl
from jax.experimental.pallas import tpu as pltpu

KSIZE = 5                  # TempCNN conv kernel size
PAD = (KSIZE - 1) // 2     # 'same' padding for an odd kernel
NB_FILTERS = 64
HIDDEN = 256


def _round_up(a, b):
    return (a + b - 1) // b * b


def _pick_row_tile(n, pref=256):
    """Largest row tile <= pref that is a multiple of 8 and divides n (n is a multiple of 8)."""
    t = max(8, (min(pref, n) // 8) * 8)
    while n % t:
        t -= 8
    return t


# --------------------------------------------------------------------------------------
# Kernel 1: fused TempCNN encoder  (3 x [Conv1d(k=5,'same') + folded-BN bias + ReLU])
# Operates on a lane-batched block: B samples side by side on the lane axis (L = B*T).
# --------------------------------------------------------------------------------------
def _make_encoder_kernel(T, L):
    def conv_block(a, w_ref, b_ref):
        # per-sample position along the lane axis (0..T-1 repeated for the B samples)
        t = jax.lax.broadcasted_iota(jnp.int32, a.shape, 1) % T
        taps = []
        for k in range(KSIZE):
            d = k - PAD                                     # tap d:  cols[:, j] = a[:, j + d]
            if d == 0:
                taps.append(a)
            else:
                shifted = pltpu.roll(a, (-d) % L, axis=1)   # XLU lane rotation (static shift)
                cond = (t >= -d) if d < 0 else (t < T - d)  # zero the cross-sample borders
                taps.append(jnp.where(cond, shifted, 0.0))
        cols = jnp.concatenate(taps, axis=0).astype(jnp.bfloat16)     # (K*C, L) im2col stack
        y = jnp.dot(w_ref[...], cols, preferred_element_type=jnp.float32)  # single MXU matmul
        return jnp.maximum(y + b_ref[...], 0.0)             # folded bias + ReLU, f32 epilogue

    def kernel(x_ref, w1_ref, b1_ref, w2_ref, b2_ref, w3_ref, b3_ref, o_ref):
        a = conv_block(x_ref[...], w1_ref, b1_ref)
        a = conv_block(a, w2_ref, b2_ref)
        a = conv_block(a, w3_ref, b3_ref)
        o_ref[...] = a                                       # lane-dense (64, L) store

    return kernel


def encoder_pallas(xt, conv_params, T, B):
    C_pad, NT = xt.shape
    Fn = conv_params[0]['w'].shape[0]
    L = B * T
    in_specs = [pl.BlockSpec((C_pad, L), lambda n: (0, n))]
    args = [xt]
    for cp in conv_params:
        in_specs.append(pl.BlockSpec(cp['w'].shape, lambda n: (0, 0)))   # resident weights
        in_specs.append(pl.BlockSpec(cp['b'].shape, lambda n: (0, 0)))
        args += [cp['w'], cp['b']]
    return pl.pallas_call(
        _make_encoder_kernel(T, L),
        out_shape=jax.ShapeDtypeStruct((Fn, NT), jnp.float32),
        grid=(NT // L,),
        in_specs=in_specs,
        out_specs=pl.BlockSpec((Fn, L), lambda n: (0, n)),
        compiler_params=pltpu.CompilerParams(dimension_semantics=("parallel",)),
    )(*args)


# --------------------------------------------------------------------------------------
# Kernel 2: fused classifier heads (label + domain), tiled over batch rows.
#   w1 = concat of both heads' first layers (feat, 512); w2 = block-diagonal (512, 128)
#   so both heads run as one 512-lane matmul + one dense 128-lane logits store.
# --------------------------------------------------------------------------------------
def _heads_kernel(enc_ref, w1_ref, b1_ref, w2_ref, b2_ref, o_ref):
    enc = enc_ref[...].astype(jnp.bfloat16)
    h = jnp.dot(enc, w1_ref[...], preferred_element_type=jnp.float32)    # (TN, 512)
    h = jnp.maximum(h + b1_ref[...], 0.0)                                # folded bias + ReLU
    o_ref[...] = jnp.dot(h.astype(jnp.bfloat16), w2_ref[...],
                         preferred_element_type=jnp.float32) + b2_ref[...]


def heads_pallas(enc, hp, TN):
    Np, feat = enc.shape
    OP = hp['w2'].shape[1]
    return pl.pallas_call(
        _heads_kernel,
        out_shape=jax.ShapeDtypeStruct((Np, OP), jnp.float32),
        grid=(Np // TN,),
        in_specs=[pl.BlockSpec((TN, feat), lambda i: (i, 0)),
                  pl.BlockSpec(hp['w1'].shape, lambda i: (0, 0)),
                  pl.BlockSpec(hp['b1'].shape, lambda i: (0, 0)),
                  pl.BlockSpec(hp['w2'].shape, lambda i: (0, 0)),
                  pl.BlockSpec(hp['b2'].shape, lambda i: (0, 0))],
        out_specs=pl.BlockSpec((TN, OP), lambda i: (i, 0)),
        compiler_params=pltpu.CompilerParams(dimension_semantics=("parallel",)),
    )(enc, hp['w1'], hp['b1'], hp['w2'], hp['b2'])


# --------------------------------------------------------------------------------------
# Parameters: deterministic, BN scale folded into weights, biases folded into BN shift,
# weights pre-transposed / concatenated / zero-padded and stored in bf16.
# --------------------------------------------------------------------------------------
def init_params(key, c_in, nb_class, T, nb_filters=NB_FILTERS, hidden=HIDDEN):
    def nrm(k, shape, scale=0.1):
        return scale * jax.random.normal(k, shape, jnp.float32)

    def bn_fold(k, c):
        k1, k2, k3, k4 = jax.random.split(k, 4)
        gamma = 1.0 + 0.05 * jax.random.normal(k1, (c,), jnp.float32)
        beta = 0.05 * jax.random.normal(k2, (c,), jnp.float32)
        mean = 0.05 * jax.random.normal(k3, (c,), jnp.float32)
        var = 1.0 + 0.1 * jax.random.uniform(k4, (c,), jnp.float32)
        scale = gamma / jnp.sqrt(var + 1e-5)
        return scale, beta - mean * scale

    conv = []
    C = c_in
    for _ in range(3):
        key, kw, kb, kbn = jax.random.split(key, 4)
        w = nrm(kw, (nb_filters, C, KSIZE))              # PyTorch Conv1d weight (F, C, K)
        cbias = nrm(kb, (nb_filters,))
        s, sh = bn_fold(kbn, nb_filters)
        # y = s*(W*x + cb) + sh  ->  (s*W)*x + (s*cb + sh)
        w_sc = w * s[:, None, None]
        b = (sh + s * cbias).reshape(nb_filters, 1)
        C_pad = _round_up(C, 8)                          # sublane-align the im2col taps
        w_pad = jnp.pad(w_sc, ((0, 0), (0, C_pad - C), (0, 0)))
        # im2col rows are k-major / channel-minor -> flatten (F, K, Cp) row-major
        w_flat = jnp.transpose(w_pad, (0, 2, 1)).reshape(nb_filters, KSIZE * C_pad)
        conv.append({'w': w_flat.astype(jnp.bfloat16), 'b': b})
        C = nb_filters

    feat = nb_filters * T

    def head_parts(k, out_dim):
        k1, k2, k3, k4, k5 = jax.random.split(k, 5)
        w1 = nrm(k1, (hidden, feat))
        b1 = nrm(k2, (hidden,))
        s, sh = bn_fold(k3, hidden)
        w2 = nrm(k4, (out_dim, hidden))
        b2 = nrm(k5, (out_dim,))
        # h = relu(s*(x@W1^T + b1) + sh): fold s into W1 columns and the bias
        return (w1 * s[:, None]).T, sh + s * b1, w2.T, b2

    key, kl, kd = jax.random.split(key, 3)
    wl1, bl1, wl2, bl2 = head_parts(kl, nb_class)
    wd1, bd1, wd2, bd2 = head_parts(kd, 2)

    H2 = 2 * hidden
    out_pad = _round_up(nb_class + 2, 128)               # lane-dense logits slab
    w2_blk = jnp.zeros((H2, out_pad), jnp.float32)
    w2_blk = w2_blk.at[:hidden, :nb_class].set(wl2)
    w2_blk = w2_blk.at[hidden:, nb_class:nb_class + 2].set(wd2)
    b2_blk = jnp.zeros((1, out_pad), jnp.float32)
    b2_blk = b2_blk.at[0, :nb_class].set(bl2)
    b2_blk = b2_blk.at[0, nb_class:nb_class + 2].set(bd2)

    heads = {'w1': jnp.concatenate([wl1, wd1], axis=1).astype(jnp.bfloat16),  # (feat, 512)
             'b1': jnp.concatenate([bl1, bd1]).reshape(1, H2),
             'w2': w2_blk.astype(jnp.bfloat16),                               # (512, out_pad)
             'b2': b2_blk}
    return {'conv': conv, 'heads': heads}


# --------------------------------------------------------------------------------------
# Forward
# --------------------------------------------------------------------------------------
@partial(jax.jit, static_argnames=("nb_class",))
def spadann_forward(x, params, nb_class):
    N, C, T = x.shape
    Fn = params['conv'][0]['w'].shape[0]
    C_pad = params['conv'][0]['w'].shape[1] // KSIZE

    # Pack B samples per grid step so the matmul lane dim is B*T (= 128 when T | 128).
    if T <= 128 and 128 % T == 0:
        B = 128 // T
        N_pad = _round_up(N, math.lcm(B, 8))
    else:
        N_pad = _round_up(N, 8)
        B = N_pad                                   # fall back to one full-array block

    # channel pad + lane-batch layout: (C_pad, N_pad*T), sample n on lanes [n*T, (n+1)*T)
    x_p = jnp.pad(x, ((0, N_pad - N), (0, C_pad - C), (0, 0)))
    xt = jnp.transpose(x_p, (1, 0, 2)).reshape(C_pad, N_pad * T)

    enc_slab = encoder_pallas(xt, params['conv'], T, B)          # (Fn, N_pad*T) lane-dense

    # tiny XLA permutation -> PyTorch Flatten ordering (n, f*T + t)
    enc_full = enc_slab.reshape(Fn, N_pad, T).transpose(1, 0, 2).reshape(N_pad, Fn * T)

    TN = _pick_row_tile(N_pad)
    out = heads_pallas(enc_full, params['heads'], TN)            # (N_pad, out_pad) logits slab

    # GRL is the identity in the forward pass.
    return enc_full[:N], out[:N, :nb_class], out[:N, nb_class:nb_class + 2]


# --------------------------------------------------------------------------------------
# Pure-JAX reference (same folded params, same bf16 cast points)
# --------------------------------------------------------------------------------------
def forward_ref(x, params, nb_class):
    N, C, T = x.shape
    C_pad0 = params['conv'][0]['w'].shape[1] // KSIZE
    a = jnp.pad(x, ((0, 0), (0, C_pad0 - C), (0, 0)))
    for cp in params['conv']:
        xp = jnp.pad(a, ((0, 0), (0, 0), (PAD, PAD)))
        cols = jnp.concatenate([xp[:, :, k:k + T] for k in range(KSIZE)], axis=1)
        y = jnp.einsum('fk,nkt->nft', cp['w'], cols.astype(jnp.bfloat16),
                       preferred_element_type=jnp.float32)
        a = jnp.maximum(y + cp['b'][None], 0.0)
    enc = a.reshape(N, -1)
    hp = params['heads']
    h = jnp.maximum(jnp.dot(enc.astype(jnp.bfloat16), hp['w1'],
                            preferred_element_type=jnp.float32) + hp['b1'], 0.0)
    out = jnp.dot(h.astype(jnp.bfloat16), hp['w2'],
                  preferred_element_type=jnp.float32) + hp['b2']
    return enc, out[:, :nb_class], out[:, nb_class:nb_class + 2]


# --------------------------------------------------------------------------------------
if __name__ == "__main__":
    key = jax.random.PRNGKey(0)
    kx, kp = jax.random.split(key)
    N, C_in, T, nb_class = 2, 4, 16, 3
    x = jax.random.normal(kx, (N, C_in, T), jnp.float32)
    params = init_params(kp, C_in, nb_class, T)

    enc, lab, dom = jax.block_until_ready(spadann_forward(x, params, nb_class=nb_class))
    assert enc.shape == (N, NB_FILTERS * T), enc.shape
    assert lab.shape == (N, nb_class), lab.shape
    assert dom.shape == (N, 2), dom.shape

    enc_r, lab_r, dom_r = forward_ref(x, params, nb_class)
    for name, got, ref in (("enc", enc, enc_r), ("label", lab, lab_r), ("domain", dom, dom_r)):
        # tolerance bounded by the shared bf16 matmul path (f32 accumulation-order +
        # bf16 re-rounding of intermediate activations), much tighter than before
        if not jnp.allclose(got, ref, rtol=1e-3, atol=1e-3):
            err = jnp.max(jnp.abs(got.astype(jnp.float32) - ref.astype(jnp.float32)))
            raise AssertionError(f"{name} mismatch: max abs err = {err}")
    print("KERNEL_OK")
</pallas_src>

<mosaic_0001>
module attributes {stable_mosaic.version = 11 : i64} {
  func.func @kernel(%arg0: i32, %arg1: memref<8x128xf32, #tpu.memory_space<vmem>>, %arg2: memref<64x40xbf16, #tpu.memory_space<vmem>>, %arg3: memref<64x1xf32, #tpu.memory_space<vmem>>, %arg4: memref<64x320xbf16, #tpu.memory_space<vmem>>, %arg5: memref<64x1xf32, #tpu.memory_space<vmem>>, %arg6: memref<64x320xbf16, #tpu.memory_space<vmem>>, %arg7: memref<64x1xf32, #tpu.memory_space<vmem>>, %arg8: memref<64x128xf32, #tpu.memory_space<vmem>>) attributes {dimension_semantics = [#tpu.dimension_semantics<parallel>], iteration_bounds = array<i64: 1>, scalar_prefetch = 0 : i64, scratch_operands = 0 : i64, tpu.core_type = #tpu.core_type<tc>, window_params = [{transform_indices = @transform_0, window_bounds = array<i64: 8, 128>}, {pipeline_mode = #tpu.pipeline_mode<synchronous>, transform_indices = @transform_1, window_bounds = array<i64: 64, 40>}, {pipeline_mode = #tpu.pipeline_mode<synchronous>, transform_indices = @transform_2, window_bounds = array<i64: 64, 1>}, {pipeline_mode = #tpu.pipeline_mode<synchronous>, transform_indices = @transform_3, window_bounds = array<i64: 64, 320>}, {pipeline_mode = #tpu.pipeline_mode<synchronous>, transform_indices = @transform_4, window_bounds = array<i64: 64, 1>}, {pipeline_mode = #tpu.pipeline_mode<synchronous>, transform_indices = @transform_5, window_bounds = array<i64: 64, 320>}, {pipeline_mode = #tpu.pipeline_mode<synchronous>, transform_indices = @transform_6, window_bounds = array<i64: 64, 1>}, {transform_indices = @transform_7, window_bounds = array<i64: 64, 128>}]} {
    %c0 = arith.constant 0 : index
    %c0_0 = arith.constant 0 : index
    %0 = vector.load %arg1[%c0, %c0_0] : memref<8x128xf32, #tpu.memory_space<vmem>>, vector<8x128xf32>
    %1 = tpu.iota {dimensions = array<i32: 1>} : vector<8x128xi32>
    %c16_i32 = arith.constant 16 : i32
    %c0_i32 = arith.constant 0 : i32
    %2 = arith.cmpi eq, %c16_i32, %c0_i32 : i32
    %c1_i32 = arith.constant 1 : i32
    %3 = arith.select %2, %c1_i32, %c16_i32 : i32
    %4 = vector.broadcast %3 : i32 to vector<8x128xi32>
    %5 = arith.remsi %1, %4 : vector<8x128xi32>
    %c0_i32_1 = arith.constant 0 : i32
    %6 = vector.broadcast %c0_i32_1 : i32 to vector<8x128xi32>
    %7 = arith.cmpi ne, %5, %6 : vector<8x128xi32>
    %c0_i32_2 = arith.constant 0 : i32
    %8 = vector.broadcast %c0_i32_2 : i32 to vector<8x128xi32>
    %9 = arith.cmpi slt, %5, %8 : vector<8x128xi32>
    %c0_i32_3 = arith.constant 0 : i32
    %10 = arith.cmpi slt, %3, %c0_i32_3 : i32
    %11 = vector.broadcast %10 : i1 to vector<8x128xi1>
    %12 = vector.broadcast %11 : vector<8x128xi1> to vector<8x128xi1>
    %13 = arith.xori %9, %12 : vector<8x128xi1>
    %14 = arith.andi %13, %7 : vector<8x128xi1>
    %15 = vector.broadcast %3 : i32 to vector<8x128xi32>
    %16 = arith.addi %5, %15 : vector<8x128xi32>
    %17 = arith.select %14, %16, %5 : vector<8x128xi1>, vector<8x128xi32>
    %c2_i32 = arith.constant 2 : i32
    %18 = tpu.dynamic_rotate %0 by %c2_i32 dim 1 : vector<8x128xf32>, i32 -> vector<8x128xf32>
    %c2_i32_4 = arith.constant 2 : i32
    %19 = vector.broadcast %c2_i32_4 : i32 to vector<8x128xi32>
    %20 = arith.cmpi sge, %17, %19 : vector<8x128xi32>
    %cst = arith.constant 0.000000e+00 : f32
    %21 = vector.broadcast %cst : f32 to vector<8x128xf32>
    %22 = arith.select %20, %18, %21 : vector<8x128xi1>, vector<8x128xf32>
    %c1_i32_5 = arith.constant 1 : i32
    %23 = tpu.dynamic_rotate %0 by %c1_i32_5 dim 1 : vector<8x128xf32>, i32 -> vector<8x128xf32>
    %c1_i32_6 = arith.constant 1 : i32
    %24 = vector.broadcast %c1_i32_6 : i32 to vector<8x128xi32>
    %25 = arith.cmpi sge, %17, %24 : vector<8x128xi32>
    %cst_7 = arith.constant 0.000000e+00 : f32
    %26 = vector.broadcast %cst_7 : f32 to vector<8x128xf32>
    %27 = arith.select %25, %23, %26 : vector<8x128xi1>, vector<8x128xf32>
    %c127_i32 = arith.constant 127 : i32
    %28 = tpu.dynamic_rotate %0 by %c127_i32 dim 1 : vector<8x128xf32>, i32 -> vector<8x128xf32>
    %c15_i32 = arith.constant 15 : i32
    %29 = vector.broadcast %c15_i32 : i32 to vector<8x128xi32>
    %30 = arith.cmpi slt, %17, %29 : vector<8x128xi32>
    %cst_8 = arith.constant 0.000000e+00 : f32
    %31 = vector.broadcast %cst_8 : f32 to vector<8x128xf32>
    %32 = arith.select %30, %28, %31 : vector<8x128xi1>, vector<8x128xf32>
    %c126_i32 = arith.constant 126 : i32
    %33 = tpu.dynamic_rotate %0 by %c126_i32 dim 1 : vector<8x128xf32>, i32 -> vector<8x128xf32>
    %c14_i32 = arith.constant 14 : i32
    %34 = vector.broadcast %c14_i32 : i32 to vector<8x128xi32>
    %35 = arith.cmpi slt, %17, %34 : vector<8x128xi32>
    %cst_9 = arith.constant 0.000000e+00 : f32
    %36 = vector.broadcast %cst_9 : f32 to vector<8x128xf32>
    %37 = arith.select %35, %33, %36 : vector<8x128xi1>, vector<8x128xf32>
    %38 = tpu.concatenate %22, %27, %0, %32, %37 in 0 : vector<8x128xf32>, vector<8x128xf32>, vector<8x128xf32>, vector<8x128xf32>, vector<8x128xf32> -> vector<40x128xf32>
    %39 = arith.truncf %38 : vector<40x128xf32> to vector<40x128xbf16>
    %c0_10 = arith.constant 0 : index
    %c0_11 = arith.constant 0 : index
    %40 = vector.load %arg2[%c0_10, %c0_11] : memref<64x40xbf16, #tpu.memory_space<vmem>>, vector<64x40xbf16>
    %cst_12 = arith.constant dense<0.000000e+00> : vector<64x128xf32>
    %41 = tpu.matmul %40, %39, %cst_12 {dimension_numbers = #tpu.dot_dimension_numbers<[1], [0], [0], [1], [0, 0, 1, 1], [], []>} : vector<64x40xbf16>, vector<40x128xbf16>, vector<64x128xf32> -> vector<64x128xf32>
    %c0_13 = arith.constant 0 : index
    %c0_14 = arith.constant 0 : index
    %42 = vector.load %arg3[%c0_13, %c0_14] : memref<64x1xf32, #tpu.memory_space<vmem>>, vector<64x1xf32>
    %43 = vector.broadcast %42 : vector<64x1xf32> to vector<64x128xf32>
    %44 = arith.addf %41, %43 : vector<64x128xf32>
    %cst_15 = arith.constant 0.000000e+00 : f32
    %45 = vector.broadcast %cst_15 : f32 to vector<64x128xf32>
    %46 = arith.maximumf %44, %45 : vector<64x128xf32>
    %47 = tpu.iota {dimensions = array<i32: 1>} : vector<64x128xi32>
    %c16_i32_16 = arith.constant 16 : i32
    %c0_i32_17 = arith.constant 0 : i32
    %48 = arith.cmpi eq, %c16_i32_16, %c0_i32_17 : i32
    %c1_i32_18 = arith.constant 1 : i32
    %49 = arith.select %48, %c1_i32_18, %c16_i32_16 : i32
    %50 = vector.broadcast %49 : i32 to vector<64x128xi32>
    %51 = arith.remsi %47, %50 : vector<64x128xi32>
    %c0_i32_19 = arith.constant 0 : i32
    %52 = vector.broadcast %c0_i32_19 : i32 to vector<64x128xi32>
    %53 = arith.cmpi ne, %51, %52 : vector<64x128xi32>
    %c0_i32_20 = arith.constant 0 : i32
    %54 = vector.broadcast %c0_i32_20 : i32 to vector<64x128xi32>
    %55 = arith.cmpi slt, %51, %54 : vector<64x128xi32>
    %c0_i32_21 = arith.constant 0 : i32
    %56 = arith.cmpi slt, %49, %c0_i32_21 : i32
    %57 = vector.broadcast %56 : i1 to vector<64x128xi1>
    %58 = vector.broadcast %57 : vector<64x128xi1> to vector<64x128xi1>
    %59 = arith.xori %55, %58 : vector<64x128xi1>
    %60 = arith.andi %59, %53 : vector<64x128xi1>
    %61 = vector.broadcast %49 : i32 to vector<64x128xi32>
    %62 = arith.addi %51, %61 : vector<64x128xi32>
    %63 = arith.select %60, %62, %51 : vector<64x128xi1>, vector<64x128xi32>
    %c2_i32_22 = arith.constant 2 : i32
    %64 = tpu.dynamic_rotate %46 by %c2_i32_22 dim 1 : vector<64x128xf32>, i32 -> vector<64x128xf32>
    %c2_i32_23 = arith.constant 2 : i32
    %65 = vector.broadcast %c2_i32_23 : i32 to vector<64x128xi32>
    %66 = arith.cmpi sge, %63, %65 : vector<64x128xi32>
    %cst_24 = arith.constant 0.000000e+00 : f32
    %67 = vector.broadcast %cst_24 : f32 to vector<64x128xf32>
    %68 = arith.select %66, %64, %67 : vector<64x128xi1>, vector<64x128xf32>
    %c1_i32_25 = arith.constant 1 : i32
    %69 = tpu.dynamic_rotate %46 by %c1_i32_25 dim 1 : vector<64x128xf32>, i32 -> vector<64x128xf32>
    %c1_i32_26 = arith.constant 1 : i32
    %70 = vector.broadcast %c1_i32_26 : i32 to vector<64x128xi32>
    %71 = arith.cmpi sge, %63, %70 : vector<64x128xi32>
    %cst_27 = arith.constant 0.000000e+00 : f32
    %72 = vector.broadcast %cst_27 : f32 to vector<64x128xf32>
    %73 = arith.select %71, %69, %72 : vector<64x128xi1>, vector<64x128xf32>
    %c127_i32_28 = arith.constant 127 : i32
    %74 = tpu.dynamic_rotate %46 by %c127_i32_28 dim 1 : vector<64x128xf32>, i32 -> vector<64x128xf32>
    %c15_i32_29 = arith.constant 15 : i32
    %75 = vector.broadcast %c15_i32_29 : i32 to vector<64x128xi32>
    %76 = arith.cmpi slt, %63, %75 : vector<64x128xi32>
    %cst_30 = arith.constant 0.000000e+00 : f32
    %77 = vector.broadcast %cst_30 : f32 to vector<64x128xf32>
    %78 = arith.select %76, %74, %77 : vector<64x128xi1>, vector<64x128xf32>
    %c126_i32_31 = arith.constant 126 : i32
    %79 = tpu.dynamic_rotate %46 by %c126_i32_31 dim 1 : vector<64x128xf32>, i32 -> vector<64x128xf32>
    %c14_i32_32 = arith.constant 14 : i32
    %80 = vector.broadcast %c14_i32_32 : i32 to vector<64x128xi32>
    %81 = arith.cmpi slt, %63, %80 : vector<64x128xi32>
    %cst_33 = arith.constant 0.000000e+00 : f32
    %82 = vector.broadcast %cst_33 : f32 to vector<64x128xf32>
    %83 = arith.select %81, %79, %82 : vector<64x128xi1>, vector<64x128xf32>
    %84 = tpu.concatenate %68, %73, %46, %78, %83 in 0 : vector<64x128xf32>, vector<64x128xf32>, vector<64x128xf32>, vector<64x128xf32>, vector<64x128xf32> -> vector<320x128xf32>
    %85 = arith.truncf %84 : vector<320x128xf32> to vector<320x128xbf16>
    %c0_34 = arith.constant 0 : index
    %c0_35 = arith.constant 0 : index
    %86 = vector.load %arg4[%c0_34, %c0_35] : memref<64x320xbf16, #tpu.memory_space<vmem>>, vector<64x320xbf16>
    %cst_36 = arith.constant dense<0.000000e+00> : vector<64x128xf32>
    %87 = tpu.matmul %86, %85, %cst_36 {dimension_numbers = #tpu.dot_dimension_numbers<[1], [0], [0], [1], [0, 0, 1, 1], [], []>} : vector<64x320xbf16>, vector<320x128xbf16>, vector<64x128xf32> -> vector<64x128xf32>
    %c0_37 = arith.constant 0 : index
    %c0_38 = arith.constant 0 : index
    %88 = vector.load %arg5[%c0_37, %c0_38] : memref<64x1xf32, #tpu.memory_space<vmem>>, vector<64x1xf32>
    %89 = vector.broadcast %88 : vector<64x1xf32> to vector<64x128xf32>
    %90 = arith.addf %87, %89 : vector<64x128xf32>
    %cst_39 = arith.constant 0.000000e+00 : f32
    %91 = vector.broadcast %cst_39 : f32 to vector<64x128xf32>
    %92 = arith.maximumf %90, %91 : vector<64x128xf32>
    %93 = tpu.iota {dimensions = array<i32: 1>} : vector<64x128xi32>
    %c16_i32_40 = arith.constant 16 : i32
    %c0_i32_41 = arith.constant 0 : i32
    %94 = arith.cmpi eq, %c16_i32_40, %c0_i32_41 : i32
    %c1_i32_42 = arith.constant 1 : i32
    %95 = arith.select %94, %c1_i32_42, %c16_i32_40 : i32
    %96 = vector.broadcast %95 : i32 to vector<64x128xi32>
    %97 = arith.remsi %93, %96 : vector<64x128xi32>
    %c0_i32_43 = arith.constant 0 : i32
    %98 = vector.broadcast %c0_i32_43 : i32 to vector<64x128xi32>
    %99 = arith.cmpi ne, %97, %98 : vector<64x128xi32>
    %c0_i32_44 = arith.constant 0 : i32
    %100 = vector.broadcast %c0_i32_44 : i32 to vector<64x128xi32>
    %101 = arith.cmpi slt, %97, %100 : vector<64x128xi32>
    %c0_i32_45 = arith.constant 0 : i32
    %102 = arith.cmpi slt, %95, %c0_i32_45 : i32
    %103 = vector.broadcast %102 : i1 to vector<64x128xi1>
    %104 = vector.broadcast %103 : vector<64x128xi1> to vector<64x128xi1>
    %105 = arith.xori %101, %104 : vector<64x128xi1>
    %106 = arith.andi %105, %99 : vector<64x128xi1>
    %107 = vector.broadcast %95 : i32 to vector<64x128xi32>
    %108 = arith.addi %97, %107 : vector<64x128xi32>
    %109 = arith.select %106, %108, %97 : vector<64x128xi1>, vector<64x128xi32>
    %c2_i32_46 = arith.constant 2 : i32
    %110 = tpu.dynamic_rotate %92 by %c2_i32_46 dim 1 : vector<64x128xf32>, i32 -> vector<64x128xf32>
    %c2_i32_47 = arith.constant 2 : i32
    %111 = vector.broadcast %c2_i32_47 : i32 to vector<64x128xi32>
    %112 = arith.cmpi sge, %109, %111 : vector<64x128xi32>
    %cst_48 = arith.constant 0.000000e+00 : f32
    %113 = vector.broadcast %cst_48 : f32 to vector<64x128xf32>
    %114 = arith.select %112, %110, %113 : vector<64x128xi1>, vector<64x128xf32>
    %c1_i32_49 = arith.constant 1 : i32
    %115 = tpu.dynamic_rotate %92 by %c1_i32_49 dim 1 : vector<64x128xf32>, i32 -> vector<64x128xf32>
    %c1_i32_50 = arith.constant 1 : i32
    %116 = vector.broadcast %c1_i32_50 : i32 to vector<64x128xi32>
    %117 = arith.cmpi sge, %109, %116 : vector<64x128xi32>
    %cst_51 = arith.constant 0.000000e+00 : f32
    %118 = vector.broadcast %cst_51 : f32 to vector<64x128xf32>
    %119 = arith.select %117, %115, %118 : vector<64x128xi1>, vector<64x128xf32>
    %c127_i32_52 = arith.constant 127 : i32
    %120 = tpu.dynamic_rotate %92 by %c127_i32_52 dim 1 : vector<64x128xf32>, i32 -> vector<64x128xf32>
    %c15_i32_53 = arith.constant 15 : i32
    %121 = vector.broadcast %c15_i32_53 : i32 to vector<64x128xi32>
    %122 = arith.cmpi slt, %109, %121 : vector<64x128xi32>
    %cst_54 = arith.constant 0.000000e+00 : f32
    %123 = vector.broadcast %cst_54 : f32 to vector<64x128xf32>
    %124 = arith.select %122, %120, %123 : vector<64x128xi1>, vector<64x128xf32>
    %c126_i32_55 = arith.constant 126 : i32
    %125 = tpu.dynamic_rotate %92 by %c126_i32_55 dim 1 : vector<64x128xf32>, i32 -> vector<64x128xf32>
    %c14_i32_56 = arith.constant 14 : i32
    %126 = vector.broadcast %c14_i32_56 : i32 to vector<64x128xi32>
    %127 = arith.cmpi slt, %109, %126 : vector<64x128xi32>
    %cst_57 = arith.constant 0.000000e+00 : f32
    %128 = vector.broadcast %cst_57 : f32 to vector<64x128xf32>
    %129 = arith.select %127, %125, %128 : vector<64x128xi1>, vector<64x128xf32>
    %130 = tpu.concatenate %114, %119, %92, %124, %129 in 0 : vector<64x128xf32>, vector<64x128xf32>, vector<64x128xf32>, vector<64x128xf32>, vector<64x128xf32> -> vector<320x128xf32>
    %131 = arith.truncf %130 : vector<320x128xf32> to vector<320x128xbf16>
    %c0_58 = arith.constant 0 : index
    %c0_59 = arith.constant 0 : index
    %132 = vector.load %arg6[%c0_58, %c0_59] : memref<64x320xbf16, #tpu.memory_space<vmem>>, vector<64x320xbf16>
    %cst_60 = arith.constant dense<0.000000e+00> : vector<64x128xf32>
    %133 = tpu.matmul %132, %131, %cst_60 {dimension_numbers = #tpu.dot_dimension_numbers<[1], [0], [0], [1], [0, 0, 1, 1], [], []>} : vector<64x320xbf16>, vector<320x128xbf16>, vector<64x128xf32> -> vector<64x128xf32>
    %c0_61 = arith.constant 0 : index
    %c0_62 = arith.constant 0 : index
    %134 = vector.load %arg7[%c0_61, %c0_62] : memref<64x1xf32, #tpu.memory_space<vmem>>, vector<64x1xf32>
    %135 = vector.broadcast %134 : vector<64x1xf32> to vector<64x128xf32>
    %136 = arith.addf %133, %135 : vector<64x128xf32>
    %cst_63 = arith.constant 0.000000e+00 : f32
    %137 = vector.broadcast %cst_63 : f32 to vector<64x128xf32>
    %138 = arith.maximumf %136, %137 : vector<64x128xf32>
    %c0_64 = arith.constant 0 : index
    %c0_65 = arith.constant 0 : index
    %139 = vector.load %arg8[%c0_64, %c0_65] : memref<64x128xf32, #tpu.memory_space<vmem>>, vector<64x128xf32>
    tpu.vector_store %arg8[%c0_64, %c0_65], %138 {strides = array<i32>} : memref<64x128xf32, #tpu.memory_space<vmem>>, vector<64x128xf32>,
    return
  }
  func.func @transform_0(%arg0: i32) -> (i32, i32) {
    %c0_i32 = arith.constant 0 : i32
    %c0_i32_0 = arith.constant 0 : i32
    return %c0_i32, %arg0 : i32, i32
  }
  func.func @transform_1(%arg0: i32) -> (i32, i32) {
    %c0_i32 = arith.constant 0 : i32
    %c0_i32_0 = arith.constant 0 : i32
    %c0_i32_1 = arith.constant 0 : i32
    return %c0_i32, %c0_i32_0 : i32, i32
  }
  func.func @transform_2(%arg0: i32) -> (i32, i32) {
    %c0_i32 = arith.constant 0 : i32
    %c0_i32_0 = arith.constant 0 : i32
    %c0_i32_1 = arith.constant 0 : i32
    return %c0_i32, %c0_i32_0 : i32, i32
  }
  func.func @transform_3(%arg0: i32) -> (i32, i32) {
    %c0_i32 = arith.constant 0 : i32
    %c0_i32_0 = arith.constant 0 : i32
    %c0_i32_1 = arith.constant 0 : i32
    return %c0_i32, %c0_i32_0 : i32, i32
  }
  func.func @transform_4(%arg0: i32) -> (i32, i32) {
    %c0_i32 = arith.constant 0 : i32
    %c0_i32_0 = arith.constant 0 : i32
    %c0_i32_1 = arith.constant 0 : i32
    return %c0_i32, %c0_i32_0 : i32, i32
  }
  func.func @transform_5(%arg0: i32) -> (i32, i32) {
    %c0_i32 = arith.constant 0 : i32
    %c0_i32_0 = arith.constant 0 : i32
    %c0_i32_1 = arith.constant 0 : i32
    return %c0_i32, %c0_i32_0 : i32, i32
  }
  func.func @transform_6(%arg0: i32) -> (i32, i32) {
    %c0_i32 = arith.constant 0 : i32
    %c0_i32_0 = arith.constant 0 : i32
    %c0_i32_1 = arith.constant 0 : i32
    return %c0_i32, %c0_i32_0 : i32, i32
  }
  func.func @transform_7(%arg0: i32) -> (i32, i32) {
    %c0_i32 = arith.constant 0 : i32
    %c0_i32_0 = arith.constant 0 : i32
    return %c0_i32, %arg0 : i32, i32
  }
}

module attributes {stable_mosaic.version = 11 : i64} {
  func.func @_heads_kernel(%arg0: i32, %arg1: memref<8x1024xf32, #tpu.memory_space<vmem>>, %arg2: memref<1024x512xbf16, #tpu.memory_space<vmem>>, %arg3: memref<1x512xf32, #tpu.memory_space<vmem>>, %arg4: memref<512x128xbf16, #tpu.memory_space<vmem>>, %arg5: memref<1x128xf32, #tpu.memory_space<vmem>>, %arg6: memref<8x128xf32, #tpu.memory_space<vmem>>) attributes {dimension_semantics = [#tpu.dimension_semantics<parallel>], iteration_bounds = array<i64: 1>, scalar_prefetch = 0 : i64, scratch_operands = 0 : i64, tpu.core_type = #tpu.core_type<tc>, window_params = [{transform_indices = @transform_0, window_bounds = array<i64: 8, 1024>}, {pipeline_mode = #tpu.pipeline_mode<synchronous>, transform_indices = @transform_1, window_bounds = array<i64: 1024, 512>}, {pipeline_mode = #tpu.pipeline_mode<synchronous>, transform_indices = @transform_2, window_bounds = array<i64: 1, 512>}, {pipeline_mode = #tpu.pipeline_mode<synchronous>, transform_indices = @transform_3, window_bounds = array<i64: 512, 128>}, {pipeline_mode = #tpu.pipeline_mode<synchronous>, transform_indices = @transform_4, window_bounds = array<i64: 1, 128>}, {transform_indices = @transform_5, window_bounds = array<i64: 8, 128>}]} {
    %c0 = arith.constant 0 : index
    %c0_0 = arith.constant 0 : index
    %0 = vector.load %arg1[%c0, %c0_0] : memref<8x1024xf32, #tpu.memory_space<vmem>>, vector<8x1024xf32>
    %1 = arith.truncf %0 : vector<8x1024xf32> to vector<8x1024xbf16>
    %c0_1 = arith.constant 0 : index
    %c0_2 = arith.constant 0 : index
    %2 = vector.load %arg2[%c0_1, %c0_2] : memref<1024x512xbf16, #tpu.memory_space<vmem>>, vector<1024x512xbf16>
    %cst = arith.constant dense<0.000000e+00> : vector<8x512xf32>
    %3 = tpu.matmul %1, %2, %cst {dimension_numbers = #tpu.dot_dimension_numbers<[1], [0], [0], [1], [0, 0, 1, 1], [], []>} : vector<8x1024xbf16>, vector<1024x512xbf16>, vector<8x512xf32> -> vector<8x512xf32>
    %c0_3 = arith.constant 0 : index
    %c0_4 = arith.constant 0 : index
    %4 = vector.load %arg3[%c0_3, %c0_4] : memref<1x512xf32, #tpu.memory_space<vmem>>, vector<1x512xf32>
    %5 = vector.broadcast %4 : vector<1x512xf32> to vector<8x512xf32>
    %6 = arith.addf %3, %5 : vector<8x512xf32>
    %cst_5 = arith.constant 0.000000e+00 : f32
    %7 = vector.broadcast %cst_5 : f32 to vector<8x512xf32>
    %8 = arith.maximumf %6, %7 : vector<8x512xf32>
    %9 = arith.truncf %8 : vector<8x512xf32> to vector<8x512xbf16>
    %c0_6 = arith.constant 0 : index
    %c0_7 = arith.constant 0 : index
    %10 = vector.load %arg4[%c0_6, %c0_7] : memref<512x128xbf16, #tpu.memory_space<vmem>>, vector<512x128xbf16>
    %cst_8 = arith.constant dense<0.000000e+00> : vector<8x128xf32>
    %11 = tpu.matmul %9, %10, %cst_8 {dimension_numbers = #tpu.dot_dimension_numbers<[1], [0], [0], [1], [0, 0, 1, 1], [], []>} : vector<8x512xbf16>, vector<512x128xbf16>, vector<8x128xf32> -> vector<8x128xf32>
    %c0_9 = arith.constant 0 : index
    %c0_10 = arith.constant 0 : index
    %12 = vector.load %arg5[%c0_9, %c0_10] : memref<1x128xf32, #tpu.memory_space<vmem>>, vector<1x128xf32>
    %13 = vector.broadcast %12 : vector<1x128xf32> to vector<8x128xf32>
    %14 = arith.addf %11, %13 : vector<8x128xf32>
    %c0_11 = arith.constant 0 : index
    %c0_12 = arith.constant 0 : index
    %15 = vector.load %arg6[%c0_11, %c0_12] : memref<8x128xf32, #tpu.memory_space<vmem>>, vector<8x128xf32>
    tpu.vector_store %arg6[%c0_11, %c0_12], %14 {strides = array<i32>} : memref<8x128xf32, #tpu.memory_space<vmem>>, vector<8x128xf32>,
    return
  }
  func.func @transform_0(%arg0: i32) -> (i32, i32) {
    %c0_i32 = arith.constant 0 : i32
    %c0_i32_0 = arith.constant 0 : i32
    return %arg0, %c0_i32 : i32, i32
  }
  func.func @transform_1(%arg0: i32) -> (i32, i32) {
    %c0_i32 = arith.constant 0 : i32
    %c0_i32_0 = arith.constant 0 : i32
    %c0_i32_1 = arith.constant 0 : i32
    return %c0_i32, %c0_i32_0 : i32, i32
  }
  func.func @transform_2(%arg0: i32) -> (i32, i32) {
    %c0_i32 = arith.constant 0 : i32
    %c0_i32_0 = arith.constant 0 : i32
    %c0_i32_1 = arith.constant 0 : i32
    return %c0_i32, %c0_i32_0 : i32, i32
  }
  func.func @transform_3(%arg0: i32) -> (i32, i32) {
    %c0_i32 = arith.constant 0 : i32
    %c0_i32_0 = arith.constant 0 : i32
    %c0_i32_1 = arith.constant 0 : i32
    return %c0_i32, %c0_i32_0 : i32, i32
  }
  func.func @transform_4(%arg0: i32) -> (i32, i32) {
    %c0_i32 = arith.constant 0 : i32
    %c0_i32_0 = arith.constant 0 : i32
    %c0_i32_1 = arith.constant 0 : i32
    return %c0_i32, %c0_i32_0 : i32, i32
  }
  func.func @transform_5(%arg0: i32) -> (i32, i32) {
    %c0_i32 = arith.constant 0 : i32
    %c0_i32_0 = arith.constant 0 : i32
    return %arg0, %c0_i32 : i32, i32
  }
}

</mosaic_0001>

<llo_original>
// kernel: spadann_forward.2
$region0: #{spadann_forward.2}
  #allocation0 [shape = 'u32[]', space=smem, size = 0x4, offset = 0x4, fixed_abs, tag = 'smem constant byte address 0x4 - core index']
  #allocation1 [shape = 'u32[144,128]{1,0:T(1,128)}', space=vmem, size = 0x12000, scoped, tag = 'internal scratch']
  %s0 = inlined_call_operand.vmem [shape: f32[8,128], index: 0, kind: input, shape index: {}]
  %s1 = inlined_call_operand.vmem [shape: bf16[64,40], index: 1, kind: input, shape index: {}]
  %s2 = inlined_call_operand.vmem [shape: f32[64,1], index: 2, kind: input, shape index: {}]
  %s3 = inlined_call_operand.hbm [shape: bf16[64,320], index: 3, kind: input, shape index: {}]
  %s4 = inlined_call_operand.vmem [shape: f32[64,1], index: 4, kind: input, shape index: {}]
  %s5 = inlined_call_operand.hbm [shape: bf16[64,320], index: 5, kind: input, shape index: {}]
  %s6 = inlined_call_operand.vmem [shape: f32[64,1], index: 6, kind: input, shape index: {}]
  %s7 = inlined_call_operand.vmem [shape: f32[64,128], index: 7, kind: output, shape index: {}]
  %s8 = sld [smem:[#allocation0]]
  $region46: #{spadann_forward.2} parent=0
    _
  %s10 = ssub.s32 1, %s8
  %s11 = scalar_select 0, %s10, %s8
  $region1: #{spadann_forward.2} parent=0
    #allocation2 [shape = 'u8[49152]{0}', space=vmem, size = 0xc000, scoped, tag = 'input window, operand 3, single buffered']
    #allocation3 [shape = 's32[1]{0}', space=sflag, size = 0x4, scoped, tag = 'scoped memory for spadann_forward.2']
    #allocation4 [shape = 'u8[49152]{0}', space=vmem, size = 0xc000, scoped, tag = 'input window, operand 5, single buffered']
    #allocation5 [shape = 's32[1]{0}', space=sflag, size = 0x4, scoped, tag = 'scoped memory for spadann_forward.2']
    %12 = vsyncpa [#allocation3], 0
    %13 = vsyncpa [#allocation5], 0
    // Predicated region
    $region2: #{spadann_forward.2} parent=1 // pred_check
      _
    $region3: #{spadann_forward.2} parent=1 // pred_check_branch
      %15 = sbr.rel (0) target = $region5
    $region4: #{spadann_forward.2} parent=1 // pred_region
      _
    $region5: #{spadann_forward.2} parent=1 // pred_fallthru
      _
    // Predicated region
    $region6: #{spadann_forward.2} parent=1 // pred_check
      _
    $region7: #{spadann_forward.2} parent=1 // pred_check_branch
      %17 = sbr.rel (0) target = $region9
    $region8: #{spadann_forward.2} parent=1 // pred_region
      _
    $region9: #{spadann_forward.2} parent=1 // pred_fallthru
      _
    // Predicated region
    $region10: #{spadann_forward.2} parent=1 // pred_check
      _
    $region11: #{spadann_forward.2} parent=1 // pred_check_branch
      %19 = sbr.rel (0) target = $region13
    $region12: #{spadann_forward.2} parent=1 // pred_region
      _
    $region13: #{spadann_forward.2} parent=1 // pred_fallthru
      _
    // Predicated region
    $region14: #{spadann_forward.2} parent=1 // pred_check
      _
    $region15: #{spadann_forward.2} parent=1 // pred_check_branch
      %21 = sbr.rel (0) target = $region17
    $region16: #{spadann_forward.2} parent=1 // pred_region
      %s23 = ssub.s32 1536, 1536
      %24 = vsyncadd [#allocation3], %s23
      %s25 = sshll.u32 [#allocation2], 4
      %s26 = int_to_ptr.vmem [resolvable:$true] %s25
      %31 = dma.hbm_to_vmem [thread:$0]  %s3, 1536, %s26, [#allocation3], 192, 192, 12
    $region17: #{spadann_forward.2} parent=1 // pred_fallthru
      _
    // Predicated region
    $region18: #{spadann_forward.2} parent=1 // pred_check
      _
    $region19: #{spadann_forward.2} parent=1 // pred_check_branch
      %33 = sbr.rel (0) target = $region21
    $region20: #{spadann_forward.2} parent=1 // pred_region
      _
    $region21: #{spadann_forward.2} parent=1 // pred_fallthru
      _
    // Predicated region
    $region22: #{spadann_forward.2} parent=1 // pred_check
      _
    $region23: #{spadann_forward.2} parent=1 // pred_check_branch
      %35 = sbr.rel (0) target = $region25
    $region24: #{spadann_forward.2} parent=1 // pred_region
      %s37 = ssub.s32 1536, 1536
      %38 = vsyncadd [#allocation5], %s37
      %s39 = sshll.u32 [#allocation4], 4
      %s40 = int_to_ptr.vmem [resolvable:$true] %s39
      %45 = dma.hbm_to_vmem [thread:$0]  %s5, 1536, %s40, [#allocation5], 192, 192, 12
    $region25: #{spadann_forward.2} parent=1 // pred_fallthru
      _
    // Predicated region
    $region26: #{spadann_forward.2} parent=1 // pred_check
      _
    $region27: #{spadann_forward.2} parent=1 // pred_check_branch
      %47 = sbr.rel (0) target = $region29
    $region28: #{spadann_forward.2} parent=1 // pred_region
      _
    $region29: #{spadann_forward.2} parent=1 // pred_fallthru
      _
    // Predicated region
    $region30: #{spadann_forward.2} parent=1 // pred_check
      _
    $region31: #{spadann_forward.2} parent=1 // pred_check_branch
      %49 = sbr.rel (0) target = $region33
    $region32: #{spadann_forward.2} parent=1 // pred_region
      %50 = dma.done [#allocation3], 1536
    $region33: #{spadann_forward.2} parent=1 // pred_fallthru
      _
    // Predicated region
    $region34: #{spadann_forward.2} parent=1 // pred_check
      _
    $region35: #{spadann_forward.2} parent=1 // pred_check_branch
      %52 = sbr.rel (0) target = $region37
    $region36: #{spadann_forward.2} parent=1 // pred_region
      %53 = dma.done [#allocation5], 1536
    $region37: #{spadann_forward.2} parent=1 // pred_fallthru
      _
    %v55 = vld [vmem:[%s0] sm:$0xff]
    %v56 = vlaneseq
    %v57 = vand.u32 %v56, 127
    %vm58 = vcmp.lt.s32.totalorder %v57, 0
    %v59 = vsub.s32 0, %v57
    %v60 = vsel %vm58, %v59, %v57
    %v61 = vshrl.u32 %v60, 4
    %v62 = vand.u32 %v60, 15
    %v63 = vsub.s32 0, %v62
    %v64 = vsel %vm58, %v63, %v62
    %vm65 = vcmp.ne.s32.totalorder %v64, 0
    %vm66 = vcmp.lt.s32.totalorder %v64, 0
    %vm67 = vmand %vm66, %vm65
    %v68 = vadd.s32 %v64, 16
    %v69 = vsel %vm67, %v68, %v64
    %70 = vrot.lane.b32.xlu0 %v55, 2
    %v71 = vpop.permute.xlu0 %70
    %vm72 = vcmp.ge.s32.totalorder %v69, 2
    %v73 = vsel %vm72, %v71, 0.0
    %74 = vrot.lane.b32.xlu0 %v55, 1
    %v75 = vpop.permute.xlu0 %74
    %vm76 = vcmp.ge.s32.totalorder %v69, 1
    %v77 = vsel %vm76, %v75, 0.0
    %78 = vrot.lane.b32.xlu0 %v55, 127
    %v79 = vpop.permute.xlu0 %78
    %vm80 = vcmp.lt.s32.totalorder %v69, 15
    %v81 = vsel %vm80, %v79, 0.0
    %82 = vrot.lane.b32.xlu0 %v55, 126
    %v83 = vpop.permute.xlu0 %82
    %vm84 = vcmp.lt.s32.totalorder %v69, 14
    %v85 = vsel %vm84, %v83, 0.0
    %v86 = vpack.c.bf16 %v77, %v73
    %v87 = vpack.c.bf16 %v81, %v55
    %v88 = vpack.c.bf16 %v85, %v85
    %v89 = vld [vmem:[%s1] sm:$0xf]
    %v90 = vld [vmem:[%s1 + $0x4] sm:$0xf]
    %v91 = vld [vmem:[%s1 + $0x8] sm:$0xf]
    %v92 = vld [vmem:[%s1 + $0xc] sm:$0xf]
    %v93 = vld [vmem:[%s1 + $0x10] sm:$0xf]
    %v94 = vld [vmem:[%s1 + $0x14] sm:$0xf]
    %v95 = vld [vmem:[%s1 + $0x18] sm:$0xf]
    %v96 = vld [vmem:[%s1 + $0x1c] sm:$0xf]
    %v97 = vld [vmem:[%s2] sm:$0xff]
    %v98 = vld [vmem:[%s2 + $0x8] sm:$0xff]
    %v99 = vld [vmem:[%s2 + $0x10] sm:$0xff]
    %v100 = vld [vmem:[%s2 + $0x18] sm:$0xff]
    %v101 = vld [vmem:[%s2 + $0x20] sm:$0xff]
    %v102 = vld [vmem:[%s2 + $0x28] sm:$0xff]
    %v103 = vld [vmem:[%s2 + $0x30] sm:$0xff]
    %v104 = vld [vmem:[%s2 + $0x38] sm:$0xff]
    %106 = vset.pattern.permute.xlu0 0
    %107 = vperm.xlu0 %106, %v97
    %v108 = vpop.permute.xlu0 %107
    %111 = vset.pattern.permute.xlu0 0
    %112 = vperm.xlu0 %111, %v98
    %v113 = vpop.permute.xlu0 %112
    %116 = vset.pattern.permute.xlu0 0
    %117 = vperm.xlu0 %116, %v99
    %v118 = vpop.permute.xlu0 %117
    %121 = vset.pattern.permute.xlu0 0
    %122 = vperm.xlu0 %121, %v100
    %v123 = vpop.permute.xlu0 %122
    %126 = vset.pattern.permute.xlu0 0
    %127 = vperm.xlu0 %126, %v101
    %v128 = vpop.permute.xlu0 %127
    %131 = vset.pattern.permute.xlu0 0
    %132 = vperm.xlu0 %131, %v102
    %v133 = vpop.permute.xlu0 %132
    %136 = vset.pattern.permute.xlu0 0
    %137 = vperm.xlu0 %136, %v103
    %v138 = vpop.permute.xlu0 %137
    %141 = vset.pattern.permute.xlu0 0
    %142 = vperm.xlu0 %141, %v104
    %v143 = vpop.permute.xlu0 %142
    %v153 = vunpack.c.l.b16 %v89
    %v154 = vunpack.c.l.b16 %v90
    %v155 = vunpack.c.l.b16 %v91
    %v156 = vunpack.c.l.b16 %v92
    %v157 = vunpack.c.l.b16 %v93
    %v158 = vunpack.c.l.b16 %v94
    %v159 = vunpack.c.l.b16 %v95
    %v160 = vunpack.c.l.b16 %v96
    %v161 = vpack.c.b16 %v154, %v153
    %v162 = vpack.c.b16 %v156, %v155
    %v163 = vpack.c.b16 %v158, %v157
    %v164 = vpack.c.b16 %v160, %v159
    %vm165 = vcmask 326656
    %v167 = vsel %vm165, %v161, 0
    %v170 = vsel %vm165, %v162, 0
    %v173 = vsel %vm165, %v163, 0
    %v176 = vsel %vm165, %v164, 0
    %vm178 = vcmask 1043456
    %v180 = vsel %vm178, %v88, 0
    %182 = vmatprep.subr.bf16.mxu0 0
    %183 = vmatpush1.bf16.msra.mxu0 0
    %184 = vmatprep.subr.bf16.mxu0 0
    %185 = vmatpush1.bf16.msra.mxu0 0
    %186 = vmatprep.subr.bf16.mxu0 0
    %187 = vmatpush1.bf16.msra.mxu0 0
    %188 = vmatprep.subr.bf16.mxu0 0
    %189 = vmatpush1.bf16.msra.mxu0 0
    %190 = vmatprep.subr.bf16.mxu0 0
    %191 = vmatpush1.bf16.msra.mxu0 0
    %192 = vmatprep.subr.bf16.mxu0 0
    %193 = vmatpush1.bf16.msra.mxu0 %v180
    %194 = vmatprep.subr.bf16.mxu0 0
    %195 = vmatpush1.bf16.msra.mxu0 %v87
    %196 = vmatprep.subr.bf16.mxu0 0
    %197 = vmatpush1.bf16.msra.mxu0 %v86
    %198 = vmatprep.subr.bf16.mxu0 0
    %199 = vmatpush2.bf16.msra.mxu0 0
    %200 = vmatprep.subr.bf16.mxu0 0
    %201 = vmatpush2.bf16.msra.mxu0 0
    %202 = vmatprep.subr.bf16.mxu0 0
    %203 = vmatpush2.bf16.msra.mxu0 0
    %204 = vmatprep.subr.bf16.mxu0 0
    %205 = vmatpush2.bf16.msra.mxu0 0
    %206 = vmatprep.subr.bf16.mxu0 0
    %207 = vmatpush2.bf16.msra.mxu0 0
    %208 = vmatprep.subr.bf16.mxu0 0
    %209 = vmatpush2.bf16.msra.mxu0 0
    %210 = vmatprep.subr.bf16.mxu0 0
    %211 = vmatpush2.bf16.msra.mxu0 0
    %212 = vmatprep.subr.bf16.mxu0 0
    %213 = vmatpush2.bf16.msra.mxu0 0
    %214 = vmatprep.mubr.bf16.mxu0 0
    %215 = vmatmul.mubr.bf16.gmra.mxu0 %v167
    %v216 = vpop.f32.mrf.mxu0
    %v217 = vadd.f32 %v108, %v216
    %v218 = vpop.f32.mrf.mxu0
    %v219 = vpop.f32.mrf.mxu0
    %v220 = vadd.f32 %v113, %v219
    %v221 = vpop.f32.mrf.mxu0
    %222 = vmatprep.mubr.bf16.mxu0 0
    %223 = vmatmul.mubr.bf16.gmra.mxu0 %v170
    %v224 = vpop.f32.mrf.mxu0
    %v225 = vadd.f32 %v118, %v224
    %v226 = vpop.f32.mrf.mxu0
    %v227 = vpop.f32.mrf.mxu0
    %v228 = vadd.f32 %v123, %v227
    %v229 = vpop.f32.mrf.mxu0
    %230 = vmatprep.mubr.bf16.mxu0 0
    %231 = vmatmul.mubr.bf16.gmra.mxu0 %v173
    %v232 = vpop.f32.mrf.mxu0
    %v233 = vadd.f32 %v128, %v232
    %v234 = vpop.f32.mrf.mxu0
    %v235 = vpop.f32.mrf.mxu0
    %v236 = vadd.f32 %v133, %v235
    %v237 = vpop.f32.mrf.mxu0
    %238 = vmatprep.mubr.bf16.mxu0 0
    %239 = vmatmul.mubr.bf16.gmra.mxu0 %v176
    %v240 = vpop.f32.mrf.mxu0
    %v241 = vadd.f32 %v138, %v240
    %v242 = vpop.f32.mrf.mxu0
    %v243 = vpop.f32.mrf.mxu0
    %v244 = vadd.f32 %v143, %v243
    %v245 = vpop.f32.mrf.mxu0
    %246 = vdwg.mxu0
    %v247 = vmax.f32 %v217, 0.0
    %v248 = vmax.f32 %v220, 0.0
    %v249 = vmax.f32 %v225, 0.0
    %v250 = vmax.f32 %v228, 0.0
    %v251 = vmax.f32 %v233, 0.0
    %v252 = vmax.f32 %v236, 0.0
    %v253 = vmax.f32 %v241, 0.0
    %v254 = vmax.f32 %v244, 0.0
    %255 = vrot.lane.b32.xlu0 %v247, 2
    %v256 = vpop.permute.xlu0 %255
    %257 = vrot.lane.b32.xlu0 %v248, 2
    %v258 = vpop.permute.xlu0 %257
    %259 = vrot.lane.b32.xlu0 %v249, 2
    %v260 = vpop.permute.xlu0 %259
    %261 = vrot.lane.b32.xlu0 %v250, 2
    %v262 = vpop.permute.xlu0 %261
    %263 = vrot.lane.b32.xlu0 %v251, 2
    %v264 = vpop.permute.xlu0 %263
    %265 = vrot.lane.b32.xlu0 %v252, 2
    %v266 = vpop.permute.xlu0 %265
    %267 = vrot.lane.b32.xlu0 %v253, 2
    %v268 = vpop.permute.xlu0 %267
    %269 = vrot.lane.b32.xlu0 %v254, 2
    %v270 = vpop.permute.xlu0 %269
    %v271 = vsel %vm72, %v256, 0.0
    %v272 = vsel %vm72, %v258, 0.0
    %v273 = vsel %vm72, %v260, 0.0
    %v274 = vsel %vm72, %v262, 0.0
    %v275 = vsel %vm72, %v264, 0.0
    %v276 = vsel %vm72, %v266, 0.0
    %v277 = vsel %vm72, %v268, 0.0
    %v278 = vsel %vm72, %v270, 0.0
    %279 = vrot.lane.b32.xlu0 %v247, 1
    %v280 = vpop.permute.xlu0 %279
    %281 = vrot.lane.b32.xlu0 %v248, 1
    %v282 = vpop.permute.xlu0 %281
    %283 = vrot.lane.b32.xlu0 %v249, 1
    %v284 = vpop.permute.xlu0 %283
    %285 = vrot.lane.b32.xlu0 %v250, 1
    %v286 = vpop.permute.xlu0 %285
    %287 = vrot.lane.b32.xlu0 %v251, 1
    %v288 = vpop.permute.xlu0 %287
    %289 = vrot.lane.b32.xlu0 %v252, 1
    %v290 = vpop.permute.xlu0 %289
    %291 = vrot.lane.b32.xlu0 %v253, 1
    %v292 = vpop.permute.xlu0 %291
    %293 = vrot.lane.b32.xlu0 %v254, 1
    %v294 = vpop.permute.xlu0 %293
    %v295 = vsel %vm76, %v280, 0.0
    %v296 = vsel %vm76, %v282, 0.0
    %v297 = vsel %vm76, %v284, 0.0
    %v298 = vsel %vm76, %v286, 0.0
    %v299 = vsel %vm76, %v288, 0.0
    %v300 = vsel %vm76, %v290, 0.0
    %v301 = vsel %vm76, %v292, 0.0
    %v302 = vsel %vm76, %v294, 0.0
    %303 = vrot.lane.b32.xlu0 %v247, 127
    %v304 = vpop.permute.xlu0 %303
    %305 = vrot.lane.b32.xlu0 %v248, 127
    %v306 = vpop.permute.xlu0 %305
    %307 = vrot.lane.b32.xlu0 %v249, 127
    %v308 = vpop.permute.xlu0 %307
    %309 = vrot.lane.b32.xlu0 %v250, 127
    %v310 = vpop.permute.xlu0 %309
    %311 = vrot.lane.b32.xlu0 %v251, 127
    %v312 = vpop.permute.xlu0 %311
    %313 = vrot.lane.b32.xlu0 %v252, 127
    %v314 = vpop.permute.xlu0 %313
    %315 = vrot.lane.b32.xlu0 %v253, 127
    %v316 = vpop.permute.xlu0 %315
    %317 = vrot.lane.b32.xlu0 %v254, 127
    %v318 = vpop.permute.xlu0 %317
    %v319 = vsel %vm80, %v304, 0.0
    %v320 = vsel %vm80, %v306, 0.0
    %v321 = vsel %vm80, %v308, 0.0
    %v322 = vsel %vm80, %v310, 0.0
    %v323 = vsel %vm80, %v312, 0.0
    %v324 = vsel %vm80, %v314, 0.0
    %v325 = vsel %vm80, %v316, 0.0
    %v326 = vsel %vm80, %v318, 0.0
    %327 = vrot.lane.b32.xlu0 %v247, 126
    %v328 = vpop.permute.xlu0 %327
    %329 = vrot.lane.b32.xlu0 %v248, 126
    %v330 = vpop.permute.xlu0 %329
    %331 = vrot.lane.b32.xlu0 %v249, 126
    %v332 = vpop.permute.xlu0 %331
    %333 = vrot.lane.b32.xlu0 %v250, 126
    %v334 = vpop.permute.xlu0 %333
    %335 = vrot.lane.b32.xlu0 %v251, 126
    %v336 = vpop.permute.xlu0 %335
    %337 = vrot.lane.b32.xlu0 %v252, 126
    %v338 = vpop.permute.xlu0 %337
    %339 = vrot.lane.b32.xlu0 %v253, 126
    %v340 = vpop.permute.xlu0 %339
    %341 = vrot.lane.b32.xlu0 %v254, 126
    %v342 = vpop.permute.xlu0 %341
    %v343 = vsel %vm84, %v328, 0.0
    %v344 = vsel %vm84, %v330, 0.0
    %v345 = vsel %vm84, %v332, 0.0
    %v346 = vsel %vm84, %v334, 0.0
    %v347 = vsel %vm84, %v336, 0.0
    %v348 = vsel %vm84, %v338, 0.0
    %v349 = vsel %vm84, %v340, 0.0
    %v350 = vsel %vm84, %v342, 0.0
    %v351 = vpack.c.bf16 %v272, %v271
    %v352 = vpack.c.bf16 %v274, %v273
    %v353 = vpack.c.bf16 %v276, %v275
    %v354 = vpack.c.bf16 %v278, %v277
    %v355 = vpack.c.bf16 %v296, %v295
    %v356 = vpack.c.bf16 %v298, %v297
    %v357 = vpack.c.bf16 %v300, %v299
    %v358 = vpack.c.bf16 %v302, %v301
    %v359 = vpack.c.bf16 %v248, %v247
    %v360 = vpack.c.bf16 %v250, %v249
    %v361 = vpack.c.bf16 %v252, %v251
    %v362 = vpack.c.bf16 %v254, %v253
    %v363 = vpack.c.bf16 %v320, %v319
    %v364 = vpack.c.bf16 %v322, %v321
    %v365 = vpack.c.bf16 %v324, %v323
    %v366 = vpack.c.bf16 %v326, %v325
    %v367 = vpack.c.bf16 %v344, %v343
    %v368 = vpack.c.bf16 %v346, %v345
    %v369 = vpack.c.bf16 %v348, %v347
    %v370 = vpack.c.bf16 %v350, %v349
    %v371 = vld [vmem:[#allocation2] sm:$0xff]
    %v372 = vld [vmem:[#allocation2 + $0x8] sm:$0xf]
    %v373 = vld [vmem:[#allocation2 + $0xc] sm:$0xff]
    %v374 = vld [vmem:[#allocation2 + $0x14] sm:$0xf]
    %v375 = vld [vmem:[#allocation2 + $0x18] sm:$0xff]
    %v376 = vld [vmem:[#allocation2 + $0x20] sm:$0xf]
    %v377 = vld [vmem:[#allocation2 + $0x24] sm:$0xff]
    %v378 = vld [vmem:[#allocation2 + $0x2c] sm:$0xf]
    %v379 = vld [vmem:[#allocation2 + $0x30] sm:$0xff]
    %v380 = vld [vmem:[#allocation2 + $0x38] sm:$0xf]
    %v381 = vld [vmem:[#allocation2 + $0x3c] sm:$0xff]
    %v382 = vld [vmem:[#allocation2 + $0x44] sm:$0xf]
    %v383 = vld [vmem:[#allocation2 + $0x48] sm:$0xff]
    %v384 = vld [vmem:[#allocation2 + $0x50] sm:$0xf]
    %v385 = vld [vmem:[#allocation2 + $0x54] sm:$0xff]
    %v386 = vld [vmem:[#allocation2 + $0x5c] sm:$0xf]
    %v387 = vld [vmem:[%s4] sm:$0xff]
    %v388 = vld [vmem:[%s4 + $0x8] sm:$0xff]
    %v389 = vld [vmem:[%s4 + $0x10] sm:$0xff]
    %v390 = vld [vmem:[%s4 + $0x18] sm:$0xff]
    %v391 = vld [vmem:[%s4 + $0x20] sm:$0xff]
    %v392 = vld [vmem:[%s4 + $0x28] sm:$0xff]
    %v393 = vld [vmem:[%s4 + $0x30] sm:$0xff]
    %v394 = vld [vmem:[%s4 + $0x38] sm:$0xff]
    %396 = vset.pattern.permute.xlu0 0
    %397 = vperm.xlu0 %396, %v387
    %v398 = vpop.permute.xlu0 %397
    %401 = vset.pattern.permute.xlu0 0
    %402 = vperm.xlu0 %401, %v388
    %v403 = vpop.permute.xlu0 %402
    %406 = vset.pattern.permute.xlu0 0
    %407 = vperm.xlu0 %406, %v389
    %v408 = vpop.permute.xlu0 %407
    %411 = vset.pattern.permute.xlu0 0
    %412 = vperm.xlu0 %411, %v390
    %v413 = vpop.permute.xlu0 %412
    %416 = vset.pattern.permute.xlu0 0
    %417 = vperm.xlu0 %416, %v391
    %v418 = vpop.permute.xlu0 %417
    %421 = vset.pattern.permute.xlu0 0
    %422 = vperm.xlu0 %421, %v392
    %v423 = vpop.permute.xlu0 %422
    %426 = vset.pattern.permute.xlu0 0
    %427 = vperm.xlu0 %426, %v393
    %v428 = vpop.permute.xlu0 %427
    %431 = vset.pattern.permute.xlu0 0
    %432 = vperm.xlu0 %431, %v394
    %v433 = vpop.permute.xlu0 %432
    %v451 = vunpack.c.l.b16 %v371
    %v452 = vunpack.c.h.b16 %v371
    %v453 = vunpack.c.l.b16 %v372
    %v454 = vunpack.c.l.b16 %v373
    %v455 = vunpack.c.h.b16 %v373
    %v456 = vunpack.c.l.b16 %v374
    %v457 = vunpack.c.l.b16 %v375
    %v458 = vunpack.c.h.b16 %v375
    %v459 = vunpack.c.l.b16 %v376
    %v460 = vunpack.c.l.b16 %v377
    %v461 = vunpack.c.h.b16 %v377
    %v462 = vunpack.c.l.b16 %v378
    %v463 = vunpack.c.l.b16 %v379
    %v464 = vunpack.c.h.b16 %v379
    %v465 = vunpack.c.l.b16 %v380
    %v466 = vunpack.c.l.b16 %v381
    %v467 = vunpack.c.h.b16 %v381
    %v468 = vunpack.c.l.b16 %v382
    %v469 = vunpack.c.l.b16 %v383
    %v470 = vunpack.c.h.b16 %v383
    %v471 = vunpack.c.l.b16 %v384
    %v472 = vunpack.c.l.b16 %v385
    %v473 = vunpack.c.h.b16 %v385
    %v474 = vunpack.c.l.b16 %v386
    %v475 = vpack.c.b16 %v454, %v451
    %v476 = vpack.c.b16 %v455, %v452
    %v477 = vpack.c.b16 %v456, %v453
    %v478 = vpack.c.b16 %v460, %v457
    %v479 = vpack.c.b16 %v461, %v458
    %v480 = vpack.c.b16 %v462, %v459
    %v481 = vpack.c.b16 %v466, %v463
    %v482 = vpack.c.b16 %v467, %v464
    %v483 = vpack.c.b16 %v468, %v465
    %v484 = vpack.c.b16 %v472, %v469
    %v485 = vpack.c.b16 %v473, %v470
    %v486 = vpack.c.b16 %v474, %v471
    %vm495 = vcmask 523264
    %v497 = vsel %vm495, %v477, 0
    %v500 = vsel %vm495, %v480, 0
    %v503 = vsel %vm495, %v483, 0
    %v506 = vsel %vm495, %v486, 0
    %508 = vmatprep.subr.bf16.mxu0 0
    %509 = vmatpush1.bf16.msra.mxu0 %v358
    %510 = vmatprep.subr.bf16.mxu0 0
    %511 = vmatpush1.bf16.msra.mxu0 %v357
    %512 = vmatprep.subr.bf16.mxu0 0
    %513 = vmatpush1.bf16.msra.mxu0 %v356
    %514 = vmatprep.subr.bf16.mxu0 0
    %515 = vmatpush1.bf16.msra.mxu0 %v355
    %516 = vmatprep.subr.bf16.mxu0 0
    %517 = vmatpush1.bf16.msra.mxu0 %v354
    %518 = vmatprep.subr.bf16.mxu0 0
    %519 = vmatpush1.bf16.msra.mxu0 %v353
    %520 = vmatprep.subr.bf16.mxu0 0
    %521 = vmatpush1.bf16.msra.mxu0 %v352
    %522 = vmatprep.subr.bf16.mxu0 0
    %523 = vmatpush1.bf16.msra.mxu0 %v351
    %524 = vmatprep.subr.bf16.mxu0 0
    %525 = vmatpush2.bf16.msra.mxu0 %v366
    %526 = vmatprep.subr.bf16.mxu0 0
    %527 = vmatpush2.bf16.msra.mxu0 %v365
    %528 = vmatprep.subr.bf16.mxu0 0
    %529 = vmatpush2.bf16.msra.mxu0 %v364
    %530 = vmatprep.subr.bf16.mxu0 0
    %531 = vmatpush2.bf16.msra.mxu0 %v363
    %532 = vmatprep.subr.bf16.mxu0 0
    %533 = vmatpush2.bf16.msra.mxu0 %v362
    %534 = vmatprep.subr.bf16.mxu0 0
    %535 = vmatpush2.bf16.msra.mxu0 %v361
    %536 = vmatprep.subr.bf16.mxu0 0
    %537 = vmatpush2.bf16.msra.mxu0 %v360
    %538 = vmatprep.subr.bf16.mxu0 0
    %539 = vmatpush2.bf16.msra.mxu0 %v359
    %540 = vmatprep.mubr.bf16.mxu0 %v476
    %541 = vmatmul.mubr.bf16.gmra.mxu0 %v475
    %v542 = vpop.f32.mrf.mxu0
    %v543 = vadd.f32 %v398, %v542
    %v544 = vpop.f32.mrf.mxu0
    %v545 = vpop.f32.mrf.mxu0
    %v546 = vadd.f32 %v403, %v545
    %v547 = vpop.f32.mrf.mxu0
    %548 = vmatprep.mubr.bf16.mxu0 %v479
    %549 = vmatmul.mubr.bf16.gmra.mxu0 %v478
    %v550 = vpop.f32.mrf.mxu0
    %v551 = vadd.f32 %v408, %v550
    %v552 = vpop.f32.mrf.mxu0
    %v553 = vpop.f32.mrf.mxu0
    %v554 = vadd.f32 %v413, %v553
    %v555 = vpop.f32.mrf.mxu0
    %556 = vmatprep.mubr.bf16.mxu0 %v482
    %557 = vmatmul.mubr.bf16.gmra.mxu0 %v481
    %v558 = vpop.f32.mrf.mxu0
    %v559 = vadd.f32 %v418, %v558
    %v560 = vpop.f32.mrf.mxu0
    %v561 = vpop.f32.mrf.mxu0
    %v562 = vadd.f32 %v423, %v561
    %v563 = vpop.f32.mrf.mxu0
    %564 = vmatprep.mubr.bf16.mxu0 %v485
    %565 = vmatmul.mubr.bf16.gmra.mxu0 %v484
    %v566 = vpop.f32.mrf.mxu0
    %v567 = vadd.f32 %v428, %v566
    %v568 = vpop.f32.mrf.mxu0
    %v569 = vpop.f32.mrf.mxu0
    %v570 = vadd.f32 %v433, %v569
    %v571 = vpop.f32.mrf.mxu0
    %572 = vdwg.mxu0
    %573 = vmatprep.subr.bf16.mxu0 0
    %574 = vmatpush1.bf16.msra.mxu0 0
    %575 = vmatprep.subr.bf16.mxu0 0
    %576 = vmatpush1.bf16.msra.mxu0 0
    %577 = vmatprep.subr.bf16.mxu0 0
    %578 = vmatpush1.bf16.msra.mxu0 0
    %579 = vmatprep.subr.bf16.mxu0 0
    %580 = vmatpush1.bf16.msra.mxu0 0
    %581 = vmatprep.subr.bf16.mxu0 0
    %582 = vmatpush1.bf16.msra.mxu0 %v370
    %583 = vmatprep.subr.bf16.mxu0 0
    %584 = vmatpush1.bf16.msra.mxu0 %v369
    %585 = vmatprep.subr.bf16.mxu0 0
    %586 = vmatpush1.bf16.msra.mxu0 %v368
    %587 = vmatprep.subr.bf16.mxu0 0
    %588 = vmatpush1.bf16.msra.mxu0 %v367
    %589 = vmatprep.subr.bf16.mxu0 0
    %590 = vmatpush2.bf16.msra.mxu0 0
    %591 = vmatprep.subr.bf16.mxu0 0
    %592 = vmatpush2.bf16.msra.mxu0 0
    %593 = vmatprep.subr.bf16.mxu0 0
    %594 = vmatpush2.bf16.msra.mxu0 0
    %595 = vmatprep.subr.bf16.mxu0 0
    %596 = vmatpush2.bf16.msra.mxu0 0
    %597 = vmatprep.subr.bf16.mxu0 0
    %598 = vmatpush2.bf16.msra.mxu0 0
    %599 = vmatprep.subr.bf16.mxu0 0
    %600 = vmatpush2.bf16.msra.mxu0 0
    %601 = vmatprep.subr.bf16.mxu0 0
    %602 = vmatpush2.bf16.msra.mxu0 0
    %603 = vmatprep.subr.bf16.mxu0 0
    %604 = vmatpush2.bf16.msra.mxu0 0
    %605 = vmatprep.mubr.bf16.mxu0 0
    %606 = vmatmul.mubr.bf16.gmra.mxu0 %v497
    %v607 = vpop.f32.mrf.mxu0
    %v608 = vadd.f32 %v543, %v607
    %v609 = vpop.f32.mrf.mxu0
    %v610 = vpop.f32.mrf.mxu0
    %v611 = vadd.f32 %v546, %v610
    %v612 = vpop.f32.mrf.mxu0
    %613 = vmatprep.mubr.bf16.mxu0 0
    %614 = vmatmul.mubr.bf16.gmra.mxu0 %v500
    %v615 = vpop.f32.mrf.mxu0
    %v616 = vadd.f32 %v551, %v615
    %v617 = vpop.f32.mrf.mxu0
    %v618 = vpop.f32.mrf.mxu0
    %v619 = vadd.f32 %v554, %v618
    %v620 = vpop.f32.mrf.mxu0
    %621 = vmatprep.mubr.bf16.mxu0 0
    %622 = vmatmul.mubr.bf16.gmra.mxu0 %v503
    %v623 = vpop.f32.mrf.mxu0
    %v624 = vadd.f32 %v559, %v623
    %v625 = vpop.f32.mrf.mxu0
    %v626 = vpop.f32.mrf.mxu0
    %v627 = vadd.f32 %v562, %v626
    %v628 = vpop.f32.mrf.mxu0
    %629 = vmatprep.mubr.bf16.mxu0 0
    %630 = vmatmul.mubr.bf16.gmra.mxu0 %v506
    %v631 = vpop.f32.mrf.mxu0
    %v632 = vadd.f32 %v567, %v631
    %v633 = vpop.f32.mrf.mxu0
    %v634 = vpop.f32.mrf.mxu0
    %v635 = vadd.f32 %v570, %v634
    %v636 = vpop.f32.mrf.mxu0
    %637 = vdwg.mxu0
    %v638 = vmax.f32 %v608, 0.0
    %v639 = vmax.f32 %v611, 0.0
    %v640 = vmax.f32 %v616, 0.0
    %v641 = vmax.f32 %v619, 0.0
    %v642 = vmax.f32 %v624, 0.0
    %v643 = vmax.f32 %v627, 0.0
    %v644 = vmax.f32 %v632, 0.0
    %v645 = vmax.f32 %v635, 0.0
    %646 = vrot.lane.b32.xlu0 %v638, 2
    %v647 = vpop.permute.xlu0 %646
    %648 = vrot.lane.b32.xlu0 %v639, 2
    %v649 = vpop.permute.xlu0 %648
    %650 = vrot.lane.b32.xlu0 %v640, 2
    %v651 = vpop.permute.xlu0 %650
    %652 = vrot.lane.b32.xlu0 %v641, 2
    %v653 = vpop.permute.xlu0 %652
    %654 = vrot.lane.b32.xlu0 %v642, 2
    %v655 = vpop.permute.xlu0 %654
    %656 = vrot.lane.b32.xlu0 %v643, 2
    %v657 = vpop.permute.xlu0 %656
    %658 = vrot.lane.b32.xlu0 %v644, 2
    %v659 = vpop.permute.xlu0 %658
    %660 = vrot.lane.b32.xlu0 %v645, 2
    %v661 = vpop.permute.xlu0 %660
    %v662 = vsel %vm72, %v647, 0.0
    %v663 = vsel %vm72, %v649, 0.0
    %v664 = vsel %vm72, %v651, 0.0
    %v665 = vsel %vm72, %v653, 0.0
    %v666 = vsel %vm72, %v655, 0.0
    %v667 = vsel %vm72, %v657, 0.0
    %v668 = vsel %vm72, %v659, 0.0
    %v669 = vsel %vm72, %v661, 0.0
    %670 = vrot.lane.b32.xlu0 %v638, 1
    %v671 = vpop.permute.xlu0 %670
    %672 = vrot.lane.b32.xlu0 %v639, 1
    %v673 = vpop.permute.xlu0 %672
    %674 = vrot.lane.b32.xlu0 %v640, 1
    %v675 = vpop.permute.xlu0 %674
    %676 = vrot.lane.b32.xlu0 %v641, 1
    %v677 = vpop.permute.xlu0 %676
    %678 = vrot.lane.b32.xlu0 %v642, 1
    %v679 = vpop.permute.xlu0 %678
    %680 = vrot.lane.b32.xlu0 %v643, 1
    %v681 = vpop.permute.xlu0 %680
    %682 = vrot.lane.b32.xlu0 %v644, 1
    %v683 = vpop.permute.xlu0 %682
    %684 = vrot.lane.b32.xlu0 %v645, 1
    %v685 = vpop.permute.xlu0 %684
    %v686 = vsel %vm76, %v671, 0.0
    %v687 = vsel %vm76, %v673, 0.0
    %v688 = vsel %vm76, %v675, 0.0
    %v689 = vsel %vm76, %v677, 0.0
    %v690 = vsel %vm76, %v679, 0.0
    %v691 = vsel %vm76, %v681, 0.0
    %v692 = vsel %vm76, %v683, 0.0
    %v693 = vsel %vm76, %v685, 0.0
    %694 = vrot.lane.b32.xlu0 %v638, 127
    %v695 = vpop.permute.xlu0 %694
    %696 = vrot.lane.b32.xlu0 %v639, 127
    %v697 = vpop.permute.xlu0 %696
    %698 = vrot.lane.b32.xlu0 %v640, 127
    %v699 = vpop.permute.xlu0 %698
    %700 = vrot.lane.b32.xlu0 %v641, 127
    %v701 = vpop.permute.xlu0 %700
    %702 = vrot.lane.b32.xlu0 %v642, 127
    %v703 = vpop.permute.xlu0 %702
    %704 = vrot.lane.b32.xlu0 %v643, 127
    %v705 = vpop.permute.xlu0 %704
    %706 = vrot.lane.b32.xlu0 %v644, 127
    %v707 = vpop.permute.xlu0 %706
    %708 = vrot.lane.b32.xlu0 %v645, 127
    %v709 = vpop.permute.xlu0 %708
    %v710 = vsel %vm80, %v695, 0.0
    %v711 = vsel %vm80, %v697, 0.0
    %v712 = vsel %vm80, %v699, 0.0
    %v713 = vsel %vm80, %v701, 0.0
    %v714 = vsel %vm80, %v703, 0.0
    %v715 = vsel %vm80, %v705, 0.0
    %v716 = vsel %vm80, %v707, 0.0
    %v717 = vsel %vm80, %v709, 0.0
    %718 = vrot.lane.b32.xlu0 %v638, 126
    %v719 = vpop.permute.xlu0 %718
    %720 = vrot.lane.b32.xlu0 %v639, 126
    %v721 = vpop.permute.xlu0 %720
    %722 = vrot.lane.b32.xlu0 %v640, 126
    %v723 = vpop.permute.xlu0 %722
    %724 = vrot.lane.b32.xlu0 %v641, 126
    %v725 = vpop.permute.xlu0 %724
    %726 = vrot.lane.b32.xlu0 %v642, 126
    %v727 = vpop.permute.xlu0 %726
    %728 = vrot.lane.b32.xlu0 %v643, 126
    %v729 = vpop.permute.xlu0 %728
    %730 = vrot.lane.b32.xlu0 %v644, 126
    %v731 = vpop.permute.xlu0 %730
    %732 = vrot.lane.b32.xlu0 %v645, 126
    %v733 = vpop.permute.xlu0 %732
    %v734 = vsel %vm84, %v719, 0.0
    %v735 = vsel %vm84, %v721, 0.0
    %v736 = vsel %vm84, %v723, 0.0
    %v737 = vsel %vm84, %v725, 0.0
    %v738 = vsel %vm84, %v727, 0.0
    %v739 = vsel %vm84, %v729, 0.0
    %v740 = vsel %vm84, %v731, 0.0
    %v741 = vsel %vm84, %v733, 0.0
    %v742 = vpack.c.bf16 %v663, %v662
    %v743 = vpack.c.bf16 %v665, %v664
    %v744 = vpack.c.bf16 %v667, %v666
    %v745 = vpack.c.bf16 %v669, %v668
    %v746 = vpack.c.bf16 %v687, %v686
    %v747 = vpack.c.bf16 %v689, %v688
    %v748 = vpack.c.bf16 %v691, %v690
    %v749 = vpack.c.bf16 %v693, %v692
    %v750 = vpack.c.bf16 %v639, %v638
    %v751 = vpack.c.bf16 %v641, %v640
    %v752 = vpack.c.bf16 %v643, %v642
    %v753 = vpack.c.bf16 %v645, %v644
    %v754 = vpack.c.bf16 %v711, %v710
    %v755 = vpack.c.bf16 %v713, %v712
    %v756 = vpack.c.bf16 %v715, %v714
    %v757 = vpack.c.bf16 %v717, %v716
    %v758 = vpack.c.bf16 %v735, %v734
    %v759 = vpack.c.bf16 %v737, %v736
    %v760 = vpack.c.bf16 %v739, %v738
    %v761 = vpack.c.bf16 %v741, %v740
    %v762 = vld [vmem:[#allocation4] sm:$0xff]
    %v763 = vld [vmem:[#allocation4 + $0x8] sm:$0xf]
    %v764 = vld [vmem:[#allocation4 + $0xc] sm:$0xff]
    %v765 = vld [vmem:[#allocation4 + $0x14] sm:$0xf]
    %v766 = vld [vmem:[#allocation4 + $0x18] sm:$0xff]
    %v767 = vld [vmem:[#allocation4 + $0x20] sm:$0xf]
    %v768 = vld [vmem:[#allocation4 + $0x24] sm:$0xff]
    %v769 = vld [vmem:[#allocation4 + $0x2c] sm:$0xf]
    %v770 = vld [vmem:[#allocation4 + $0x30] sm:$0xff]
    %v771 = vld [vmem:[#allocation4 + $0x38] sm:$0xf]
    %v772 = vld [vmem:[#allocation4 + $0x3c] sm:$0xff]
    %v773 = vld [vmem:[#allocation4 + $0x44] sm:$0xf]
    %v774 = vld [vmem:[#allocation4 + $0x48] sm:$0xff]
    %v775 = vld [vmem:[#allocation4 + $0x50] sm:$0xf]
    %v776 = vld [vmem:[#allocation4 + $0x54] sm:$0xff]
    %v777 = vld [vmem:[#allocation4 + $0x5c] sm:$0xf]
    %v778 = vld [vmem:[%s6] sm:$0xff]
    %v779 = vld [vmem:[%s6 + $0x8] sm:$0xff]
    %v780 = vld [vmem:[%s6 + $0x10] sm:$0xff]
    %v781 = vld [vmem:[%s6 + $0x18] sm:$0xff]
    %v782 = vld [vmem:[%s6 + $0x20] sm:$0xff]
    %v783 = vld [vmem:[%s6 + $0x28] sm:$0xff]
    %v784 = vld [vmem:[%s6 + $0x30] sm:$0xff]
    %v785 = vld [vmem:[%s6 + $0x38] sm:$0xff]
    %787 = vset.pattern.permute.xlu0 0
    %788 = vperm.xlu0 %787, %v778
    %v789 = vpop.permute.xlu0 %788
    %792 = vset.pattern.permute.xlu0 0
    %793 = vperm.xlu0 %792, %v779
    %v794 = vpop.permute.xlu0 %793
    %797 = vset.pattern.permute.xlu0 0
    %798 = vperm.xlu0 %797, %v780
    %v799 = vpop.permute.xlu0 %798
    %802 = vset.pattern.permute.xlu0 0
    %803 = vperm.xlu0 %802, %v781
    %v804 = vpop.permute.xlu0 %803
    %807 = vset.pattern.permute.xlu0 0
    %808 = vperm.xlu0 %807, %v782
    %v809 = vpop.permute.xlu0 %808
    %812 = vset.pattern.permute.xlu0 0
    %813 = vperm.xlu0 %812, %v783
    %v814 = vpop.permute.xlu0 %813
    %817 = vset.pattern.permute.xlu0 0
    %818 = vperm.xlu0 %817, %v784
    %v819 = vpop.permute.xlu0 %818
    %822 = vset.pattern.permute.xlu0 0
    %823 = vperm.xlu0 %822, %v785
    %v824 = vpop.permute.xlu0 %823
    %v842 = vunpack.c.l.b16 %v762
    %v843 = vunpack.c.h.b16 %v762
    %v844 = vunpack.c.l.b16 %v763
    %v845 = vunpack.c.l.b16 %v764
    %v846 = vunpack.c.h.b16 %v764
    %v847 = vunpack.c.l.b16 %v765
    %v848 = vunpack.c.l.b16 %v766
    %v849 = vunpack.c.h.b16 %v766
    %v850 = vunpack.c.l.b16 %v767
    %v851 = vunpack.c.l.b16 %v768
    %v852 = vunpack.c.h.b16 %v768
    %v853 = vunpack.c.l.b16 %v769
    %v854 = vunpack.c.l.b16 %v770
    %v855 = vunpack.c.h.b16 %v770
    %v856 = vunpack.c.l.b16 %v771
    %v857 = vunpack.c.l.b16 %v772
    %v858 = vunpack.c.h.b16 %v772
    %v859 = vunpack.c.l.b16 %v773
    %v860 = vunpack.c.l.b16 %v774
    %v861 = vunpack.c.h.b16 %v774
    %v862 = vunpack.c.l.b16 %v775
    %v863 = vunpack.c.l.b16 %v776
    %v864 = vunpack.c.h.b16 %v776
    %v865 = vunpack.c.l.b16 %v777
    %v866 = vpack.c.b16 %v845, %v842
    %v867 = vpack.c.b16 %v846, %v843
    %v868 = vpack.c.b16 %v847, %v844
    %v869 = vpack.c.b16 %v851, %v848
    %v870 = vpack.c.b16 %v852, %v849
    %v871 = vpack.c.b16 %v853, %v850
    %v872 = vpack.c.b16 %v857, %v854
    %v873 = vpack.c.b16 %v858, %v855
    %v874 = vpack.c.b16 %v859, %v856
    %v875 = vpack.c.b16 %v863, %v860
    %v876 = vpack.c.b16 %v864, %v861
    %v877 = vpack.c.b16 %v865, %v862
    %v887 = vsel %vm495, %v868, 0
    %v890 = vsel %vm495, %v871, 0
    %v893 = vsel %vm495, %v874, 0
    %v896 = vsel %vm495, %v877, 0
    %898 = vmatprep.subr.bf16.mxu0 0
    %899 = vmatpush1.bf16.msra.mxu0 %v749
    %900 = vmatprep.subr.bf16.mxu0 0
    %901 = vmatpush1.bf16.msra.mxu0 %v748
    %902 = vmatprep.subr.bf16.mxu0 0
    %903 = vmatpush1.bf16.msra.mxu0 %v747
    %904 = vmatprep.subr.bf16.mxu0 0
    %905 = vmatpush1.bf16.msra.mxu0 %v746
    %906 = vmatprep.subr.bf16.mxu0 0
    %907 = vmatpush1.bf16.msra.mxu0 %v745
    %908 = vmatprep.subr.bf16.mxu0 0
    %909 = vmatpush1.bf16.msra.mxu0 %v744
    %910 = vmatprep.subr.bf16.mxu0 0
    %911 = vmatpush1.bf16.msra.mxu0 %v743
    %912 = vmatprep.subr.bf16.mxu0 0
    %913 = vmatpush1.bf16.msra.mxu0 %v742
    %914 = vmatprep.subr.bf16.mxu0 0
    %915 = vmatpush2.bf16.msra.mxu0 %v757
    %916 = vmatprep.subr.bf16.mxu0 0
    %917 = vmatpush2.bf16.msra.mxu0 %v756
    %918 = vmatprep.subr.bf16.mxu0 0
    %919 = vmatpush2.bf16.msra.mxu0 %v755
    %920 = vmatprep.subr.bf16.mxu0 0
    %921 = vmatpush2.bf16.msra.mxu0 %v754
    %922 = vmatprep.subr.bf16.mxu0 0
    %923 = vmatpush2.bf16.msra.mxu0 %v753
    %924 = vmatprep.subr.bf16.mxu0 0
    %925 = vmatpush2.bf16.msra.mxu0 %v752
    %926 = vmatprep.subr.bf16.mxu0 0
    %927 = vmatpush2.bf16.msra.mxu0 %v751
    %928 = vmatprep.subr.bf16.mxu0 0
    %929 = vmatpush2.bf16.msra.mxu0 %v750
    %930 = vmatprep.mubr.bf16.mxu0 %v867
    %931 = vmatmul.mubr.bf16.gmra.mxu0 %v866
    %v932 = vpop.f32.mrf.mxu0
    %v933 = vadd.f32 %v789, %v932
    %v934 = vpop.f32.mrf.mxu0
    %v935 = vpop.f32.mrf.mxu0
    %v936 = vadd.f32 %v794, %v935
    %v937 = vpop.f32.mrf.mxu0
    %938 = vmatprep.mubr.bf16.mxu0 %v870
    %939 = vmatmul.mubr.bf16.gmra.mxu0 %v869
    %v940 = vpop.f32.mrf.mxu0
    %v941 = vadd.f32 %v799, %v940
    %v942 = vpop.f32.mrf.mxu0
    %v943 = vpop.f32.mrf.mxu0
    %v944 = vadd.f32 %v804, %v943
    %v945 = vpop.f32.mrf.mxu0
    %946 = vmatprep.mubr.bf16.mxu0 %v873
    %947 = vmatmul.mubr.bf16.gmra.mxu0 %v872
    %v948 = vpop.f32.mrf.mxu0
    %v949 = vadd.f32 %v809, %v948
    %v950 = vpop.f32.mrf.mxu0
    %v951 = vpop.f32.mrf.mxu0
    %v952 = vadd.f32 %v814, %v951
    %v953 = vpop.f32.mrf.mxu0
    %954 = vmatprep.mubr.bf16.mxu0 %v876
    %955 = vmatmul.mubr.bf16.gmra.mxu0 %v875
    %v956 = vpop.f32.mrf.mxu0
    %v957 = vadd.f32 %v819, %v956
    %v958 = vpop.f32.mrf.mxu0
    %v959 = vpop.f32.mrf.mxu0
    %v960 = vadd.f32 %v824, %v959
    %v961 = vpop.f32.mrf.mxu0
    %962 = vdwg.mxu0
    %963 = vmatprep.subr.bf16.mxu0 0
    %964 = vmatpush1.bf16.msra.mxu0 0
    %965 = vmatprep.subr.bf16.mxu0 0
    %966 = vmatpush1.bf16.msra.mxu0 0
    %967 = vmatprep.subr.bf16.mxu0 0
    %968 = vmatpush1.bf16.msra.mxu0 0
    %969 = vmatprep.subr.bf16.mxu0 0
    %970 = vmatpush1.bf16.msra.mxu0 0
    %971 = vmatprep.subr.bf16.mxu0 0
    %972 = vmatpush1.bf16.msra.mxu0 %v761
    %973 = vmatprep.subr.bf16.mxu0 0
    %974 = vmatpush1.bf16.msra.mxu0 %v760
    %975 = vmatprep.subr.bf16.mxu0 0
    %976 = vmatpush1.bf16.msra.mxu0 %v759
    %977 = vmatprep.subr.bf16.mxu0 0
    %978 = vmatpush1.bf16.msra.mxu0 %v758
    %979 = vmatprep.subr.bf16.mxu0 0
    %980 = vmatpush2.bf16.msra.mxu0 0
    %981 = vmatprep.subr.bf16.mxu0 0
    %982 = vmatpush2.bf16.msra.mxu0 0
    %983 = vmatprep.subr.bf16.mxu0 0
    %984 = vmatpush2.bf16.msra.mxu0 0
    %985 = vmatprep.subr.bf16.mxu0 0
    %986 = vmatpush2.bf16.msra.mxu0 0
    %987 = vmatprep.subr.bf16.mxu0 0
    %988 = vmatpush2.bf16.msra.mxu0 0
    %989 = vmatprep.subr.bf16.mxu0 0
    %990 = vmatpush2.bf16.msra.mxu0 0
    %991 = vmatprep.subr.bf16.mxu0 0
    %992 = vmatpush2.bf16.msra.mxu0 0
    %993 = vmatprep.subr.bf16.mxu0 0
    %994 = vmatpush2.bf16.msra.mxu0 0
    %995 = vmatprep.mubr.bf16.mxu0 0
    %996 = vmatmul.mubr.bf16.gmra.mxu0 %v887
    %v997 = vpop.f32.mrf.mxu0
    %v998 = vadd.f32 %v933, %v997
    %v999 = vpop.f32.mrf.mxu0
    %v1000 = vpop.f32.mrf.mxu0
    %v1001 = vadd.f32 %v936, %v1000
    %v1002 = vpop.f32.mrf.mxu0
    %1003 = vmatprep.mubr.bf16.mxu0 0
    %1004 = vmatmul.mubr.bf16.gmra.mxu0 %v890
    %v1005 = vpop.f32.mrf.mxu0
    %v1006 = vadd.f32 %v941, %v1005
    %v1007 = vpop.f32.mrf.mxu0
    %v1008 = vpop.f32.mrf.mxu0
    %v1009 = vadd.f32 %v944, %v1008
    %v1010 = vpop.f32.mrf.mxu0
    %1011 = vmatprep.mubr.bf16.mxu0 0
    %1012 = vmatmul.mubr.bf16.gmra.mxu0 %v893
    %v1013 = vpop.f32.mrf.mxu0
    %v1014 = vadd.f32 %v949, %v1013
    %v1015 = vpop.f32.mrf.mxu0
    %v1016 = vpop.f32.mrf.mxu0
    %v1017 = vadd.f32 %v952, %v1016
    %v1018 = vpop.f32.mrf.mxu0
    %1019 = vmatprep.mubr.bf16.mxu0 0
    %1020 = vmatmul.mubr.bf16.gmra.mxu0 %v896
    %v1021 = vpop.f32.mrf.mxu0
    %v1022 = vadd.f32 %v957, %v1021
    %v1023 = vpop.f32.mrf.mxu0
    %v1024 = vpop.f32.mrf.mxu0
    %v1025 = vadd.f32 %v960, %v1024
    %v1026 = vpop.f32.mrf.mxu0
    %1027 = vdwg.mxu0
    %v1028 = vmax.f32 %v998, 0.0
    %v1029 = vmax.f32 %v1001, 0.0
    %v1030 = vmax.f32 %v1006, 0.0
    %v1031 = vmax.f32 %v1009, 0.0
    %v1032 = vmax.f32 %v1014, 0.0
    %v1033 = vmax.f32 %v1017, 0.0
    %v1034 = vmax.f32 %v1022, 0.0
    %v1035 = vmax.f32 %v1025, 0.0
    %1036 = vst [vmem:[%s7] sm:$0xff] %v1028
    %1037 = vst [vmem:[%s7 + $0x8] sm:$0xff] %v1029
    %1038 = vst [vmem:[%s7 + $0x10] sm:$0xff] %v1030
    %1039 = vst [vmem:[%s7 + $0x18] sm:$0xff] %v1031
    %1040 = vst [vmem:[%s7 + $0x20] sm:$0xff] %v1032
    %1041 = vst [vmem:[%s7 + $0x28] sm:$0xff] %v1033
    %1042 = vst [vmem:[%s7 + $0x30] sm:$0xff] %v1034
    %1043 = vst [vmem:[%s7 + $0x38] sm:$0xff] %v1035
    // Predicated region
    $region38: #{spadann_forward.2} parent=1 // pred_check
      _
    $region39: #{spadann_forward.2} parent=1 // pred_check_branch
      %1045 = sbr.rel (0) target = $region41
    $region40: #{spadann_forward.2} parent=1 // pred_region
      _
    $region41: #{spadann_forward.2} parent=1 // pred_fallthru
      _
    // Predicated region
    $region42: #{spadann_forward.2} parent=1 // pred_check
      _
    $region43: #{spadann_forward.2} parent=1 // pred_check_branch
      %1047 = sbr.rel (0) target = $region45
    $region44: #{spadann_forward.2} parent=1 // pred_region
      _
    $region45: #{spadann_forward.2} parent=1 // pred_fallthru
      _
    %1048 = vsyncpa [#allocation3], 1
    %1049 = vsyncpa [#allocation5], 1

// kernel: spadann_forward.3
$region0: #{spadann_forward.3}
  #allocation0 [shape = 'u32[]', space=smem, size = 0x4, offset = 0x4, fixed_abs, tag = 'smem constant byte address 0x4 - core index']
  #allocation1 [shape = 'u32[144,128]{1,0:T(1,128)}', space=vmem, size = 0x12000, scoped, tag = 'internal scratch']
  %s0 = inlined_call_operand.vmem [shape: f32[8,1024], index: 0, kind: input, shape index: {}]
  %s1 = inlined_call_operand.vmem [shape: bf16[1024,512], index: 1, kind: input, shape index: {}]
  %s2 = inlined_call_operand.vmem [shape: f32[1,512], index: 2, kind: input, shape index: {}]
  %s3 = inlined_call_operand.vmem [shape: bf16[512,128], index: 3, kind: input, shape index: {}]
  %s4 = inlined_call_operand.vmem [shape: f32[1,128], index: 4, kind: input, shape index: {}]
  %s5 = inlined_call_operand.vmem [shape: f32[8,128], index: 5, kind: output, shape index: {}]
  %s6 = sld [smem:[#allocation0]]
  $region30: #{spadann_forward.3} parent=0
    _
  %s8 = ssub.s32 1, %s6
  %s9 = scalar_select 0, %s8, %s6
  // Predicated region
  $region2: #{spadann_forward.3} parent=0 // pred_check
    _
  $region3: #{spadann_forward.3} parent=0 // pred_check_branch
    %11 = sbr.rel (0) target = $region5
  $region4: #{spadann_forward.3} parent=0 // pred_region
    _
  $region5: #{spadann_forward.3} parent=0 // pred_fallthru
    _
  // Predicated region
  $region6: #{spadann_forward.3} parent=0 // pred_check
    _
  $region7: #{spadann_forward.3} parent=0 // pred_check_branch
    %13 = sbr.rel (0) target = $region9
  $region8: #{spadann_forward.3} parent=0 // pred_region
    _
  $region9: #{spadann_forward.3} parent=0 // pred_fallthru
    _
  // Predicated region
  $region10: #{spadann_forward.3} parent=0 // pred_check
    _
  $region11: #{spadann_forward.3} parent=0 // pred_check_branch
    %15 = sbr.rel (0) target = $region13
  $region12: #{spadann_forward.3} parent=0 // pred_region
    _
  $region13: #{spadann_forward.3} parent=0 // pred_fallthru
    _
  // Predicated region
  $region14: #{spadann_forward.3} parent=0 // pred_check
    _
  $region15: #{spadann_forward.3} parent=0 // pred_check_branch
    %17 = sbr.rel (0) target = $region17
  $region16: #{spadann_forward.3} parent=0 // pred_region
    _
  $region17: #{spadann_forward.3} parent=0 // pred_fallthru
    _
  // Predicated region
  $region18: #{spadann_forward.3} parent=0 // pred_check
    _
  $region19: #{spadann_forward.3} parent=0 // pred_check_branch
    %19 = sbr.rel (0) target = $region21
  $region20: #{spadann_forward.3} parent=0 // pred_region
    _
  $region21: #{spadann_forward.3} parent=0 // pred_fallthru
    _
  %v21 = vld [vmem:[%s0] sm:$0xff]
  %v22 = vld [vmem:[%s0 + $0x8] sm:$0xff]
  %v23 = vld [vmem:[%s0 + $0x10] sm:$0xff]
  %v24 = vld [vmem:[%s0 + $0x18] sm:$0xff]
  %v25 = vld [vmem:[%s0 + $0x20] sm:$0xff]
  %v26 = vld [vmem:[%s0 + $0x28] sm:$0xff]
  %v27 = vld [vmem:[%s0 + $0x30] sm:$0xff]
  %v28 = vld [vmem:[%s0 + $0x38] sm:$0xff]
  %v29 = vpack.c.bf16 %v21, %v21
  %v30 = vpack.c.bf16 %v22, %v22
  %v31 = vpack.c.bf16 %v23, %v23
  %v32 = vpack.c.bf16 %v24, %v24
  %v33 = vpack.c.bf16 %v25, %v25
  %v34 = vpack.c.bf16 %v26, %v26
  %v35 = vpack.c.bf16 %v27, %v27
  %v36 = vpack.c.bf16 %v28, %v28
  %v37 = vld [vmem:[%s1] sm:$0xff]
  %v38 = vld [vmem:[%s1 + $0x8] sm:$0xff]
  %v39 = vld [vmem:[%s1 + $0x10] sm:$0xff]
  %v40 = vld [vmem:[%s1 + $0x18] sm:$0xff]
  %v41 = vld [vmem:[%s1 + $0x20] sm:$0xff]
  %v42 = vld [vmem:[%s1 + $0x28] sm:$0xff]
  %v43 = vld [vmem:[%s1 + $0x30] sm:$0xff]
  %v44 = vld [vmem:[%s1 + $0x38] sm:$0xff]
  %v45 = vld [vmem:[%s1 + $0x40] sm:$0xff]
  %v46 = vld [vmem:[%s1 + $0x48] sm:$0xff]
  %v47 = vld [vmem:[%s1 + $0x50] sm:$0xff]
  %v48 = vld [vmem:[%s1 + $0x58] sm:$0xff]
  %v49 = vld [vmem:[%s1 + $0x60] sm:$0xff]
  %v50 = vld [vmem:[%s1 + $0x68] sm:$0xff]
  %v51 = vld [vmem:[%s1 + $0x70] sm:$0xff]
  %v52 = vld [vmem:[%s1 + $0x78] sm:$0xff]
  %v53 = vld [vmem:[%s1 + $0x80] sm:$0xff]
  %v54 = vld [vmem:[%s1 + $0x88] sm:$0xff]
  %v55 = vld [vmem:[%s1 + $0x90] sm:$0xff]
  %v56 = vld [vmem:[%s1 + $0x98] sm:$0xff]
  %v57 = vld [vmem:[%s1 + $0xa0] sm:$0xff]
  %v58 = vld [vmem:[%s1 + $0xa8] sm:$0xff]
  %v59 = vld [vmem:[%s1 + $0xb0] sm:$0xff]
  %v60 = vld [vmem:[%s1 + $0xb8] sm:$0xff]
  %v61 = vld [vmem:[%s1 + $0xc0] sm:$0xff]
  %v62 = vld [vmem:[%s1 + $0xc8] sm:$0xff]
  %v63 = vld [vmem:[%s1 + $0xd0] sm:$0xff]
  %v64 = vld [vmem:[%s1 + $0xd8] sm:$0xff]
  %v65 = vld [vmem:[%s1 + $0xe0] sm:$0xff]
  %v66 = vld [vmem:[%s1 + $0xe8] sm:$0xff]
  %v67 = vld [vmem:[%s1 + $0xf0] sm:$0xff]
  %v68 = vld [vmem:[%s1 + $0xf8] sm:$0xff]
  %v69 = vld [vmem:[%s1 + $0x100] sm:$0xff]
  %v70 = vld [vmem:[%s1 + $0x108] sm:$0xff]
  %v71 = vld [vmem:[%s1 + $0x110] sm:$0xff]
  %v72 = vld [vmem:[%s1 + $0x118] sm:$0xff]
  %v73 = vld [vmem:[%s1 + $0x120] sm:$0xff]
  %v74 = vld [vmem:[%s1 + $0x128] sm:$0xff]
  %v75 = vld [vmem:[%s1 + $0x130] sm:$0xff]
  %v76 = vld [vmem:[%s1 + $0x138] sm:$0xff]
  %v77 = vld [vmem:[%s1 + $0x140] sm:$0xff]
  %v78 = vld [vmem:[%s1 + $0x148] sm:$0xff]
  %v79 = vld [vmem:[%s1 + $0x150] sm:$0xff]
  %v80 = vld [vmem:[%s1 + $0x158] sm:$0xff]
  %v81 = vld [vmem:[%s1 + $0x160] sm:$0xff]
  %v82 = vld [vmem:[%s1 + $0x168] sm:$0xff]
  %v83 = vld [vmem:[%s1 + $0x170] sm:$0xff]
  %v84 = vld [vmem:[%s1 + $0x178] sm:$0xff]
  %v85 = vld [vmem:[%s1 + $0x180] sm:$0xff]
  %v86 = vld [vmem:[%s1 + $0x188] sm:$0xff]
  %v87 = vld [vmem:[%s1 + $0x190] sm:$0xff]
  %v88 = vld [vmem:[%s1 + $0x198] sm:$0xff]
  %v89 = vld [vmem:[%s1 + $0x1a0] sm:$0xff]
  %v90 = vld [vmem:[%s1 + $0x1a8] sm:$0xff]
  %v91 = vld [vmem:[%s1 + $0x1b0] sm:$0xff]
  %v92 = vld [vmem:[%s1 + $0x1b8] sm:$0xff]
  %v93 = vld [vmem:[%s1 + $0x1c0] sm:$0xff]
  %v94 = vld [vmem:[%s1 + $0x1c8] sm:$0xff]
  %v95 = vld [vmem:[%s1 + $0x1d0] sm:$0xff]
  %v96 = vld [vmem:[%s1 + $0x1d8] sm:$0xff]
  %v97 = vld [vmem:[%s1 + $0x1e0] sm:$0xff]
  %v98 = vld [vmem:[%s1 + $0x1e8] sm:$0xff]
  %v99 = vld [vmem:[%s1 + $0x1f0] sm:$0xff]
  %v100 = vld [vmem:[%s1 + $0x1f8] sm:$0xff]
  %v101 = vld [vmem:[%s1 + $0x200] sm:$0xff]
  %v102 = vld [vmem:[%s1 + $0x208] sm:$0xff]
  %v103 = vld [vmem:[%s1 + $0x210] sm:$0xff]
  %v104 = vld [vmem:[%s1 + $0x218] sm:$0xff]
  %v105 = vld [vmem:[%s1 + $0x220] sm:$0xff]
  %v106 = vld [vmem:[%s1 + $0x228] sm:$0xff]
  %v107 = vld [vmem:[%s1 + $0x230] sm:$0xff]
  %v108 = vld [vmem:[%s1 + $0x238] sm:$0xff]
  %v109 = vld [vmem:[%s1 + $0x240] sm:$0xff]
  %v110 = vld [vmem:[%s1 + $0x248] sm:$0xff]
  %v111 = vld [vmem:[%s1 + $0x250] sm:$0xff]
  %v112 = vld [vmem:[%s1 + $0x258] sm:$0xff]
  %v113 = vld [vmem:[%s1 + $0x260] sm:$0xff]
  %v114 = vld [vmem:[%s1 + $0x268] sm:$0xff]
  %v115 = vld [vmem:[%s1 + $0x270] sm:$0xff]
  %v116 = vld [vmem:[%s1 + $0x278] sm:$0xff]
  %v117 = vld [vmem:[%s1 + $0x280] sm:$0xff]
  %v118 = vld [vmem:[%s1 + $0x288] sm:$0xff]
  %v119 = vld [vmem:[%s1 + $0x290] sm:$0xff]
  %v120 = vld [vmem:[%s1 + $0x298] sm:$0xff]
  %v121 = vld [vmem:[%s1 + $0x2a0] sm:$0xff]
  %v122 = vld [vmem:[%s1 + $0x2a8] sm:$0xff]
  %v123 = vld [vmem:[%s1 + $0x2b0] sm:$0xff]
  %v124 = vld [vmem:[%s1 + $0x2b8] sm:$0xff]
  %v125 = vld [vmem:[%s1 + $0x2c0] sm:$0xff]
  %v126 = vld [vmem:[%s1 + $0x2c8] sm:$0xff]
  %v127 = vld [vmem:[%s1 + $0x2d0] sm:$0xff]
  %v128 = vld [vmem:[%s1 + $0x2d8] sm:$0xff]
  %v129 = vld [vmem:[%s1 + $0x2e0] sm:$0xff]
  %v130 = vld [vmem:[%s1 + $0x2e8] sm:$0xff]
  %v131 = vld [vmem:[%s1 + $0x2f0] sm:$0xff]
  %v132 = vld [vmem:[%s1 + $0x2f8] sm:$0xff]
  %v133 = vld [vmem:[%s1 + $0x300] sm:$0xff]
  %v134 = vld [vmem:[%s1 + $0x308] sm:$0xff]
  %v135 = vld [vmem:[%s1 + $0x310] sm:$0xff]
  %v136 = vld [vmem:[%s1 + $0x318] sm:$0xff]
  %v137 = vld [vmem:[%s1 + $0x320] sm:$0xff]
  %v138 = vld [vmem:[%s1 + $0x328] sm:$0xff]
  %v139 = vld [vmem:[%s1 + $0x330] sm:$0xff]
  %v140 = vld [vmem:[%s1 + $0x338] sm:$0xff]
  %v141 = vld [vmem:[%s1 + $0x340] sm:$0xff]
  %v142 = vld [vmem:[%s1 + $0x348] sm:$0xff]
  %v143 = vld [vmem:[%s1 + $0x350] sm:$0xff]
  %v144 = vld [vmem:[%s1 + $0x358] sm:$0xff]
  %v145 = vld [vmem:[%s1 + $0x360] sm:$0xff]
  %v146 = vld [vmem:[%s1 + $0x368] sm:$0xff]
  %v147 = vld [vmem:[%s1 + $0x370] sm:$0xff]
  %v148 = vld [vmem:[%s1 + $0x378] sm:$0xff]
  %v149 = vld [vmem:[%s1 + $0x380] sm:$0xff]
  %v150 = vld [vmem:[%s1 + $0x388] sm:$0xff]
  %v151 = vld [vmem:[%s1 + $0x390] sm:$0xff]
  %v152 = vld [vmem:[%s1 + $0x398] sm:$0xff]
  %v153 = vld [vmem:[%s1 + $0x3a0] sm:$0xff]
  %v154 = vld [vmem:[%s1 + $0x3a8] sm:$0xff]
  %v155 = vld [vmem:[%s1 + $0x3b0] sm:$0xff]
  %v156 = vld [vmem:[%s1 + $0x3b8] sm:$0xff]
  %v157 = vld [vmem:[%s1 + $0x3c0] sm:$0xff]
  %v158 = vld [vmem:[%s1 + $0x3c8] sm:$0xff]
  %v159 = vld [vmem:[%s1 + $0x3d0] sm:$0xff]
  %v160 = vld [vmem:[%s1 + $0x3d8] sm:$0xff]
  %v161 = vld [vmem:[%s1 + $0x3e0] sm:$0xff]
  %v162 = vld [vmem:[%s1 + $0x3e8] sm:$0xff]
  %v163 = vld [vmem:[%s1 + $0x3f0] sm:$0xff]
  %v164 = vld [vmem:[%s1 + $0x3f8] sm:$0xff]
  %v165 = vld [vmem:[%s1 + $0x400] sm:$0xff]
  %v166 = vld [vmem:[%s1 + $0x408] sm:$0xff]
  %v167 = vld [vmem:[%s1 + $0x410] sm:$0xff]
  %v168 = vld [vmem:[%s1 + $0x418] sm:$0xff]
  %v169 = vld [vmem:[%s1 + $0x420] sm:$0xff]
  %v170 = vld [vmem:[%s1 + $0x428] sm:$0xff]
  %v171 = vld [vmem:[%s1 + $0x430] sm:$0xff]
  %v172 = vld [vmem:[%s1 + $0x438] sm:$0xff]
  %v173 = vld [vmem:[%s1 + $0x440] sm:$0xff]
  %v174 = vld [vmem:[%s1 + $0x448] sm:$0xff]
  %v175 = vld [vmem:[%s1 + $0x450] sm:$0xff]
  %v176 = vld [vmem:[%s1 + $0x458] sm:$0xff]
  %v177 = vld [vmem:[%s1 + $0x460] sm:$0xff]
  %v178 = vld [vmem:[%s1 + $0x468] sm:$0xff]
  %v179 = vld [vmem:[%s1 + $0x470] sm:$0xff]
  %v180 = vld [vmem:[%s1 + $0x478] sm:$0xff]
  %v181 = vld [vmem:[%s1 + $0x480] sm:$0xff]
  %v182 = vld [vmem:[%s1 + $0x488] sm:$0xff]
  %v183 = vld [vmem:[%s1 + $0x490] sm:$0xff]
  %v184 = vld [vmem:[%s1 + $0x498] sm:$0xff]
  %v185 = vld [vmem:[%s1 + $0x4a0] sm:$0xff]
  %v186 = vld [vmem:[%s1 + $0x4a8] sm:$0xff]
  %v187 = vld [vmem:[%s1 + $0x4b0] sm:$0xff]
  %v188 = vld [vmem:[%s1 + $0x4b8] sm:$0xff]
  %v189 = vld [vmem:[%s1 + $0x4c0] sm:$0xff]
  %v190 = vld [vmem:[%s1 + $0x4c8] sm:$0xff]
  %v191 = vld [vmem:[%s1 + $0x4d0] sm:$0xff]
  %v192 = vld [vmem:[%s1 + $0x4d8] sm:$0xff]
  %v193 = vld [vmem:[%s1 + $0x4e0] sm:$0xff]
  %v194 = vld [vmem:[%s1 + $0x4e8] sm:$0xff]
  %v195 = vld [vmem:[%s1 + $0x4f0] sm:$0xff]
  %v196 = vld [vmem:[%s1 + $0x4f8] sm:$0xff]
  %v197 = vld [vmem:[%s1 + $0x500] sm:$0xff]
  %v198 = vld [vmem:[%s1 + $0x508] sm:$0xff]
  %v199 = vld [vmem:[%s1 + $0x510] sm:$0xff]
  %v200 = vld [vmem:[%s1 + $0x518] sm:$0xff]
  %v201 = vld [vmem:[%s1 + $0x520] sm:$0xff]
  %v202 = vld [vmem:[%s1 + $0x528] sm:$0xff]
  %v203 = vld [vmem:[%s1 + $0x530] sm:$0xff]
  %v204 = vld [vmem:[%s1 + $0x538] sm:$0xff]
  %v205 = vld [vmem:[%s1 + $0x540] sm:$0xff]
  %v206 = vld [vmem:[%s1 + $0x548] sm:$0xff]
  %v207 = vld [vmem:[%s1 + $0x550] sm:$0xff]
  %v208 = vld [vmem:[%s1 + $0x558] sm:$0xff]
  %v209 = vld [vmem:[%s1 + $0x560] sm:$0xff]
  %v210 = vld [vmem:[%s1 + $0x568] sm:$0xff]
  %v211 = vld [vmem:[%s1 + $0x570] sm:$0xff]
  %v212 = vld [vmem:[%s1 + $0x578] sm:$0xff]
  %v213 = vld [vmem:[%s1 + $0x580] sm:$0xff]
  %v214 = vld [vmem:[%s1 + $0x588] sm:$0xff]
  %v215 = vld [vmem:[%s1 + $0x590] sm:$0xff]
  %v216 = vld [vmem:[%s1 + $0x598] sm:$0xff]
  %v217 = vld [vmem:[%s1 + $0x5a0] sm:$0xff]
  %v218 = vld [vmem:[%s1 + $0x5a8] sm:$0xff]
  %v219 = vld [vmem:[%s1 + $0x5b0] sm:$0xff]
  %v220 = vld [vmem:[%s1 + $0x5b8] sm:$0xff]
  %v221 = vld [vmem:[%s1 + $0x5c0] sm:$0xff]
  %v222 = vld [vmem:[%s1 + $0x5c8] sm:$0xff]
  %v223 = vld [vmem:[%s1 + $0x5d0] sm:$0xff]
  %v224 = vld [vmem:[%s1 + $0x5d8] sm:$0xff]
  %v225 = vld [vmem:[%s1 + $0x5e0] sm:$0xff]
  %v226 = vld [vmem:[%s1 + $0x5e8] sm:$0xff]
  %v227 = vld [vmem:[%s1 + $0x5f0] sm:$0xff]
  %v228 = vld [vmem:[%s1 + $0x5f8] sm:$0xff]
  %v229 = vld [vmem:[%s1 + $0x600] sm:$0xff]
  %v230 = vld [vmem:[%s1 + $0x608] sm:$0xff]
  %v231 = vld [vmem:[%s1 + $0x610] sm:$0xff]
  %v232 = vld [vmem:[%s1 + $0x618] sm:$0xff]
  %v233 = vld [vmem:[%s1 + $0x620] sm:$0xff]
  %v234 = vld [vmem:[%s1 + $0x628] sm:$0xff]
  %v235 = vld [vmem:[%s1 + $0x630] sm:$0xff]
  %v236 = vld [vmem:[%s1 + $0x638] sm:$0xff]
  %v237 = vld [vmem:[%s1 + $0x640] sm:$0xff]
  %v238 = vld [vmem:[%s1 + $0x648] sm:$0xff]
  %v239 = vld [vmem:[%s1 + $0x650] sm:$0xff]
  %v240 = vld [vmem:[%s1 + $0x658] sm:$0xff]
  %v241 = vld [vmem:[%s1 + $0x660] sm:$0xff]
  %v242 = vld [vmem:[%s1 + $0x668] sm:$0xff]
  %v243 = vld [vmem:[%s1 + $0x670] sm:$0xff]
  %v244 = vld [vmem:[%s1 + $0x678] sm:$0xff]
  %v245 = vld [vmem:[%s1 + $0x680] sm:$0xff]
  %v246 = vld [vmem:[%s1 + $0x688] sm:$0xff]
  %v247 = vld [vmem:[%s1 + $0x690] sm:$0xff]
  %v248 = vld [vmem:[%s1 + $0x698] sm:$0xff]
  %v249 = vld [vmem:[%s1 + $0x6a0] sm:$0xff]
  %v250 = vld [vmem:[%s1 + $0x6a8] sm:$0xff]
  %v251 = vld [vmem:[%s1 + $0x6b0] sm:$0xff]
  %v252 = vld [vmem:[%s1 + $0x6b8] sm:$0xff]
  %v253 = vld [vmem:[%s1 + $0x6c0] sm:$0xff]
  %v254 = vld [vmem:[%s1 + $0x6c8] sm:$0xff]
  %v255 = vld [vmem:[%s1 + $0x6d0] sm:$0xff]
  %v256 = vld [vmem:[%s1 + $0x6d8] sm:$0xff]
  %v257 = vld [vmem:[%s1 + $0x6e0] sm:$0xff]
  %v258 = vld [vmem:[%s1 + $0x6e8] sm:$0xff]
  %v259 = vld [vmem:[%s1 + $0x6f0] sm:$0xff]
  %v260 = vld [vmem:[%s1 + $0x6f8] sm:$0xff]
  %v261 = vld [vmem:[%s1 + $0x700] sm:$0xff]
  %v262 = vld [vmem:[%s1 + $0x708] sm:$0xff]
  %v263 = vld [vmem:[%s1 + $0x710] sm:$0xff]
  %v264 = vld [vmem:[%s1 + $0x718] sm:$0xff]
  %v265 = vld [vmem:[%s1 + $0x720] sm:$0xff]
  %v266 = vld [vmem:[%s1 + $0x728] sm:$0xff]
  %v267 = vld [vmem:[%s1 + $0x730] sm:$0xff]
  %v268 = vld [vmem:[%s1 + $0x738] sm:$0xff]
  %v269 = vld [vmem:[%s1 + $0x740] sm:$0xff]
  %v270 = vld [vmem:[%s1 + $0x748] sm:$0xff]
  %v271 = vld [vmem:[%s1 + $0x750] sm:$0xff]
  %v272 = vld [vmem:[%s1 + $0x758] sm:$0xff]
  %v273 = vld [vmem:[%s1 + $0x760] sm:$0xff]
  %v274 = vld [vmem:[%s1 + $0x768] sm:$0xff]
  %v275 = vld [vmem:[%s1 + $0x770] sm:$0xff]
  %v276 = vld [vmem:[%s1 + $0x778] sm:$0xff]
  %v277 = vld [vmem:[%s1 + $0x780] sm:$0xff]
  %v278 = vld [vmem:[%s1 + $0x788] sm:$0xff]
  %v279 = vld [vmem:[%s1 + $0x790] sm:$0xff]
  %v280 = vld [vmem:[%s1 + $0x798] sm:$0xff]
  %v281 = vld [vmem:[%s1 + $0x7a0] sm:$0xff]
  %v282 = vld [vmem:[%s1 + $0x7a8] sm:$0xff]
  %v283 = vld [vmem:[%s1 + $0x7b0] sm:$0xff]
  %v284 = vld [vmem:[%s1 + $0x7b8] sm:$0xff]
  %v285 = vld [vmem:[%s1 + $0x7c0] sm:$0xff]
  %v286 = vld [vmem:[%s1 + $0x7c8] sm:$0xff]
  %v287 = vld [vmem:[%s1 + $0x7d0] sm:$0xff]
  %v288 = vld [vmem:[%s1 + $0x7d8] sm:$0xff]
  %v289 = vld [vmem:[%s1 + $0x7e0] sm:$0xff]
  %v290 = vld [vmem:[%s1 + $0x7e8] sm:$0xff]
  %v291 = vld [vmem:[%s1 + $0x7f0] sm:$0xff]
  %v292 = vld [vmem:[%s1 + $0x7f8] sm:$0xff]
  %v293 = vld [vmem:[%s2] sm:$0xf]
  %v295 = vlaneseq
  %v296 = vshrl.u32 %v295, 7
  %v297 = vsub.s32 0, %v296
  %v298 = vrot.slane %v293, %v297
  %v299 = vlaneseq
  %v300 = vshrl.u32 %v299, 7
  %v301 = vsub.s32 1, %v300
  %v302 = vrot.slane %v293, %v301
  %v303 = vlaneseq
  %v304 = vshrl.u32 %v303, 7
  %v305 = vsub.s32 2, %v304
  %v306 = vrot.slane %v293, %v305
  %v307 = vlaneseq
  %v308 = vshrl.u32 %v307, 7
  %v309 = vsub.s32 3, %v308
  %v310 = vrot.slane %v293, %v309
  %v571 = vunpack.c.l.b16 %v37
  %v572 = vunpack.c.h.b16 %v37
  %v573 = vunpack.c.l.b16 %v38
  %v574 = vunpack.c.h.b16 %v38
  %v575 = vunpack.c.l.b16 %v39
  %v576 = vunpack.c.h.b16 %v39
  %v577 = vunpack.c.l.b16 %v40
  %v578 = vunpack.c.h.b16 %v40
  %v579 = vunpack.c.l.b16 %v41
  %v580 = vunpack.c.h.b16 %v41
  %v581 = vunpack.c.l.b16 %v42
  %v582 = vunpack.c.h.b16 %v42
  %v583 = vunpack.c.l.b16 %v43
  %v584 = vunpack.c.h.b16 %v43
  %v585 = vunpack.c.l.b16 %v44
  %v586 = vunpack.c.h.b16 %v44
  %v587 = vunpack.c.l.b16 %v45
  %v588 = vunpack.c.h.b16 %v45
  %v589 = vunpack.c.l.b16 %v46
  %v590 = vunpack.c.h.b16 %v46
  %v591 = vunpack.c.l.b16 %v47
  %v592 = vunpack.c.h.b16 %v47
  %v593 = vunpack.c.l.b16 %v48
  %v594 = vunpack.c.h.b16 %v48
  %v595 = vunpack.c.l.b16 %v49
  %v596 = vunpack.c.h.b16 %v49
  %v597 = vunpack.c.l.b16 %v50
  %v598 = vunpack.c.h.b16 %v50
  %v599 = vunpack.c.l.b16 %v51
  %v600 = vunpack.c.h.b16 %v51
  %v601 = vunpack.c.l.b16 %v52
  %v602 = vunpack.c.h.b16 %v52
  %v603 = vunpack.c.l.b16 %v53
  %v604 = vunpack.c.h.b16 %v53
  %v605 = vunpack.c.l.b16 %v54
  %v606 = vunpack.c.h.b16 %v54
  %v607 = vunpack.c.l.b16 %v55
  %v608 = vunpack.c.h.b16 %v55
  %v609 = vunpack.c.l.b16 %v56
  %v610 = vunpack.c.h.b16 %v56
  %v611 = vunpack.c.l.b16 %v57
  %v612 = vunpack.c.h.b16 %v57
  %v613 = vunpack.c.l.b16 %v58
  %v614 = vunpack.c.h.b16 %v58
  %v615 = vunpack.c.l.b16 %v59
  %v616 = vunpack.c.h.b16 %v59
  %v617 = vunpack.c.l.b16 %v60
  %v618 = vunpack.c.h.b16 %v60
  %v619 = vunpack.c.l.b16 %v61
  %v620 = vunpack.c.h.b16 %v61
  %v621 = vunpack.c.l.b16 %v62
  %v622 = vunpack.c.h.b16 %v62
  %v623 = vunpack.c.l.b16 %v63
  %v624 = vunpack.c.h.b16 %v63
  %v625 = vunpack.c.l.b16 %v64
  %v626 = vunpack.c.h.b16 %v64
  %v627 = vunpack.c.l.b16 %v65
  %v628 = vunpack.c.h.b16 %v65
  %v629 = vunpack.c.l.b16 %v66
  %v630 = vunpack.c.h.b16 %v66
  %v631 = vunpack.c.l.b16 %v67
  %v632 = vunpack.c.h.b16 %v67
  %v633 = vunpack.c.l.b16 %v68
  %v634 = vunpack.c.h.b16 %v68
  %v635 = vunpack.c.l.b16 %v69
  %v636 = vunpack.c.h.b16 %v69
  %v637 = vunpack.c.l.b16 %v70
  %v638 = vunpack.c.h.b16 %v70
  %v639 = vunpack.c.l.b16 %v71
  %v640 = vunpack.c.h.b16 %v71
  %v641 = vunpack.c.l.b16 %v72
  %v642 = vunpack.c.h.b16 %v72
  %v643 = vunpack.c.l.b16 %v73
  %v644 = vunpack.c.h.b16 %v73
  %v645 = vunpack.c.l.b16 %v74
  %v646 = vunpack.c.h.b16 %v74
  %v647 = vunpack.c.l.b16 %v75
  %v648 = vunpack.c.h.b16 %v75
  %v649 = vunpack.c.l.b16 %v76
  %v650 = vunpack.c.h.b16 %v76
  %v651 = vunpack.c.l.b16 %v77
  %v652 = vunpack.c.h.b16 %v77
  %v653 = vunpack.c.l.b16 %v78
  %v654 = vunpack.c.h.b16 %v78
  %v655 = vunpack.c.l.b16 %v79
  %v656 = vunpack.c.h.b16 %v79
  %v657 = vunpack.c.l.b16 %v80
  %v658 = vunpack.c.h.b16 %v80
  %v659 = vunpack.c.l.b16 %v81
  %v660 = vunpack.c.h.b16 %v81
  %v661 = vunpack.c.l.b16 %v82
  %v662 = vunpack.c.h.b16 %v82
  %v663 = vunpack.c.l.b16 %v83
  %v664 = vunpack.c.h.b16 %v83
  %v665 = vunpack.c.l.b16 %v84
  %v666 = vunpack.c.h.b16 %v84
  %v667 = vunpack.c.l.b16 %v85
  %v668 = vunpack.c.h.b16 %v85
  %v669 = vunpack.c.l.b16 %v86
  %v670 = vunpack.c.h.b16 %v86
  %v671 = vunpack.c.l.b16 %v87
  %v672 = vunpack.c.h.b16 %v87
  %v673 = vunpack.c.l.b16 %v88
  %v674 = vunpack.c.h.b16 %v88
  %v675 = vunpack.c.l.b16 %v89
  %v676 = vunpack.c.h.b16 %v89
  %v677 = vunpack.c.l.b16 %v90
  %v678 = vunpack.c.h.b16 %v90
  %v679 = vunpack.c.l.b16 %v91
  %v680 = vunpack.c.h.b16 %v91
  %v681 = vunpack.c.l.b16 %v92
  %v682 = vunpack.c.h.b16 %v92
  %v683 = vunpack.c.l.b16 %v93
  %v684 = vunpack.c.h.b16 %v93
  %v685 = vunpack.c.l.b16 %v94
  %v686 = vunpack.c.h.b16 %v94
  %v687 = vunpack.c.l.b16 %v95
  %v688 = vunpack.c.h.b16 %v95
  %v689 = vunpack.c.l.b16 %v96
  %v690 = vunpack.c.h.b16 %v96
  %v691 = vunpack.c.l.b16 %v97
  %v692 = vunpack.c.h.b16 %v97
  %v693 = vunpack.c.l.b16 %v98
  %v694 = vunpack.c.h.b16 %v98
  %v695 = vunpack.c.l.b16 %v99
  %v696 = vunpack.c.h.b16 %v99
  %v697 = vunpack.c.l.b16 %v100
  %v698 = vunpack.c.h.b16 %v100
  %v699 = vunpack.c.l.b16 %v101
  %v700 = vunpack.c.h.b16 %v101
  %v701 = vunpack.c.l.b16 %v102
  %v702 = vunpack.c.h.b16 %v102
  %v703 = vunpack.c.l.b16 %v103
  %v704 = vunpack.c.h.b16 %v103
  %v705 = vunpack.c.l.b16 %v104
  %v706 = vunpack.c.h.b16 %v104
  %v707 = vunpack.c.l.b16 %v105
  %v708 = vunpack.c.h.b16 %v105
  %v709 = vunpack.c.l.b16 %v106
  %v710 = vunpack.c.h.b16 %v106
  %v711 = vunpack.c.l.b16 %v107
  %v712 = vunpack.c.h.b16 %v107
  %v713 = vunpack.c.l.b16 %v108
  %v714 = vunpack.c.h.b16 %v108
  %v715 = vunpack.c.l.b16 %v109
  %v716 = vunpack.c.h.b16 %v109
  %v717 = vunpack.c.l.b16 %v110
  %v718 = vunpack.c.h.b16 %v110
  %v719 = vunpack.c.l.b16 %v111
  %v720 = vunpack.c.h.b16 %v111
  %v721 = vunpack.c.l.b16 %v112
  %v722 = vunpack.c.h.b16 %v112
  %v723 = vunpack.c.l.b16 %v113
  %v724 = vunpack.c.h.b16 %v113
  %v725 = vunpack.c.l.b16 %v114
  %v726 = vunpack.c.h.b16 %v114
  %v727 = vunpack.c.l.b16 %v115
  %v728 = vunpack.c.h.b16 %v115
  %v729 = vunpack.c.l.b16 %v116
  %v730 = vunpack.c.h.b16 %v116
  %v731 = vunpack.c.l.b16 %v117
  %v732 = vunpack.c.h.b16 %v117
  %v733 = vunpack.c.l.b16 %v118
  %v734 = vunpack.c.h.b16 %v118
  %v735 = vunpack.c.l.b16 %v119
  %v736 = vunpack.c.h.b16 %v119
  %v737 = vunpack.c.l.b16 %v120
  %v738 = vunpack.c.h.b16 %v120
  %v739 = vunpack.c.l.b16 %v121
  %v740 = vunpack.c.h.b16 %v121
  %v741 = vunpack.c.l.b16 %v122
  %v742 = vunpack.c.h.b16 %v122
  %v743 = vunpack.c.l.b16 %v123
  %v744 = vunpack.c.h.b16 %v123
  %v745 = vunpack.c.l.b16 %v124
  %v746 = vunpack.c.h.b16 %v124
  %v747 = vunpack.c.l.b16 %v125
  %v748 = vunpack.c.h.b16 %v125
  %v749 = vunpack.c.l.b16 %v126
  %v750 = vunpack.c.h.b16 %v126
  %v751 = vunpack.c.l.b16 %v127
  %v752 = vunpack.c.h.b16 %v127
  %v753 = vunpack.c.l.b16 %v128
  %v754 = vunpack.c.h.b16 %v128
  %v755 = vunpack.c.l.b16 %v129
  %v756 = vunpack.c.h.b16 %v129
  %v757 = vunpack.c.l.b16 %v130
  %v758 = vunpack.c.h.b16 %v130
  %v759 = vunpack.c.l.b16 %v131
  %v760 = vunpack.c.h.b16 %v131
  %v761 = vunpack.c.l.b16 %v132
  %v762 = vunpack.c.h.b16 %v132
  %v763 = vunpack.c.l.b16 %v133
  %v764 = vunpack.c.h.b16 %v133
  %v765 = vunpack.c.l.b16 %v134
  %v766 = vunpack.c.h.b16 %v134
  %v767 = vunpack.c.l.b16 %v135
  %v768 = vunpack.c.h.b16 %v135
  %v769 = vunpack.c.l.b16 %v136
  %v770 = vunpack.c.h.b16 %v136
  %v771 = vunpack.c.l.b16 %v137
  %v772 = vunpack.c.h.b16 %v137
  %v773 = vunpack.c.l.b16 %v138
  %v774 = vunpack.c.h.b16 %v138
  %v775 = vunpack.c.l.b16 %v139
  %v776 = vunpack.c.h.b16 %v139
  %v777 = vunpack.c.l.b16 %v140
  %v778 = vunpack.c.h.b16 %v140
  %v779 = vunpack.c.l.b16 %v141
  %v780 = vunpack.c.h.b16 %v141
  %v781 = vunpack.c.l.b16 %v142
  %v782 = vunpack.c.h.b16 %v142
  %v783 = vunpack.c.l.b16 %v143
  %v784 = vunpack.c.h.b16 %v143
  %v785 = vunpack.c.l.b16 %v144
  %v786 = vunpack.c.h.b16 %v144
  %v787 = vunpack.c.l.b16 %v145
  %v788 = vunpack.c.h.b16 %v145
  %v789 = vunpack.c.l.b16 %v146
  %v790 = vunpack.c.h.b16 %v146
  %v791 = vunpack.c.l.b16 %v147
  %v792 = vunpack.c.h.b16 %v147
  %v793 = vunpack.c.l.b16 %v148
  %v794 = vunpack.c.h.b16 %v148
  %v795 = vunpack.c.l.b16 %v149
  %v796 = vunpack.c.h.b16 %v149
  %v797 = vunpack.c.l.b16 %v150
  %v798 = vunpack.c.h.b16 %v150
  %v799 = vunpack.c.l.b16 %v151
  %v800 = vunpack.c.h.b16 %v151
  %v801 = vunpack.c.l.b16 %v152
  %v802 = vunpack.c.h.b16 %v152
  %v803 = vunpack.c.l.b16 %v153
  %v804 = vunpack.c.h.b16 %v153
  %v805 = vunpack.c.l.b16 %v154
  %v806 = vunpack.c.h.b16 %v154
  %v807 = vunpack.c.l.b16 %v155
  %v808 = vunpack.c.h.b16 %v155
  %v809 = vunpack.c.l.b16 %v156
  %v810 = vunpack.c.h.b16 %v156
  %v811 = vunpack.c.l.b16 %v157
  %v812 = vunpack.c.h.b16 %v157
  %v813 = vunpack.c.l.b16 %v158
  %v814 = vunpack.c.h.b16 %v158
  %v815 = vunpack.c.l.b16 %v159
  %v816 = vunpack.c.h.b16 %v159
  %v817 = vunpack.c.l.b16 %v160
  %v818 = vunpack.c.h.b16 %v160
  %v819 = vunpack.c.l.b16 %v161
  %v820 = vunpack.c.h.b16 %v161
  %v821 = vunpack.c.l.b16 %v162
  %v822 = vunpack.c.h.b16 %v162
  %v823 = vunpack.c.l.b16 %v163
  %v824 = vunpack.c.h.b16 %v163
  %v825 = vunpack.c.l.b16 %v164
  %v826 = vunpack.c.h.b16 %v164
  %v827 = vunpack.c.l.b16 %v165
  %v828 = vunpack.c.h.b16 %v165
  %v829 = vunpack.c.l.b16 %v166
  %v830 = vunpack.c.h.b16 %v166
  %v831 = vunpack.c.l.b16 %v167
  %v832 = vunpack.c.h.b16 %v167
  %v833 = vunpack.c.l.b16 %v168
  %v834 = vunpack.c.h.b16 %v168
  %v835 = vunpack.c.l.b16 %v169
  %v836 = vunpack.c.h.b16 %v169
  %v837 = vunpack.c.l.b16 %v170
  %v838 = vunpack.c.h.b16 %v170
  %v839 = vunpack.c.l.b16 %v171
  %v840 = vunpack.c.h.b16 %v171
  %v841 = vunpack.c.l.b16 %v172
  %v842 = vunpack.c.h.b16 %v172
  %v843 = vunpack.c.l.b16 %v173
  %v844 = vunpack.c.h.b16 %v173
  %v845 = vunpack.c.l.b16 %v174
  %v846 = vunpack.c.h.b16 %v174
  %v847 = vunpack.c.l.b16 %v175
  %v848 = vunpack.c.h.b16 %v175
  %v849 = vunpack.c.l.b16 %v176
  %v850 = vunpack.c.h.b16 %v176
  %v851 = vunpack.c.l.b16 %v177
  %v852 = vunpack.c.h.b16 %v177
  %v853 = vunpack.c.l.b16 %v178
  %v854 = vunpack.c.h.b16 %v178
  %v855 = vunpack.c.l.b16 %v179
  %v856 = vunpack.c.h.b16 %v179
  %v857 = vunpack.c.l.b16 %v180
  %v858 = vunpack.c.h.b16 %v180
  %v859 = vunpack.c.l.b16 %v181
  %v860 = vunpack.c.h.b16 %v181
  %v861 = vunpack.c.l.b16 %v182
  %v862 = vunpack.c.h.b16 %v182
  %v863 = vunpack.c.l.b16 %v183
  %v864 = vunpack.c.h.b16 %v183
  %v865 = vunpack.c.l.b16 %v184
  %v866 = vunpack.c.h.b16 %v184
  %v867 = vunpack.c.l.b16 %v185
  %v868 = vunpack.c.h.b16 %v185
  %v869 = vunpack.c.l.b16 %v186
  %v870 = vunpack.c.h.b16 %v186
  %v871 = vunpack.c.l.b16 %v187
  %v872 = vunpack.c.h.b16 %v187
  %v873 = vunpack.c.l.b16 %v188
  %v874 = vunpack.c.h.b16 %v188
  %v875 = vunpack.c.l.b16 %v189
  %v876 = vunpack.c.h.b16 %v189
  %v877 = vunpack.c.l.b16 %v190
  %v878 = vunpack.c.h.b16 %v190
  %v879 = vunpack.c.l.b16 %v191
  %v880 = vunpack.c.h.b16 %v191
  %v881 = vunpack.c.l.b16 %v192
  %v882 = vunpack.c.h.b16 %v192
  %v883 = vunpack.c.l.b16 %v193
  %v884 = vunpack.c.h.b16 %v193
  %v885 = vunpack.c.l.b16 %v194
  %v886 = vunpack.c.h.b16 %v194
  %v887 = vunpack.c.l.b16 %v195
  %v888 = vunpack.c.h.b16 %v195
  %v889 = vunpack.c.l.b16 %v196
  %v890 = vunpack.c.h.b16 %v196
  %v891 = vunpack.c.l.b16 %v197
  %v892 = vunpack.c.h.b16 %v197
  %v893 = vunpack.c.l.b16 %v198
  %v894 = vunpack.c.h.b16 %v198
  %v895 = vunpack.c.l.b16 %v199
  %v896 = vunpack.c.h.b16 %v199
  %v897 = vunpack.c.l.b16 %v200
  %v898 = vunpack.c.h.b16 %v200
  %v899 = vunpack.c.l.b16 %v201
  %v900 = vunpack.c.h.b16 %v201
  %v901 = vunpack.c.l.b16 %v202
  %v902 = vunpack.c.h.b16 %v202
  %v903 = vunpack.c.l.b16 %v203
  %v904 = vunpack.c.h.b16 %v203
  %v905 = vunpack.c.l.b16 %v204
  %v906 = vunpack.c.h.b16 %v204
  %v907 = vunpack.c.l.b16 %v205
  %v908 = vunpack.c.h.b16 %v205
  %v909 = vunpack.c.l.b16 %v206
  %v910 = vunpack.c.h.b16 %v206
  %v911 = vunpack.c.l.b16 %v207
  %v912 = vunpack.c.h.b16 %v207
  %v913 = vunpack.c.l.b16 %v208
  %v914 = vunpack.c.h.b16 %v208
  %v915 = vunpack.c.l.b16 %v209
  %v916 = vunpack.c.h.b16 %v209
  %v917 = vunpack.c.l.b16 %v210
  %v918 = vunpack.c.h.b16 %v210
  %v919 = vunpack.c.l.b16 %v211
  %v920 = vunpack.c.h.b16 %v211
  %v921 = vunpack.c.l.b16 %v212
  %v922 = vunpack.c.h.b16 %v212
  %v923 = vunpack.c.l.b16 %v213
  %v924 = vunpack.c.h.b16 %v213
  %v925 = vunpack.c.l.b16 %v214
  %v926 = vunpack.c.h.b16 %v214
  %v927 = vunpack.c.l.b16 %v215
  %v928 = vunpack.c.h.b16 %v215
  %v929 = vunpack.c.l.b16 %v216
  %v930 = vunpack.c.h.b16 %v216
  %v931 = vunpack.c.l.b16 %v217
  %v932 = vunpack.c.h.b16 %v217
  %v933 = vunpack.c.l.b16 %v218
  %v934 = vunpack.c.h.b16 %v218
  %v935 = vunpack.c.l.b16 %v219
  %v936 = vunpack.c.h.b16 %v219
  %v937 = vunpack.c.l.b16 %v220
  %v938 = vunpack.c.h.b16 %v220
  %v939 = vunpack.c.l.b16 %v221
  %v940 = vunpack.c.h.b16 %v221
  %v941 = vunpack.c.l.b16 %v222
  %v942 = vunpack.c.h.b16 %v222
  %v943 = vunpack.c.l.b16 %v223
  %v944 = vunpack.c.h.b16 %v223
  %v945 = vunpack.c.l.b16 %v224
  %v946 = vunpack.c.h.b16 %v224
  %v947 = vunpack.c.l.b16 %v225
  %v948 = vunpack.c.h.b16 %v225
  %v949 = vunpack.c.l.b16 %v226
  %v950 = vunpack.c.h.b16 %v226
  %v951 = vunpack.c.l.b16 %v227
  %v952 = vunpack.c.h.b16 %v227
  %v953 = vunpack.c.l.b16 %v228
  %v954 = vunpack.c.h.b16 %v228
  %v955 = vunpack.c.l.b16 %v229
  %v956 = vunpack.c.h.b16 %v229
  %v957 = vunpack.c.l.b16 %v230
  %v958 = vunpack.c.h.b16 %v230
  %v959 = vunpack.c.l.b16 %v231
  %v960 = vunpack.c.h.b16 %v231
  %v961 = vunpack.c.l.b16 %v232
  %v962 = vunpack.c.h.b16 %v232
  %v963 = vunpack.c.l.b16 %v233
  %v964 = vunpack.c.h.b16 %v233
  %v965 = vunpack.c.l.b16 %v234
  %v966 = vunpack.c.h.b16 %v234
  %v967 = vunpack.c.l.b16 %v235
  %v968 = vunpack.c.h.b16 %v235
  %v969 = vunpack.c.l.b16 %v236
  %v970 = vunpack.c.h.b16 %v236
  %v971 = vunpack.c.l.b16 %v237
  %v972 = vunpack.c.h.b16 %v237
  %v973 = vunpack.c.l.b16 %v238
  %v974 = vunpack.c.h.b16 %v238
  %v975 = vunpack.c.l.b16 %v239
  %v976 = vunpack.c.h.b16 %v239
  %v977 = vunpack.c.l.b16 %v240
  %v978 = vunpack.c.h.b16 %v240
  %v979 = vunpack.c.l.b16 %v241
  %v980 = vunpack.c.h.b16 %v241
  %v981 = vunpack.c.l.b16 %v242
  %v982 = vunpack.c.h.b16 %v242
  %v983 = vunpack.c.l.b16 %v243
  %v984 = vunpack.c.h.b16 %v243
  %v985 = vunpack.c.l.b16 %v244
  %v986 = vunpack.c.h.b16 %v244
  %v987 = vunpack.c.l.b16 %v245
  %v988 = vunpack.c.h.b16 %v245
  %v989 = vunpack.c.l.b16 %v246
  %v990 = vunpack.c.h.b16 %v246
  %v991 = vunpack.c.l.b16 %v247
  %v992 = vunpack.c.h.b16 %v247
  %v993 = vunpack.c.l.b16 %v248
  %v994 = vunpack.c.h.b16 %v248
  %v995 = vunpack.c.l.b16 %v249
  %v996 = vunpack.c.h.b16 %v249
  %v997 = vunpack.c.l.b16 %v250
  %v998 = vunpack.c.h.b16 %v250
  %v999 = vunpack.c.l.b16 %v251
  %v1000 = vunpack.c.h.b16 %v251
  %v1001 = vunpack.c.l.b16 %v252
  %v1002 = vunpack.c.h.b16 %v252
  %v1003 = vunpack.c.l.b16 %v253
  %v1004 = vunpack.c.h.b16 %v253
  %v1005 = vunpack.c.l.b16 %v254
  %v1006 = vunpack.c.h.b16 %v254
  %v1007 = vunpack.c.l.b16 %v255
  %v1008 = vunpack.c.h.b16 %v255
  %v1009 = vunpack.c.l.b16 %v256
  %v1010 = vunpack.c.h.b16 %v256
  %v1011 = vunpack.c.l.b16 %v257
  %v1012 = vunpack.c.h.b16 %v257
  %v1013 = vunpack.c.l.b16 %v258
  %v1014 = vunpack.c.h.b16 %v258
  %v1015 = vunpack.c.l.b16 %v259
  %v1016 = vunpack.c.h.b16 %v259
  %v1017 = vunpack.c.l.b16 %v260
  %v1018 = vunpack.c.h.b16 %v260
  %v1019 = vunpack.c.l.b16 %v261
  %v1020 = vunpack.c.h.b16 %v261
  %v1021 = vunpack.c.l.b16 %v262
  %v1022 = vunpack.c.h.b16 %v262
  %v1023 = vunpack.c.l.b16 %v263
  %v1024 = vunpack.c.h.b16 %v263
  %v1025 = vunpack.c.l.b16 %v264
  %v1026 = vunpack.c.h.b16 %v264
  %v1027 = vunpack.c.l.b16 %v265
  %v1028 = vunpack.c.h.b16 %v265
  %v1029 = vunpack.c.l.b16 %v266
  %v1030 = vunpack.c.h.b16 %v266
  %v1031 = vunpack.c.l.b16 %v267
  %v1032 = vunpack.c.h.b16 %v267
  %v1033 = vunpack.c.l.b16 %v268
  %v1034 = vunpack.c.h.b16 %v268
  %v1035 = vunpack.c.l.b16 %v269
  %v1036 = vunpack.c.h.b16 %v269
  %v1037 = vunpack.c.l.b16 %v270
  %v1038 = vunpack.c.h.b16 %v270
  %v1039 = vunpack.c.l.b16 %v271
  %v1040 = vunpack.c.h.b16 %v271
  %v1041 = vunpack.c.l.b16 %v272
  %v1042 = vunpack.c.h.b16 %v272
  %v1043 = vunpack.c.l.b16 %v273
  %v1044 = vunpack.c.h.b16 %v273
  %v1045 = vunpack.c.l.b16 %v274
  %v1046 = vunpack.c.h.b16 %v274
  %v1047 = vunpack.c.l.b16 %v275
  %v1048 = vunpack.c.h.b16 %v275
  %v1049 = vunpack.c.l.b16 %v276
  %v1050 = vunpack.c.h.b16 %v276
  %v1051 = vunpack.c.l.b16 %v277
  %v1052 = vunpack.c.h.b16 %v277
  %v1053 = vunpack.c.l.b16 %v278
  %v1054 = vunpack.c.h.b16 %v278
  %v1055 = vunpack.c.l.b16 %v279
  %v1056 = vunpack.c.h.b16 %v279
  %v1057 = vunpack.c.l.b16 %v280
  %v1058 = vunpack.c.h.b16 %v280
  %v1059 = vunpack.c.l.b16 %v281
  %v1060 = vunpack.c.h.b16 %v281
  %v1061 = vunpack.c.l.b16 %v282
  %v1062 = vunpack.c.h.b16 %v282
  %v1063 = vunpack.c.l.b16 %v283
  %v1064 = vunpack.c.h.b16 %v283
  %v1065 = vunpack.c.l.b16 %v284
  %v1066 = vunpack.c.h.b16 %v284
  %v1067 = vunpack.c.l.b16 %v285
  %v1068 = vunpack.c.h.b16 %v285
  %v1069 = vunpack.c.l.b16 %v286
  %v1070 = vunpack.c.h.b16 %v286
  %v1071 = vunpack.c.l.b16 %v287
  %v1072 = vunpack.c.h.b16 %v287
  %v1073 = vunpack.c.l.b16 %v288
  %v1074 = vunpack.c.h.b16 %v288
  %v1075 = vunpack.c.l.b16 %v289
  %v1076 = vunpack.c.h.b16 %v289
  %v1077 = vunpack.c.l.b16 %v290
  %v1078 = vunpack.c.h.b16 %v290
  %v1079 = vunpack.c.l.b16 %v291
  %v1080 = vunpack.c.h.b16 %v291
  %v1081 = vunpack.c.l.b16 %v292
  %v1082 = vunpack.c.h.b16 %v292
  %v1083 = vpack.c.b16 %v575, %v571
  %v1084 = vpack.c.b16 %v576, %v572
  %v1085 = vpack.c.b16 %v577, %v573
  %v1086 = vpack.c.b16 %v578, %v574
  %v1087 = vpack.c.b16 %v583, %v579
  %v1088 = vpack.c.b16 %v584, %v580
  %v1089 = vpack.c.b16 %v585, %v581
  %v1090 = vpack.c.b16 %v586, %v582
  %v1091 = vpack.c.b16 %v591, %v587
  %v1092 = vpack.c.b16 %v592, %v588
  %v1093 = vpack.c.b16 %v593, %v589
  %v1094 = vpack.c.b16 %v594, %v590
  %v1095 = vpack.c.b16 %v599, %v595
  %v1096 = vpack.c.b16 %v600, %v596
  %v1097 = vpack.c.b16 %v601, %v597
  %v1098 = vpack.c.b16 %v602, %v598
  %v1099 = vpack.c.b16 %v607, %v603
  %v1100 = vpack.c.b16 %v608, %v604
  %v1101 = vpack.c.b16 %v609, %v605
  %v1102 = vpack.c.b16 %v610, %v606
  %v1103 = vpack.c.b16 %v615, %v611
  %v1104 = vpack.c.b16 %v616, %v612
  %v1105 = vpack.c.b16 %v617, %v613
  %v1106 = vpack.c.b16 %v618, %v614
  %v1107 = vpack.c.b16 %v623, %v619
  %v1108 = vpack.c.b16 %v624, %v620
  %v1109 = vpack.c.b16 %v625, %v621
  %v1110 = vpack.c.b16 %v626, %v622
  %v1111 = vpack.c.b16 %v631, %v627
  %v1112 = vpack.c.b16 %v632, %v628
  %v1113 = vpack.c.b16 %v633, %v629
  %v1114 = vpack.c.b16 %v634, %v630
  %v1115 = vpack.c.b16 %v639, %v635
  %v1116 = vpack.c.b16 %v640, %v636
  %v1117 = vpack.c.b16 %v641, %v637
  %v1118 = vpack.c.b16 %v642, %v638
  %v1119 = vpack.c.b16 %v647, %v643
  %v1120 = vpack.c.b16 %v648, %v644
  %v1121 = vpack.c.b16 %v649, %v645
  %v1122 = vpack.c.b16 %v650, %v646
  %v1123 = vpack.c.b16 %v655, %v651
  %v1124 = vpack.c.b16 %v656, %v652
  %v1125 = vpack.c.b16 %v657, %v653
  %v1126 = vpack.c.b16 %v658, %v654
  %v1127 = vpack.c.b16 %v663, %v659
  %v1128 = vpack.c.b16 %v664, %v660
  %v1129 = vpack.c.b16 %v665, %v661
  %v1130 = vpack.c.b16 %v666, %v662
  %v1131 = vpack.c.b16 %v671, %v667
  %v1132 = vpack.c.b16 %v672, %v668
  %v1133 = vpack.c.b16 %v673, %v669
  %v1134 = vpack.c.b16 %v674, %v670
  %v1135 = vpack.c.b16 %v679, %v675
  %v1136 = vpack.c.b16 %v680, %v676
  %v1137 = vpack.c.b16 %v681, %v677
  %v1138 = vpack.c.b16 %v682, %v678
  %v1139 = vpack.c.b16 %v687, %v683
  %v1140 = vpack.c.b16 %v688, %v684
  %v1141 = vpack.c.b16 %v689, %v685
  %v1142 = vpack.c.b16 %v690, %v686
  %v1143 = vpack.c.b16 %v695, %v691
  %v1144 = vpack.c.b16 %v696, %v692
  %v1145 = vpack.c.b16 %v697, %v693
  %v1146 = vpack.c.b16 %v698, %v694
  %v1147 = vpack.c.b16 %v703, %v699
  %v1148 = vpack.c.b16 %v704, %v700
  %v1149 = vpack.c.b16 %v705, %v701
  %v1150 = vpack.c.b16 %v706, %v702
  %v1151 = vpack.c.b16 %v711, %v707
  %v1152 = vpack.c.b16 %v712, %v708
  %v1153 = vpack.c.b16 %v713, %v709
  %v1154 = vpack.c.b16 %v714, %v710
  %v1155 = vpack.c.b16 %v719, %v715
  %v1156 = vpack.c.b16 %v720, %v716
  %v1157 = vpack.c.b16 %v721, %v717
  %v1158 = vpack.c.b16 %v722, %v718
  %v1159 = vpack.c.b16 %v727, %v723
  %v1160 = vpack.c.b16 %v728, %v724
  %v1161 = vpack.c.b16 %v729, %v725
  %v1162 = vpack.c.b16 %v730, %v726
  %v1163 = vpack.c.b16 %v735, %v731
  %v1164 = vpack.c.b16 %v736, %v732
  %v1165 = vpack.c.b16 %v737, %v733
  %v1166 = vpack.c.b16 %v738, %v734
  %v1167 = vpack.c.b16 %v743, %v739
  %v1168 = vpack.c.b16 %v744, %v740
  %v1169 = vpack.c.b16 %v745, %v741
  %v1170 = vpack.c.b16 %v746, %v742
  %v1171 = vpack.c.b16 %v751, %v747
  %v1172 = vpack.c.b16 %v752, %v748
  %v1173 = vpack.c.b16 %v753, %v749
  %v1174 = vpack.c.b16 %v754, %v750
  %v1175 = vpack.c.b16 %v759, %v755
  %v1176 = vpack.c.b16 %v760, %v756
  %v1177 = vpack.c.b16 %v761, %v757
  %v1178 = vpack.c.b16 %v762, %v758
  %v1179 = vpack.c.b16 %v767, %v763
  %v1180 = vpack.c.b16 %v768, %v764
  %v1181 = vpack.c.b16 %v769, %v765
  %v1182 = vpack.c.b16 %v770, %v766
  %v1183 = vpack.c.b16 %v775, %v771
  %v1184 = vpack.c.b16 %v776, %v772
  %v1185 = vpack.c.b16 %v777, %v773
  %v1186 = vpack.c.b16 %v778, %v774
  %v1187 = vpack.c.b16 %v783, %v779
  %v1188 = vpack.c.b16 %v784, %v780
  %v1189 = vpack.c.b16 %v785, %v781
  %v1190 = vpack.c.b16 %v786, %v782
  %v1191 = vpack.c.b16 %v791, %v787
  %v1192 = vpack.c.b16 %v792, %v788
  %v1193 = vpack.c.b16 %v793, %v789
  %v1194 = vpack.c.b16 %v794, %v790
  %v1195 = vpack.c.b16 %v799, %v795
  %v1196 = vpack.c.b16 %v800, %v796
  %v1197 = vpack.c.b16 %v801, %v797
  %v1198 = vpack.c.b16 %v802, %v798
  %v1199 = vpack.c.b16 %v807, %v803
  %v1200 = vpack.c.b16 %v808, %v804
  %v1201 = vpack.c.b16 %v809, %v805
  %v1202 = vpack.c.b16 %v810, %v806
  %v1203 = vpack.c.b16 %v815, %v811
  %v1204 = vpack.c.b16 %v816, %v812
  %v1205 = vpack.c.b16 %v817, %v813
  %v1206 = vpack.c.b16 %v818, %v814
  %v1207 = vpack.c.b16 %v823, %v819
  %v1208 = vpack.c.b16 %v824, %v820
  %v1209 = vpack.c.b16 %v825, %v821
  %v1210 = vpack.c.b16 %v826, %v822
  %v1211 = vpack.c.b16 %v831, %v827
  %v1212 = vpack.c.b16 %v832, %v828
  %v1213 = vpack.c.b16 %v833, %v829
  %v1214 = vpack.c.b16 %v834, %v830
  %v1215 = vpack.c.b16 %v839, %v835
  %v1216 = vpack.c.b16 %v840, %v836
  %v1217 = vpack.c.b16 %v841, %v837
  %v1218 = vpack.c.b16 %v842, %v838
  %v1219 = vpack.c.b16 %v847, %v843
  %v1220 = vpack.c.b16 %v848, %v844
  %v1221 = vpack.c.b16 %v849, %v845
  %v1222 = vpack.c.b16 %v850, %v846
  %v1223 = vpack.c.b16 %v855, %v851
  %v1224 = vpack.c.b16 %v856, %v852
  %v1225 = vpack.c.b16 %v857, %v853
  %v1226 = vpack.c.b16 %v858, %v854
  %v1227 = vpack.c.b16 %v863, %v859
  %v1228 = vpack.c.b16 %v864, %v860
  %v1229 = vpack.c.b16 %v865, %v861
  %v1230 = vpack.c.b16 %v866, %v862
  %v1231 = vpack.c.b16 %v871, %v867
  %v1232 = vpack.c.b16 %v872, %v868
  %v1233 = vpack.c.b16 %v873, %v869
  %v1234 = vpack.c.b16 %v874, %v870
  %v1235 = vpack.c.b16 %v879, %v875
  %v1236 = vpack.c.b16 %v880, %v876
  %v1237 = vpack.c.b16 %v881, %v877
  %v1238 = vpack.c.b16 %v882, %v878
  %v1239 = vpack.c.b16 %v887, %v883
  %v1240 = vpack.c.b16 %v888, %v884
  %v1241 = vpack.c.b16 %v889, %v885
  %v1242 = vpack.c.b16 %v890, %v886
  %v1243 = vpack.c.b16 %v895, %v891
  %v1244 = vpack.c.b16 %v896, %v892
  %v1245 = vpack.c.b16 %v897, %v893
  %v1246 = vpack.c.b16 %v898, %v894
  %v1247 = vpack.c.b16 %v903, %v899
  %v1248 = vpack.c.b16 %v904, %v900
  %v1249 = vpack.c.b16 %v905, %v901
  %v1250 = vpack.c.b16 %v906, %v902
  %v1251 = vpack.c.b16 %v911, %v907
  %v1252 = vpack.c.b16 %v912, %v908
  %v1253 = vpack.c.b16 %v913, %v909
  %v1254 = vpack.c.b16 %v914, %v910
  %v1255 = vpack.c.b16 %v919, %v915
  %v1256 = vpack.c.b16 %v920, %v916
  %v1257 = vpack.c.b16 %v921, %v917
  %v1258 = vpack.c.b16 %v922, %v918
  %v1259 = vpack.c.b16 %v927, %v923
  %v1260 = vpack.c.b16 %v928, %v924
  %v1261 = vpack.c.b16 %v929, %v925
  %v1262 = vpack.c.b16 %v930, %v926
  %v1263 = vpack.c.b16 %v935, %v931
  %v1264 = vpack.c.b16 %v936, %v932
  %v1265 = vpack.c.b16 %v937, %v933
  %v1266 = vpack.c.b16 %v938, %v934
  %v1267 = vpack.c.b16 %v943, %v939
  %v1268 = vpack.c.b16 %v944, %v940
  %v1269 = vpack.c.b16 %v945, %v941
  %v1270 = vpack.c.b16 %v946, %v942
  %v1271 = vpack.c.b16 %v951, %v947
  %v1272 = vpack.c.b16 %v952, %v948
  %v1273 = vpack.c.b16 %v953, %v949
  %v1274 = vpack.c.b16 %v954, %v950
  %v1275 = vpack.c.b16 %v959, %v955
  %v1276 = vpack.c.b16 %v960, %v956
  %v1277 = vpack.c.b16 %v961, %v957
  %v1278 = vpack.c.b16 %v962, %v958
  %v1279 = vpack.c.b16 %v967, %v963
  %v1280 = vpack.c.b16 %v968, %v964
  %v1281 = vpack.c.b16 %v969, %v965
  %v1282 = vpack.c.b16 %v970, %v966
  %v1283 = vpack.c.b16 %v975, %v971
  %v1284 = vpack.c.b16 %v976, %v972
  %v1285 = vpack.c.b16 %v977, %v973
  %v1286 = vpack.c.b16 %v978, %v974
  %v1287 = vpack.c.b16 %v983, %v979
  %v1288 = vpack.c.b16 %v984, %v980
  %v1289 = vpack.c.b16 %v985, %v981
  %v1290 = vpack.c.b16 %v986, %v982
  %v1291 = vpack.c.b16 %v991, %v987
  %v1292 = vpack.c.b16 %v992, %v988
  %v1293 = vpack.c.b16 %v993, %v989
  %v1294 = vpack.c.b16 %v994, %v990
  %v1295 = vpack.c.b16 %v999, %v995
  %v1296 = vpack.c.b16 %v1000, %v996
  %v1297 = vpack.c.b16 %v1001, %v997
  %v1298 = vpack.c.b16 %v1002, %v998
  %v1299 = vpack.c.b16 %v1007, %v1003
  %v1300 = vpack.c.b16 %v1008, %v1004
  %v1301 = vpack.c.b16 %v1009, %v1005
  %v1302 = vpack.c.b16 %v1010, %v1006
  %v1303 = vpack.c.b16 %v1015, %v1011
  %v1304 = vpack.c.b16 %v1016, %v1012
  %v1305 = vpack.c.b16 %v1017, %v1013
  %v1306 = vpack.c.b16 %v1018, %v1014
  %v1307 = vpack.c.b16 %v1023, %v1019
  %v1308 = vpack.c.b16 %v1024, %v1020
  %v1309 = vpack.c.b16 %v1025, %v1021
  %v1310 = vpack.c.b16 %v1026, %v1022
  %v1311 = vpack.c.b16 %v1031, %v1027
  %v1312 = vpack.c.b16 %v1032, %v1028
  %v1313 = vpack.c.b16 %v1033, %v1029
  %v1314 = vpack.c.b16 %v1034, %v1030
  %v1315 = vpack.c.b16 %v1039, %v1035
  %v1316 = vpack.c.b16 %v1040, %v1036
  %v1317 = vpack.c.b16 %v1041, %v1037
  %v1318 = vpack.c.b16 %v1042, %v1038
  %v1319 = vpack.c.b16 %v1047, %v1043
  %v1320 = vpack.c.b16 %v1048, %v1044
  %v1321 = vpack.c.b16 %v1049, %v1045
  %v1322 = vpack.c.b16 %v1050, %v1046
  %v1323 = vpack.c.b16 %v1055, %v1051
  %v1324 = vpack.c.b16 %v1056, %v1052
  %v1325 = vpack.c.b16 %v1057, %v1053
  %v1326 = vpack.c.b16 %v1058, %v1054
  %v1327 = vpack.c.b16 %v1063, %v1059
  %v1328 = vpack.c.b16 %v1064, %v1060
  %v1329 = vpack.c.b16 %v1065, %v1061
  %v1330 = vpack.c.b16 %v1066, %v1062
  %v1331 = vpack.c.b16 %v1071, %v1067
  %v1332 = vpack.c.b16 %v1072, %v1068
  %v1333 = vpack.c.b16 %v1073, %v1069
  %v1334 = vpack.c.b16 %v1074, %v1070
  %v1335 = vpack.c.b16 %v1079, %v1075
  %v1336 = vpack.c.b16 %v1080, %v1076
  %v1337 = vpack.c.b16 %v1081, %v1077
  %v1338 = vpack.c.b16 %v1082, %v1078
  %1595 = vmatprep.subr.bf16.mxu0 %v1112
  %1596 = vmatpush1.bf16.msra.mxu0 %v1111
  %1597 = vmatprep.subr.bf16.mxu0 %v1108
  %1598 = vmatpush1.bf16.msra.mxu0 %v1107
  %1599 = vmatprep.subr.bf16.mxu0 %v1104
  %1600 = vmatpush1.bf16.msra.mxu0 %v1103
  %1601 = vmatprep.subr.bf16.mxu0 %v1100
  %1602 = vmatpush1.bf16.msra.mxu0 %v1099
  %1603 = vmatprep.subr.bf16.mxu0 %v1096
  %1604 = vmatpush1.bf16.msra.mxu0 %v1095
  %1605 = vmatprep.subr.bf16.mxu0 %v1092
  %1606 = vmatpush1.bf16.msra.mxu0 %v1091
  %1607 = vmatprep.subr.bf16.mxu0 %v1088
  %1608 = vmatpush1.bf16.msra.mxu0 %v1087
  %1609 = vmatprep.subr.bf16.mxu0 %v1084
  %1610 = vmatpush1.bf16.msra.mxu0 %v1083
  %1611 = vmatprep.subr.bf16.mxu0 %v1144
  %1612 = vmatpush2.bf16.msra.mxu0 %v1143
  %1613 = vmatprep.subr.bf16.mxu0 %v1140
  %1614 = vmatpush2.bf16.msra.mxu0 %v1139
  %1615 = vmatprep.subr.bf16.mxu0 %v1136
  %1616 = vmatpush2.bf16.msra.mxu0 %v1135
  %1617 = vmatprep.subr.bf16.mxu0 %v1132
  %1618 = vmatpush2.bf16.msra.mxu0 %v1131
  %1619 = vmatprep.subr.bf16.mxu0 %v1128
  %1620 = vmatpush2.bf16.msra.mxu0 %v1127
  %1621 = vmatprep.subr.bf16.mxu0 %v1124
  %1622 = vmatpush2.bf16.msra.mxu0 %v1123
  %1623 = vmatprep.subr.bf16.mxu0 %v1120
  %1624 = vmatpush2.bf16.msra.mxu0 %v1119
  %1625 = vmatprep.subr.bf16.mxu0 %v1116
  %1626 = vmatpush2.bf16.msra.mxu0 %v1115
  %1627 = vmatprep.mubr.bf16.mxu0 %v30
  %1628 = vmatmul.mubr.bf16.gmra.mxu0 %v29
  %v1629 = vpop.f32.mrf.mxu0
  %v1630 = vadd.f32 %v298, %v1629
  %v1631 = vpop.f32.mrf.mxu0
  %v1632 = vadd.f32 %v302, %v1631
  %v1633 = vpop.f32.mrf.mxu0
  %v1634 = vpop.f32.mrf.mxu0
  %1635 = vdwg.mxu0
  %1636 = vmatprep.subr.bf16.mxu0 %v1176
  %1637 = vmatpush1.bf16.msra.mxu0 %v1175
  %1638 = vmatprep.subr.bf16.mxu0 %v1172
  %1639 = vmatpush1.bf16.msra.mxu0 %v1171
  %1640 = vmatprep.subr.bf16.mxu0 %v1168
  %1641 = vmatpush1.bf16.msra.mxu0 %v1167
  %1642 = vmatprep.subr.bf16.mxu0 %v1164
  %1643 = vmatpush1.bf16.msra.mxu0 %v1163
  %1644 = vmatprep.subr.bf16.mxu0 %v1160
  %1645 = vmatpush1.bf16.msra.mxu0 %v1159
  %1646 = vmatprep.subr.bf16.mxu0 %v1156
  %1647 = vmatpush1.bf16.msra.mxu0 %v1155
  %1648 = vmatprep.subr.bf16.mxu0 %v1152
  %1649 = vmatpush1.bf16.msra.mxu0 %v1151
  %1650 = vmatprep.subr.bf16.mxu0 %v1148
  %1651 = vmatpush1.bf16.msra.mxu0 %v1147
  %1652 = vmatprep.subr.bf16.mxu0 %v1208
  %1653 = vmatpush2.bf16.msra.mxu0 %v1207
  %1654 = vmatprep.subr.bf16.mxu0 %v1204
  %1655 = vmatpush2.bf16.msra.mxu0 %v1203
  %1656 = vmatprep.subr.bf16.mxu0 %v1200
  %1657 = vmatpush2.bf16.msra.mxu0 %v1199
  %1658 = vmatprep.subr.bf16.mxu0 %v1196
  %1659 = vmatpush2.bf16.msra.mxu0 %v1195
  %1660 = vmatprep.subr.bf16.mxu0 %v1192
  %1661 = vmatpush2.bf16.msra.mxu0 %v1191
  %1662 = vmatprep.subr.bf16.mxu0 %v1188
  %1663 = vmatpush2.bf16.msra.mxu0 %v1187
  %1664 = vmatprep.subr.bf16.mxu0 %v1184
  %1665 = vmatpush2.bf16.msra.mxu0 %v1183
  %1666 = vmatprep.subr.bf16.mxu0 %v1180
  %1667 = vmatpush2.bf16.msra.mxu0 %v1179
  %1668 = vmatprep.mubr.bf16.mxu0 %v32
  %1669 = vmatmul.mubr.bf16.gmra.mxu0 %v31
  %v1670 = vpop.f32.mrf.mxu0
  %v1671 = vadd.f32 %v1630, %v1670
  %v1672 = vpop.f32.mrf.mxu0
  %v1673 = vadd.f32 %v1632, %v1672
  %v1674 = vpop.f32.mrf.mxu0
  %v1675 = vpop.f32.mrf.mxu0
  %1676 = vdwg.mxu0
  %1677 = vmatprep.subr.bf16.mxu0 %v1240
  %1678 = vmatpush1.bf16.msra.mxu0 %v1239
  %1679 = vmatprep.subr.bf16.mxu0 %v1236
  %1680 = vmatpush1.bf16.msra.mxu0 %v1235
  %1681 = vmatprep.subr.bf16.mxu0 %v1232
  %1682 = vmatpush1.bf16.msra.mxu0 %v1231
  %1683 = vmatprep.subr.bf16.mxu0 %v1228
  %1684 = vmatpush1.bf16.msra.mxu0 %v1227
  %1685 = vmatprep.subr.bf16.mxu0 %v1224
  %1686 = vmatpush1.bf16.msra.mxu0 %v1223
  %1687 = vmatprep.subr.bf16.mxu0 %v1220
  %1688 = vmatpush1.bf16.msra.mxu0 %v1219
  %1689 = vmatprep.subr.bf16.mxu0 %v1216
  %1690 = vmatpush1.bf16.msra.mxu0 %v1215
  %1691 = vmatprep.subr.bf16.mxu0 %v1212
  %1692 = vmatpush1.bf16.msra.mxu0 %v1211
  %1693 = vmatprep.subr.bf16.mxu0 %v1272
  %1694 = vmatpush2.bf16.msra.mxu0 %v1271
  %1695 = vmatprep.subr.bf16.mxu0 %v1268
  %1696 = vmatpush2.bf16.msra.mxu0 %v1267
  %1697 = vmatprep.subr.bf16.mxu0 %v1264
  %1698 = vmatpush2.bf16.msra.mxu0 %v1263
  %1699 = vmatprep.subr.bf16.mxu0 %v1260
  %1700 = vmatpush2.bf16.msra.mxu0 %v1259
  %1701 = vmatprep.subr.bf16.mxu0 %v1256
  %1702 = vmatpush2.bf16.msra.mxu0 %v1255
  %1703 = vmatprep.subr.bf16.mxu0 %v1252
  %1704 = vmatpush2.bf16.msra.mxu0 %v1251
  %1705 = vmatprep.subr.bf16.mxu0 %v1248
  %1706 = vmatpush2.bf16.msra.mxu0 %v1247
  %1707 = vmatprep.subr.bf16.mxu0 %v1244
  %1708 = vmatpush2.bf16.msra.mxu0 %v1243
  %1709 = vmatprep.mubr.bf16.mxu0 %v34
  %1710 = vmatmul.mubr.bf16.gmra.mxu0 %v33
  %v1711 = vpop.f32.mrf.mxu0
  %v1712 = vadd.f32 %v1671, %v1711
  %v1713 = vpop.f32.mrf.mxu0
  %v1714 = vadd.f32 %v1673, %v1713
  %v1715 = vpop.f32.mrf.mxu0
  %v1716 = vpop.f32.mrf.mxu0
  %1717 = vdwg.mxu0
  %1718 = vmatprep.subr.bf16.mxu0 %v1304
  %1719 = vmatpush1.bf16.msra.mxu0 %v1303
  %1720 = vmatprep.subr.bf16.mxu0 %v1300
  %1721 = vmatpush1.bf16.msra.mxu0 %v1299
  %1722 = vmatprep.subr.bf16.mxu0 %v1296
  %1723 = vmatpush1.bf16.msra.mxu0 %v1295
  %1724 = vmatprep.subr.bf16.mxu0 %v1292
  %1725 = vmatpush1.bf16.msra.mxu0 %v1291
  %1726 = vmatprep.subr.bf16.mxu0 %v1288
  %1727 = vmatpush1.bf16.msra.mxu0 %v1287
  %1728 = vmatprep.subr.bf16.mxu0 %v1284
  %1729 = vmatpush1.bf16.msra.mxu0 %v1283
  %1730 = vmatprep.subr.bf16.mxu0 %v1280
  %1731 = vmatpush1.bf16.msra.mxu0 %v1279
  %1732 = vmatprep.subr.bf16.mxu0 %v1276
  %1733 = vmatpush1.bf16.msra.mxu0 %v1275
  %1734 = vmatprep.subr.bf16.mxu0 %v1336
  %1735 = vmatpush2.bf16.msra.mxu0 %v1335
  %1736 = vmatprep.subr.bf16.mxu0 %v1332
  %1737 = vmatpush2.bf16.msra.mxu0 %v1331
  %1738 = vmatprep.subr.bf16.mxu0 %v1328
  %1739 = vmatpush2.bf16.msra.mxu0 %v1327
  %1740 = vmatprep.subr.bf16.mxu0 %v1324
  %1741 = vmatpush2.bf16.msra.mxu0 %v1323
  %1742 = vmatprep.subr.bf16.mxu0 %v1320
  %1743 = vmatpush2.bf16.msra.mxu0 %v1319
  %1744 = vmatprep.subr.bf16.mxu0 %v1316
  %1745 = vmatpush2.bf16.msra.mxu0 %v1315
  %1746 = vmatprep.subr.bf16.mxu0 %v1312
  %1747 = vmatpush2.bf16.msra.mxu0 %v1311
  %1748 = vmatprep.subr.bf16.mxu0 %v1308
  %1749 = vmatpush2.bf16.msra.mxu0 %v1307
  %1750 = vmatprep.mubr.bf16.mxu0 %v36
  %1751 = vmatmul.mubr.bf16.gmra.mxu0 %v35
  %v1752 = vpop.f32.mrf.mxu0
  %v1753 = vadd.f32 %v1712, %v1752
  %v1754 = vpop.f32.mrf.mxu0
  %v1755 = vadd.f32 %v1714, %v1754
  %v1756 = vpop.f32.mrf.mxu0
  %v1757 = vpop.f32.mrf.mxu0
  %1758 = vdwg.mxu0
  %1759 = vmatprep.subr.bf16.mxu0 %v1114
  %1760 = vmatpush1.bf16.msra.mxu0 %v1113
  %1761 = vmatprep.subr.bf16.mxu0 %v1110
  %1762 = vmatpush1.bf16.msra.mxu0 %v1109
  %1763 = vmatprep.subr.bf16.mxu0 %v1106
  %1764 = vmatpush1.bf16.msra.mxu0 %v1105
  %1765 = vmatprep.subr.bf16.mxu0 %v1102
  %1766 = vmatpush1.bf16.msra.mxu0 %v1101
  %1767 = vmatprep.subr.bf16.mxu0 %v1098
  %1768 = vmatpush1.bf16.msra.mxu0 %v1097
  %1769 = vmatprep.subr.bf16.mxu0 %v1094
  %1770 = vmatpush1.bf16.msra.mxu0 %v1093
  %1771 = vmatprep.subr.bf16.mxu0 %v1090
  %1772 = vmatpush1.bf16.msra.mxu0 %v1089
  %1773 = vmatprep.subr.bf16.mxu0 %v1086
  %1774 = vmatpush1.bf16.msra.mxu0 %v1085
  %1775 = vmatprep.subr.bf16.mxu0 %v1146
  %1776 = vmatpush2.bf16.msra.mxu0 %v1145
  %1777 = vmatprep.subr.bf16.mxu0 %v1142
  %1778 = vmatpush2.bf16.msra.mxu0 %v1141
  %1779 = vmatprep.subr.bf16.mxu0 %v1138
  %1780 = vmatpush2.bf16.msra.mxu0 %v1137
  %1781 = vmatprep.subr.bf16.mxu0 %v1134
  %1782 = vmatpush2.bf16.msra.mxu0 %v1133
  %1783 = vmatprep.subr.bf16.mxu0 %v1130
  %1784 = vmatpush2.bf16.msra.mxu0 %v1129
  %1785 = vmatprep.subr.bf16.mxu0 %v1126
  %1786 = vmatpush2.bf16.msra.mxu0 %v1125
  %1787 = vmatprep.subr.bf16.mxu0 %v1122
  %1788 = vmatpush2.bf16.msra.mxu0 %v1121
  %1789 = vmatprep.subr.bf16.mxu0 %v1118
  %1790 = vmatpush2.bf16.msra.mxu0 %v1117
  %1791 = vmatprep.mubr.bf16.mxu0 %v30
  %1792 = vmatmul.mubr.bf16.gmra.mxu0 %v29
  %v1793 = vpop.f32.mrf.mxu0
  %v1794 = vadd.f32 %v306, %v1793
  %v1795 = vpop.f32.mrf.mxu0
  %v1796 = vadd.f32 %v310, %v1795
  %v1797 = vpop.f32.mrf.mxu0
  %v1798 = vpop.f32.mrf.mxu0
  %1799 = vdwg.mxu0
  %1800 = vmatprep.subr.bf16.mxu0 %v1178
  %1801 = vmatpush1.bf16.msra.mxu0 %v1177
  %1802 = vmatprep.subr.bf16.mxu0 %v1174
  %1803 = vmatpush1.bf16.msra.mxu0 %v1173
  %1804 = vmatprep.subr.bf16.mxu0 %v1170
  %1805 = vmatpush1.bf16.msra.mxu0 %v1169
  %1806 = vmatprep.subr.bf16.mxu0 %v1166
  %1807 = vmatpush1.bf16.msra.mxu0 %v1165
  %1808 = vmatprep.subr.bf16.mxu0 %v1162
  %1809 = vmatpush1.bf16.msra.mxu0 %v1161
  %1810 = vmatprep.subr.bf16.mxu0 %v1158
  %1811 = vmatpush1.bf16.msra.mxu0 %v1157
  %1812 = vmatprep.subr.bf16.mxu0 %v1154
  %1813 = vmatpush1.bf16.msra.mxu0 %v1153
  %1814 = vmatprep.subr.bf16.mxu0 %v1150
  %1815 = vmatpush1.bf16.msra.mxu0 %v1149
  %1816 = vmatprep.subr.bf16.mxu0 %v1210
  %1817 = vmatpush2.bf16.msra.mxu0 %v1209
  %1818 = vmatprep.subr.bf16.mxu0 %v1206
  %1819 = vmatpush2.bf16.msra.mxu0 %v1205
  %1820 = vmatprep.subr.bf16.mxu0 %v1202
  %1821 = vmatpush2.bf16.msra.mxu0 %v1201
  %1822 = vmatprep.subr.bf16.mxu0 %v1198
  %1823 = vmatpush2.bf16.msra.mxu0 %v1197
  %1824 = vmatprep.subr.bf16.mxu0 %v1194
  %1825 = vmatpush2.bf16.msra.mxu0 %v1193
  %1826 = vmatprep.subr.bf16.mxu0 %v1190
  %1827 = vmatpush2.bf16.msra.mxu0 %v1189
  %1828 = vmatprep.subr.bf16.mxu0 %v1186
  %1829 = vmatpush2.bf16.msra.mxu0 %v1185
  %1830 = vmatprep.subr.bf16.mxu0 %v1182
  %1831 = vmatpush2.bf16.msra.mxu0 %v1181
  %1832 = vmatprep.mubr.bf16.mxu0 %v32
  %1833 = vmatmul.mubr.bf16.gmra.mxu0 %v31
  %v1834 = vpop.f32.mrf.mxu0
  %v1835 = vadd.f32 %v1794, %v1834
  %v1836 = vpop.f32.mrf.mxu0
  %v1837 = vadd.f32 %v1796, %v1836
  %v1838 = vpop.f32.mrf.mxu0
  %v1839 = vpop.f32.mrf.mxu0
  %1840 = vdwg.mxu0
  %1841 = vmatprep.subr.bf16.mxu0 %v1242
  %1842 = vmatpush1.bf16.msra.mxu0 %v1241
  %1843 = vmatprep.subr.bf16.mxu0 %v1238
  %1844 = vmatpush1.bf16.msra.mxu0 %v1237
  %1845 = vmatprep.subr.bf16.mxu0 %v1234
  %1846 = vmatpush1.bf16.msra.mxu0 %v1233
  %1847 = vmatprep.subr.bf16.mxu0 %v1230
  %1848 = vmatpush1.bf16.msra.mxu0 %v1229
  %1849 = vmatprep.subr.bf16.mxu0 %v1226
  %1850 = vmatpush1.bf16.msra.mxu0 %v1225
  %1851 = vmatprep.subr.bf16.mxu0 %v1222
  %1852 = vmatpush1.bf16.msra.mxu0 %v1221
  %1853 = vmatprep.subr.bf16.mxu0 %v1218
  %1854 = vmatpush1.bf16.msra.mxu0 %v1217
  %1855 = vmatprep.subr.bf16.mxu0 %v1214
  %1856 = vmatpush1.bf16.msra.mxu0 %v1213
  %1857 = vmatprep.subr.bf16.mxu0 %v1274
  %1858 = vmatpush2.bf16.msra.mxu0 %v1273
  %1859 = vmatprep.subr.bf16.mxu0 %v1270
  %1860 = vmatpush2.bf16.msra.mxu0 %v1269
  %1861 = vmatprep.subr.bf16.mxu0 %v1266
  %1862 = vmatpush2.bf16.msra.mxu0 %v1265
  %1863 = vmatprep.subr.bf16.mxu0 %v1262
  %1864 = vmatpush2.bf16.msra.mxu0 %v1261
  %1865 = vmatprep.subr.bf16.mxu0 %v1258
  %1866 = vmatpush2.bf16.msra.mxu0 %v1257
  %1867 = vmatprep.subr.bf16.mxu0 %v1254
  %1868 = vmatpush2.bf16.msra.mxu0 %v1253
  %1869 = vmatprep.subr.bf16.mxu0 %v1250
  %1870 = vmatpush2.bf16.msra.mxu0 %v1249
  %1871 = vmatprep.subr.bf16.mxu0 %v1246
  %1872 = vmatpush2.bf16.msra.mxu0 %v1245
  %1873 = vmatprep.mubr.bf16.mxu0 %v34
  %1874 = vmatmul.mubr.bf16.gmra.mxu0 %v33
  %v1875 = vpop.f32.mrf.mxu0
  %v1876 = vadd.f32 %v1835, %v1875
  %v1877 = vpop.f32.mrf.mxu0
  %v1878 = vadd.f32 %v1837, %v1877
  %v1879 = vpop.f32.mrf.mxu0
  %v1880 = vpop.f32.mrf.mxu0
  %1881 = vdwg.mxu0
  %1882 = vmatprep.subr.bf16.mxu0 %v1306
  %1883 = vmatpush1.bf16.msra.mxu0 %v1305
  %1884 = vmatprep.subr.bf16.mxu0 %v1302
  %1885 = vmatpush1.bf16.msra.mxu0 %v1301
  %1886 = vmatprep.subr.bf16.mxu0 %v1298
  %1887 = vmatpush1.bf16.msra.mxu0 %v1297
  %1888 = vmatprep.subr.bf16.mxu0 %v1294
  %1889 = vmatpush1.bf16.msra.mxu0 %v1293
  %1890 = vmatprep.subr.bf16.mxu0 %v1290
  %1891 = vmatpush1.bf16.msra.mxu0 %v1289
  %1892 = vmatprep.subr.bf16.mxu0 %v1286
  %1893 = vmatpush1.bf16.msra.mxu0 %v1285
  %1894 = vmatprep.subr.bf16.mxu0 %v1282
  %1895 = vmatpush1.bf16.msra.mxu0 %v1281
  %1896 = vmatprep.subr.bf16.mxu0 %v1278
  %1897 = vmatpush1.bf16.msra.mxu0 %v1277
  %1898 = vmatprep.subr.bf16.mxu0 %v1338
  %1899 = vmatpush2.bf16.msra.mxu0 %v1337
  %1900 = vmatprep.subr.bf16.mxu0 %v1334
  %1901 = vmatpush2.bf16.msra.mxu0 %v1333
  %1902 = vmatprep.subr.bf16.mxu0 %v1330
  %1903 = vmatpush2.bf16.msra.mxu0 %v1329
  %1904 = vmatprep.subr.bf16.mxu0 %v1326
  %1905 = vmatpush2.bf16.msra.mxu0 %v1325
  %1906 = vmatprep.subr.bf16.mxu0 %v1322
  %1907 = vmatpush2.bf16.msra.mxu0 %v1321
  %1908 = vmatprep.subr.bf16.mxu0 %v1318
  %1909 = vmatpush2.bf16.msra.mxu0 %v1317
  %1910 = vmatprep.subr.bf16.mxu0 %v1314
  %1911 = vmatpush2.bf16.msra.mxu0 %v1313
  %1912 = vmatprep.subr.bf16.mxu0 %v1310
  %1913 = vmatpush2.bf16.msra.mxu0 %v1309
  %1914 = vmatprep.mubr.bf16.mxu0 %v36
  %1915 = vmatmul.mubr.bf16.gmra.mxu0 %v35
  %v1916 = vpop.f32.mrf.mxu0
  %v1917 = vadd.f32 %v1876, %v1916
  %v1918 = vpop.f32.mrf.mxu0
  %v1919 = vadd.f32 %v1878, %v1918
  %v1920 = vpop.f32.mrf.mxu0
  %v1921 = vpop.f32.mrf.mxu0
  %1922 = vdwg.mxu0
  %v1923 = vmax.f32 %v1753, 0.0
  %v1924 = vmax.f32 %v1755, 0.0
  %v1925 = vmax.f32 %v1917, 0.0
  %v1926 = vmax.f32 %v1919, 0.0
  %v1927 = vpack.c.bf16 %v1923, %v1923
  %v1928 = vpack.c.bf16 %v1924, %v1924
  %v1929 = vpack.c.bf16 %v1925, %v1925
  %v1930 = vpack.c.bf16 %v1926, %v1926
  %v1931 = vld [vmem:[%s3] sm:$0xf]
  %v1932 = vld [vmem:[%s3 + $0x4] sm:$0xf]
  %v1933 = vld [vmem:[%s3 + $0x8] sm:$0xf]
  %v1934 = vld [vmem:[%s3 + $0xc] sm:$0xf]
  %v1935 = vld [vmem:[%s3 + $0x10] sm:$0xf]
  %v1936 = vld [vmem:[%s3 + $0x14] sm:$0xf]
  %v1937 = vld [vmem:[%s3 + $0x18] sm:$0xf]
  %v1938 = vld [vmem:[%s3 + $0x1c] sm:$0xf]
  %v1939 = vld [vmem:[%s3 + $0x20] sm:$0xf]
  %v1940 = vld [vmem:[%s3 + $0x24] sm:$0xf]
  %v1941 = vld [vmem:[%s3 + $0x28] sm:$0xf]
  %v1942 = vld [vmem:[%s3 + $0x2c] sm:$0xf]
  %v1943 = vld [vmem:[%s3 + $0x30] sm:$0xf]
  %v1944 = vld [vmem:[%s3 + $0x34] sm:$0xf]
  %v1945 = vld [vmem:[%s3 + $0x38] sm:$0xf]
  %v1946 = vld [vmem:[%s3 + $0x3c] sm:$0xf]
  %v1947 = vld [vmem:[%s3 + $0x40] sm:$0xf]
  %v1948 = vld [vmem:[%s3 + $0x44] sm:$0xf]
  %v1949 = vld [vmem:[%s3 + $0x48] sm:$0xf]
  %v1950 = vld [vmem:[%s3 + $0x4c] sm:$0xf]
  %v1951 = vld [vmem:[%s3 + $0x50] sm:$0xf]
  %v1952 = vld [vmem:[%s3 + $0x54] sm:$0xf]
  %v1953 = vld [vmem:[%s3 + $0x58] sm:$0xf]
  %v1954 = vld [vmem:[%s3 + $0x5c] sm:$0xf]
  %v1955 = vld [vmem:[%s3 + $0x60] sm:$0xf]
  %v1956 = vld [vmem:[%s3 + $0x64] sm:$0xf]
  %v1957 = vld [vmem:[%s3 + $0x68] sm:$0xf]
  %v1958 = vld [vmem:[%s3 + $0x6c] sm:$0xf]
  %v1959 = vld [vmem:[%s3 + $0x70] sm:$0xf]
  %v1960 = vld [vmem:[%s3 + $0x74] sm:$0xf]
  %v1961 = vld [vmem:[%s3 + $0x78] sm:$0xf]
  %v1962 = vld [vmem:[%s3 + $0x7c] sm:$0xf]
  %v1963 = vld [vmem:[%s3 + $0x80] sm:$0xf]
  %v1964 = vld [vmem:[%s3 + $0x84] sm:$0xf]
  %v1965 = vld [vmem:[%s3 + $0x88] sm:$0xf]
  %v1966 = vld [vmem:[%s3 + $0x8c] sm:$0xf]
  %v1967 = vld [vmem:[%s3 + $0x90] sm:$0xf]
  %v1968 = vld [vmem:[%s3 + $0x94] sm:$0xf]
  %v1969 = vld [vmem:[%s3 + $0x98] sm:$0xf]
  %v1970 = vld [vmem:[%s3 + $0x9c] sm:$0xf]
  %v1971 = vld [vmem:[%s3 + $0xa0] sm:$0xf]
  %v1972 = vld [vmem:[%s3 + $0xa4] sm:$0xf]
  %v1973 = vld [vmem:[%s3 + $0xa8] sm:$0xf]
  %v1974 = vld [vmem:[%s3 + $0xac] sm:$0xf]
  %v1975 = vld [vmem:[%s3 + $0xb0] sm:$0xf]
  %v1976 = vld [vmem:[%s3 + $0xb4] sm:$0xf]
  %v1977 = vld [vmem:[%s3 + $0xb8] sm:$0xf]
  %v1978 = vld [vmem:[%s3 + $0xbc] sm:$0xf]
  %v1979 = vld [vmem:[%s3 + $0xc0] sm:$0xf]
  %v1980 = vld [vmem:[%s3 + $0xc4] sm:$0xf]
  %v1981 = vld [vmem:[%s3 + $0xc8] sm:$0xf]
  %v1982 = vld [vmem:[%s3 + $0xcc] sm:$0xf]
  %v1983 = vld [vmem:[%s3 + $0xd0] sm:$0xf]
  %v1984 = vld [vmem:[%s3 + $0xd4] sm:$0xf]
  %v1985 = vld [vmem:[%s3 + $0xd8] sm:$0xf]
  %v1986 = vld [vmem:[%s3 + $0xdc] sm:$0xf]
  %v1987 = vld [vmem:[%s3 + $0xe0] sm:$0xf]
  %v1988 = vld [vmem:[%s3 + $0xe4] sm:$0xf]
  %v1989 = vld [vmem:[%s3 + $0xe8] sm:$0xf]
  %v1990 = vld [vmem:[%s3 + $0xec] sm:$0xf]
  %v1991 = vld [vmem:[%s3 + $0xf0] sm:$0xf]
  %v1992 = vld [vmem:[%s3 + $0xf4] sm:$0xf]
  %v1993 = vld [vmem:[%s3 + $0xf8] sm:$0xf]
  %v1994 = vld [vmem:[%s3 + $0xfc] sm:$0xf]
  %v1995 = vld [vmem:[%s4] sm:$0x1]
  %v1997 = vlaneseq
  %v1998 = vshrl.u32 %v1997, 7
  %v1999 = vsub.s32 0, %v1998
  %v2000 = vrot.slane %v1995, %v1999
  %v2066 = vunpack.c.l.b16 %v1931
  %v2067 = vunpack.c.l.b16 %v1932
  %v2068 = vunpack.c.l.b16 %v1933
  %v2069 = vunpack.c.l.b16 %v1934
  %v2070 = vunpack.c.l.b16 %v1935
  %v2071 = vunpack.c.l.b16 %v1936
  %v2072 = vunpack.c.l.b16 %v1937
  %v2073 = vunpack.c.l.b16 %v1938
  %v2074 = vunpack.c.l.b16 %v1939
  %v2075 = vunpack.c.l.b16 %v1940
  %v2076 = vunpack.c.l.b16 %v1941
  %v2077 = vunpack.c.l.b16 %v1942
  %v2078 = vunpack.c.l.b16 %v1943
  %v2079 = vunpack.c.l.b16 %v1944
  %v2080 = vunpack.c.l.b16 %v1945
  %v2081 = vunpack.c.l.b16 %v1946
  %v2082 = vunpack.c.l.b16 %v1947
  %v2083 = vunpack.c.l.b16 %v1948
  %v2084 = vunpack.c.l.b16 %v1949
  %v2085 = vunpack.c.l.b16 %v1950
  %v2086 = vunpack.c.l.b16 %v1951
  %v2087 = vunpack.c.l.b16 %v1952
  %v2088 = vunpack.c.l.b16 %v1953
  %v2089 = vunpack.c.l.b16 %v1954
  %v2090 = vunpack.c.l.b16 %v1955
  %v2091 = vunpack.c.l.b16 %v1956
  %v2092 = vunpack.c.l.b16 %v1957
  %v2093 = vunpack.c.l.b16 %v1958
  %v2094 = vunpack.c.l.b16 %v1959
  %v2095 = vunpack.c.l.b16 %v1960
  %v2096 = vunpack.c.l.b16 %v1961
  %v2097 = vunpack.c.l.b16 %v1962
  %v2098 = vunpack.c.l.b16 %v1963
  %v2099 = vunpack.c.l.b16 %v1964
  %v2100 = vunpack.c.l.b16 %v1965
  %v2101 = vunpack.c.l.b16 %v1966
  %v2102 = vunpack.c.l.b16 %v1967
  %v2103 = vunpack.c.l.b16 %v1968
  %v2104 = vunpack.c.l.b16 %v1969
  %v2105 = vunpack.c.l.b16 %v1970
  %v2106 = vunpack.c.l.b16 %v1971
  %v2107 = vunpack.c.l.b16 %v1972
  %v2108 = vunpack.c.l.b16 %v1973
  %v2109 = vunpack.c.l.b16 %v1974
  %v2110 = vunpack.c.l.b16 %v1975
  %v2111 = vunpack.c.l.b16 %v1976
  %v2112 = vunpack.c.l.b16 %v1977
  %v2113 = vunpack.c.l.b16 %v1978
  %v2114 = vunpack.c.l.b16 %v1979
  %v2115 = vunpack.c.l.b16 %v1980
  %v2116 = vunpack.c.l.b16 %v1981
  %v2117 = vunpack.c.l.b16 %v1982
  %v2118 = vunpack.c.l.b16 %v1983
  %v2119 = vunpack.c.l.b16 %v1984
  %v2120 = vunpack.c.l.b16 %v1985
  %v2121 = vunpack.c.l.b16 %v1986
  %v2122 = vunpack.c.l.b16 %v1987
  %v2123 = vunpack.c.l.b16 %v1988
  %v2124 = vunpack.c.l.b16 %v1989
  %v2125 = vunpack.c.l.b16 %v1990
  %v2126 = vunpack.c.l.b16 %v1991
  %v2127 = vunpack.c.l.b16 %v1992
  %v2128 = vunpack.c.l.b16 %v1993
  %v2129 = vunpack.c.l.b16 %v1994
  %v2130 = vpack.c.b16 %v2067, %v2066
  %v2131 = vpack.c.b16 %v2069, %v2068
  %v2132 = vpack.c.b16 %v2071, %v2070
  %v2133 = vpack.c.b16 %v2073, %v2072
  %v2134 = vpack.c.b16 %v2075, %v2074
  %v2135 = vpack.c.b16 %v2077, %v2076
  %v2136 = vpack.c.b16 %v2079, %v2078
  %v2137 = vpack.c.b16 %v2081, %v2080
  %v2138 = vpack.c.b16 %v2083, %v2082
  %v2139 = vpack.c.b16 %v2085, %v2084
  %v2140 = vpack.c.b16 %v2087, %v2086
  %v2141 = vpack.c.b16 %v2089, %v2088
  %v2142 = vpack.c.b16 %v2091, %v2090
  %v2143 = vpack.c.b16 %v2093, %v2092
  %v2144 = vpack.c.b16 %v2095, %v2094
  %v2145 = vpack.c.b16 %v2097, %v2096
  %v2146 = vpack.c.b16 %v2099, %v2098
  %v2147 = vpack.c.b16 %v2101, %v2100
  %v2148 = vpack.c.b16 %v2103, %v2102
  %v2149 = vpack.c.b16 %v2105, %v2104
  %v2150 = vpack.c.b16 %v2107, %v2106
  %v2151 = vpack.c.b16 %v2109, %v2108
  %v2152 = vpack.c.b16 %v2111, %v2110
  %v2153 = vpack.c.b16 %v2113, %v2112
  %v2154 = vpack.c.b16 %v2115, %v2114
  %v2155 = vpack.c.b16 %v2117, %v2116
  %v2156 = vpack.c.b16 %v2119, %v2118
  %v2157 = vpack.c.b16 %v2121, %v2120
  %v2158 = vpack.c.b16 %v2123, %v2122
  %v2159 = vpack.c.b16 %v2125, %v2124
  %v2160 = vpack.c.b16 %v2127, %v2126
  %v2161 = vpack.c.b16 %v2129, %v2128
  %2194 = vmatprep.subr.bf16.mxu0 0
  %2195 = vmatpush1.bf16.msra.mxu0 %v2137
  %2196 = vmatprep.subr.bf16.mxu0 0
  %2197 = vmatpush1.bf16.msra.mxu0 %v2136
  %2198 = vmatprep.subr.bf16.mxu0 0
  %2199 = vmatpush1.bf16.msra.mxu0 %v2135
  %2200 = vmatprep.subr.bf16.mxu0 0
  %2201 = vmatpush1.bf16.msra.mxu0 %v2134
  %2202 = vmatprep.subr.bf16.mxu0 0
  %2203 = vmatpush1.bf16.msra.mxu0 %v2133
  %2204 = vmatprep.subr.bf16.mxu0 0
  %2205 = vmatpush1.bf16.msra.mxu0 %v2132
  %2206 = vmatprep.subr.bf16.mxu0 0
  %2207 = vmatpush1.bf16.msra.mxu0 %v2131
  %2208 = vmatprep.subr.bf16.mxu0 0
  %2209 = vmatpush1.bf16.msra.mxu0 %v2130
  %2210 = vmatprep.subr.bf16.mxu0 0
  %2211 = vmatpush2.bf16.msra.mxu0 %v2145
  %2212 = vmatprep.subr.bf16.mxu0 0
  %2213 = vmatpush2.bf16.msra.mxu0 %v2144
  %2214 = vmatprep.subr.bf16.mxu0 0
  %2215 = vmatpush2.bf16.msra.mxu0 %v2143
  %2216 = vmatprep.subr.bf16.mxu0 0
  %2217 = vmatpush2.bf16.msra.mxu0 %v2142
  %2218 = vmatprep.subr.bf16.mxu0 0
  %2219 = vmatpush2.bf16.msra.mxu0 %v2141
  %2220 = vmatprep.subr.bf16.mxu0 0
  %2221 = vmatpush2.bf16.msra.mxu0 %v2140
  %2222 = vmatprep.subr.bf16.mxu0 0
  %2223 = vmatpush2.bf16.msra.mxu0 %v2139
  %2224 = vmatprep.subr.bf16.mxu0 0
  %2225 = vmatpush2.bf16.msra.mxu0 %v2138
  %2226 = vmatprep.mubr.bf16.mxu0 %v1928
  %2227 = vmatmul.mubr.bf16.gmra.mxu0 %v1927
  %v2228 = vpop.f32.mrf.mxu0
  %v2229 = vadd.f32 %v2000, %v2228
  %v2230 = vpop.f32.mrf.mxu0
  %v2231 = vpop.f32.mrf.mxu0
  %v2232 = vpop.f32.mrf.mxu0
  %2233 = vdwg.mxu0
  %2234 = vmatprep.subr.bf16.mxu0 0
  %2235 = vmatpush1.bf16.msra.mxu0 %v2153
  %2236 = vmatprep.subr.bf16.mxu0 0
  %2237 = vmatpush1.bf16.msra.mxu0 %v2152
  %2238 = vmatprep.subr.bf16.mxu0 0
  %2239 = vmatpush1.bf16.msra.mxu0 %v2151
  %2240 = vmatprep.subr.bf16.mxu0 0
  %2241 = vmatpush1.bf16.msra.mxu0 %v2150
  %2242 = vmatprep.subr.bf16.mxu0 0
  %2243 = vmatpush1.bf16.msra.mxu0 %v2149
  %2244 = vmatprep.subr.bf16.mxu0 0
  %2245 = vmatpush1.bf16.msra.mxu0 %v2148
  %2246 = vmatprep.subr.bf16.mxu0 0
  %2247 = vmatpush1.bf16.msra.mxu0 %v2147
  %2248 = vmatprep.subr.bf16.mxu0 0
  %2249 = vmatpush1.bf16.msra.mxu0 %v2146
  %2250 = vmatprep.subr.bf16.mxu0 0
  %2251 = vmatpush2.bf16.msra.mxu0 %v2161
  %2252 = vmatprep.subr.bf16.mxu0 0
  %2253 = vmatpush2.bf16.msra.mxu0 %v2160
  %2254 = vmatprep.subr.bf16.mxu0 0
  %2255 = vmatpush2.bf16.msra.mxu0 %v2159
  %2256 = vmatprep.subr.bf16.mxu0 0
  %2257 = vmatpush2.bf16.msra.mxu0 %v2158
  %2258 = vmatprep.subr.bf16.mxu0 0
  %2259 = vmatpush2.bf16.msra.mxu0 %v2157
  %2260 = vmatprep.subr.bf16.mxu0 0
  %2261 = vmatpush2.bf16.msra.mxu0 %v2156
  %2262 = vmatprep.subr.bf16.mxu0 0
  %2263 = vmatpush2.bf16.msra.mxu0 %v2155
  %2264 = vmatprep.subr.bf16.mxu0 0
  %2265 = vmatpush2.bf16.msra.mxu0 %v2154
  %2266 = vmatprep.mubr.bf16.mxu0 %v1930
  %2267 = vmatmul.mubr.bf16.gmra.mxu0 %v1929
  %v2268 = vpop.f32.mrf.mxu0
  %v2269 = vadd.f32 %v2229, %v2268
  %v2270 = vpop.f32.mrf.mxu0
  %v2271 = vpop.f32.mrf.mxu0
  %v2272 = vpop.f32.mrf.mxu0
  %2273 = vdwg.mxu0
  %2274 = vst [vmem:[%s5] sm:$0xff] %v2269
  // Predicated region
  $region22: #{spadann_forward.3} parent=0 // pred_check
    _
  $region23: #{spadann_forward.3} parent=0 // pred_check_branch
    %2276 = sbr.rel (0) target = $region25
  $region24: #{spadann_forward.3} parent=0 // pred_region
    _
  $region25: #{spadann_forward.3} parent=0 // pred_fallthru
    _
  // Predicated region
  $region26: #{spadann_forward.3} parent=0 // pred_check
    _
  $region27: #{spadann_forward.3} parent=0 // pred_check_branch
    %2278 = sbr.rel (0) target = $region29
  $region28: #{spadann_forward.3} parent=0 // pred_region
    _
  $region29: #{spadann_forward.3} parent=0 // pred_fallthru
    _

</llo_original>
